<compile_context>
chip_gen: v7x
topology: tpu7x:2x2x1
jax: 0.10.0
libtpu: 0.0.40
codegen_flags: <defaults>
</compile_context>

<pallas_src>
import functools
import math

import jax
import jax.numpy as jnp
from jax.experimental import pallas as pl
from jax.experimental.pallas import tpu as pltpu


# ----------------------------------------------------------------------------
# Small helpers.
# ----------------------------------------------------------------------------
def _round_up(v, m):
    return (v + m - 1) // m * m


def _pad_to(a, shape):
    pads = [(0, t - s) for s, t in zip(a.shape, shape)]
    if all(p == (0, 0) for p in pads):
        return a
    return jnp.pad(a, pads)


def _tpu_kind():
    try:
        return jax.devices()[0].device_kind.lower()
    except Exception:  # pragma: no cover
        return ""


def _vmem_capacity_bytes():
    try:
        return int(pltpu.get_tpu_info().vmem_capacity_bytes)
    except Exception:
        kind = _tpu_kind()
        return (64 << 20) if ("v7" in kind or "7x" in kind) else (128 << 20)


def _use_bf16_probs_default():
    # bf16 EUP exp is a win on v6e/v7x; keep f32 softmax arithmetic elsewhere.
    kind = _tpu_kind()
    return ("v6" in kind) or ("v7" in kind) or ("7x" in kind)


def _compiler_params(block_bytes, temp_bytes, semantics):
    # Per-spec accounting (block bytes * buffer count) + in-kernel temporaries,
    # capped with headroom below the actual per-generation VMEM capacity
    # (~120 MiB usable on v5e/v6e, ~56 MiB on v7x).
    cap = _vmem_capacity_bytes()
    need = int(block_bytes) + int(temp_bytes) + (4 << 20)
    limit = int(max(16 << 20, min(cap - (8 << 20), need)))
    return pltpu.CompilerParams(dimension_semantics=semantics,
                                vmem_limit_bytes=limit)


# ----------------------------------------------------------------------------
# Stage 1: fused q/k/v projection, tiled over token rows.
# ----------------------------------------------------------------------------
def _qkv_kernel(x_ref, w_ref, q_ref, k_ref, vb_ref, vf_ref, *, scale, ip):
    x = x_ref[0].astype(jnp.bfloat16)                                    # (TQ, DP)
    qkv = jnp.dot(x, w_ref[...], preferred_element_type=jnp.float32)     # (TQ, 3*IP)
    q = qkv[:, :ip]                      # lane-aligned static slices (ip % 128 == 0)
    k = qkv[:, ip:2 * ip]
    v = qkv[:, 2 * ip:]
    q_ref[0] = (q * scale).astype(jnp.bfloat16)   # fold softmax scale into q
    k_ref[0] = k.astype(jnp.bfloat16)
    vb_ref[0] = v.astype(jnp.bfloat16)            # bf16 V: attention operand
    vf_ref[0] = v                                 # f32  V: residual add


# ----------------------------------------------------------------------------
# Stage 2: flash-style attention + output projection + residual.
# Grid = (B, query tiles, kv tiles); kv axis is innermost / "arbitrary".
# ----------------------------------------------------------------------------
def _attn_kernel(q_ref, k_ref, v_ref, bias_ref, vres_ref, wp_ref, bp_ref,
                 o_ref, m_ref, l_ref, acc_ref, *, bf16_probs):
    ki = pl.program_id(2)

    @pl.when(ki == 0)
    def _init():
        m_ref[...] = jnp.full_like(m_ref, -jnp.inf)
        l_ref[...] = jnp.zeros_like(l_ref)
        acc_ref[...] = jnp.zeros_like(acc_ref)

    q = q_ref[0]                                   # (TQ, IP) bf16, scale pre-folded
    k = k_ref[0]                                   # (TK, IP) bf16
    # scores: contract last axes of q and k -> no explicit k.T / XLU transpose
    s = jax.lax.dot_general(q, k, (((1,), (1,)), ((), ())),
                            preferred_element_type=jnp.float32)          # (TQ, TK)
    s = s + bias_ref[...]                          # additive pad mask (0 / -1e30), f32

    m_prev = m_ref[...]
    m_new = jnp.maximum(m_prev, jnp.max(s, axis=-1, keepdims=True))
    alpha = jnp.exp(m_prev - m_new)                # (TQ, 1)
    arg = s - m_new                                # f32; mask subtracted before any cast
    if bf16_probs:
        # bf16 EUP exp (v6e/v7x); denominator accumulated in f32.
        p = jnp.exp(arg.astype(jnp.bfloat16))
        row_sum = jnp.sum(p, axis=-1, keepdims=True, dtype=jnp.float32)
    else:
        p_f32 = jnp.exp(arg)
        row_sum = jnp.sum(p_f32, axis=-1, keepdims=True)
        p = p_f32.astype(jnp.bfloat16)
    l_ref[...] = alpha * l_ref[...] + row_sum
    acc_ref[...] = alpha * acc_ref[...] + jnp.dot(
        p, v_ref[0], preferred_element_type=jnp.float32)                 # (TQ, IP)
    m_ref[...] = m_new

    @pl.when(ki == pl.num_programs(2) - 1)
    def _finalize():
        # normalise the small (TQ, IP) accumulator, not the (TQ, TK) probs
        y = acc_ref[...] * pl.reciprocal(l_ref[...], approx=True)
        y = jnp.dot(y.astype(jnp.bfloat16), wp_ref[...],
                    preferred_element_type=jnp.float32) + bp_ref[...]    # proj
        o_ref[0] = vres_ref[0] + y                 # residual: v + proj(attn @ v)


# ----------------------------------------------------------------------------
# Wrapper: padding + pallas_call plumbing.
# ----------------------------------------------------------------------------
def attention_forward(x, params, *, num_heads=1, qk_scale=None,
                      tq=256, tk=256, bf16_probs=None):
    """t2t Attention forward: x (B, N, dim) -> (B, N, in_dim)."""
    B, N, C = x.shape
    in_dim = params["wq"].shape[1]
    scale = float(qk_scale) if qk_scale is not None else float(C // num_heads) ** -0.5
    if bf16_probs is None:
        bf16_probs = _use_bf16_probs_default()

    dp = _round_up(C, 128)                         # lane-pad model dim
    ip = _round_up(in_dim, 128)                    # lane-pad in_dim (lane-dense stores)
    # tq/tk fixed (256) independently of N; pad the sequence to both.
    n_pad = _round_up(N, (tq * tk) // math.gcd(tq, tk))

    xp = _pad_to(x, (B, n_pad, dp))
    # Fused (dp, 3*ip) bf16 qkv weight; each sub-matrix padded to ip first so
    # q/k/v slices in the kernel land on lane-aligned ip boundaries.
    wqkv = jnp.concatenate(
        [_pad_to(params["wq"], (dp, ip)),
         _pad_to(params["wk"], (dp, ip)),
         _pad_to(params["wv"], (dp, ip))], axis=1).astype(jnp.bfloat16)
    wp = _pad_to(params["wp"], (ip, ip)).astype(jnp.bfloat16)
    bp = _pad_to(params["bp"].reshape(1, -1).astype(jnp.float32), (1, ip))
    # Precomputed additive key-padding bias row (0 for valid keys, -1e30 for pad).
    bias = jnp.where(jnp.arange(n_pad) < N, 0.0, -1e30).astype(jnp.float32)
    bias = bias.reshape(1, n_pad)

    # ---- stage 1: fused q/k/v projection ----
    grid1 = (B, n_pad // tq)
    blocks1 = (2 * tq * dp * 4                     # x tile (double-buffered)
               + 2 * dp * 3 * ip * 2               # fused qkv weight
               + 2 * tq * ip * (2 + 2 + 2 + 4))    # q, k, v_bf16, v_f32 out tiles
    temps1 = tq * 3 * ip * 4 + tq * dp * 2         # f32 qkv result + bf16 x temp
    row_spec = pl.BlockSpec((1, tq, ip), lambda b, i: (b, i, 0))
    q, k, vb, vf = pl.pallas_call(
        functools.partial(_qkv_kernel, scale=scale, ip=ip),
        out_shape=(jax.ShapeDtypeStruct((B, n_pad, ip), jnp.bfloat16),   # q (pre-scaled)
                   jax.ShapeDtypeStruct((B, n_pad, ip), jnp.bfloat16),   # k
                   jax.ShapeDtypeStruct((B, n_pad, ip), jnp.bfloat16),   # v (attention)
                   jax.ShapeDtypeStruct((B, n_pad, ip), jnp.float32)),   # v (residual)
        grid=grid1,
        in_specs=[pl.BlockSpec((1, tq, dp), lambda b, i: (b, i, 0)),
                  pl.BlockSpec((dp, 3 * ip), lambda b, i: (0, 0))],
        out_specs=(row_spec, row_spec, row_spec, row_spec),
        compiler_params=_compiler_params(blocks1, temps1,
                                         ("parallel", "parallel")),
    )(xp, wqkv)

    # ---- stage 2: flash attention + proj + residual ----
    grid2 = (B, n_pad // tq, n_pad // tk)
    blocks2 = (2 * tq * ip * 2                     # q tile (bf16)
               + 2 * tk * ip * 2 * 2               # K + V kv tiles (bf16)
               + 2 * tk * 4                        # bias tile
               + 2 * tq * ip * 4                   # residual f32 V tile
               + 2 * (ip * ip * 2 + ip * 4)        # proj weight + bias
               + 2 * tq * ip * 4                   # out tile
               + tq * ip * 4 + 2 * tq * 128 * 4)   # scratch: acc + (m, l) lane-padded
    temps2 = 2 * tq * tk * 4                       # score / prob temporaries
    out = pl.pallas_call(
        functools.partial(_attn_kernel, bf16_probs=bool(bf16_probs)),
        out_shape=jax.ShapeDtypeStruct((B, n_pad, ip), jnp.float32),
        grid=grid2,
        in_specs=[pl.BlockSpec((1, tq, ip), lambda b, qi, ki: (b, qi, 0)),   # q tile
                  pl.BlockSpec((1, tk, ip), lambda b, qi, ki: (b, ki, 0)),   # K kv tile
                  pl.BlockSpec((1, tk, ip), lambda b, qi, ki: (b, ki, 0)),   # V kv tile (bf16)
                  pl.BlockSpec((1, tk), lambda b, qi, ki: (0, ki)),          # pad-mask bias
                  pl.BlockSpec((1, tq, ip), lambda b, qi, ki: (b, qi, 0)),   # residual V rows
                  pl.BlockSpec((ip, ip), lambda b, qi, ki: (0, 0)),          # proj weight
                  pl.BlockSpec((1, ip), lambda b, qi, ki: (0, 0))],          # proj bias
        out_specs=pl.BlockSpec((1, tq, ip), lambda b, qi, ki: (b, qi, 0)),
        scratch_shapes=[pltpu.VMEM((tq, 1), jnp.float32),    # m (running max)
                        pltpu.VMEM((tq, 1), jnp.float32),    # l (running denom)
                        pltpu.VMEM((tq, ip), jnp.float32)],  # acc
        compiler_params=_compiler_params(blocks2, temps2,
                                         ("parallel", "parallel", "arbitrary")),
    )(q, k, vb, bias, vf, wp, bp)

    return out[:, :N, :in_dim]


# ----------------------------------------------------------------------------
# Synthetic parameters + pure-JAX f32 reference (for validation).
# ----------------------------------------------------------------------------
def make_attention_params(key, dim, in_dim, std=0.02):
    # Stored as three (dim, in_dim) matrices; equivalent to the module's fused
    # nn.Linear(dim, 3*in_dim, bias=False) split into q/k/v.
    ks = jax.random.split(key, 4)
    return dict(
        wq=jax.random.normal(ks[0], (dim, in_dim), jnp.float32) * std,
        wk=jax.random.normal(ks[1], (dim, in_dim), jnp.float32) * std,
        wv=jax.random.normal(ks[2], (dim, in_dim), jnp.float32) * std,
        wp=jax.random.normal(ks[3], (in_dim, in_dim), jnp.float32) * std,
        bp=jnp.zeros((in_dim,), jnp.float32),
    )


def attention_ref(x, params, scale):
    q = (x @ params["wq"]) * scale
    k = x @ params["wk"]
    v = x @ params["wv"]
    attn = jax.nn.softmax(jnp.einsum("bnd,bmd->bnm", q, k), axis=-1)
    y = jnp.einsum("bnm,bmd->bnd", attn, v)
    y = y @ params["wp"] + params["bp"]
    return v + y


if __name__ == "__main__":
    key = jax.random.PRNGKey(0)
    kx, kp = jax.random.split(key)

    # Small shapes that exercise lane padding, query/kv tiling and key masking
    # (N=300 -> n_pad=512: two query tiles, two kv tiles, partial pad mask).
    B, N, dim, in_dim = 2, 300, 96, 64
    num_heads = 1   # the module's qkv reshape is only shape-consistent for 1 head

    x = jax.random.normal(kx, (B, N, dim), jnp.float32)
    params = make_attention_params(kp, dim, in_dim)

    fwd = jax.jit(functools.partial(attention_forward, num_heads=num_heads))
    out = jax.block_until_ready(fwd(x, params))
    assert out.shape == (B, N, in_dim), out.shape

    ref = attention_ref(x, params, scale=float(dim // num_heads) ** -0.5)
    err = float(jnp.max(jnp.abs(out - ref)))
    assert err < 5e-2, f"max abs err vs f32 reference: {err}"

    print("KERNEL_OK")
</pallas_src>

<mosaic_0001>
module attributes {stable_mosaic.version = 11 : i64} {
  func.func @_qkv_kernel(%arg0: i32, %arg1: i32, %arg2: memref<1x256x128xf32, #tpu.memory_space<vmem>>, %arg3: memref<128x384xbf16, #tpu.memory_space<vmem>>, %arg4: memref<1x256x128xbf16, #tpu.memory_space<vmem>>, %arg5: memref<1x256x128xbf16, #tpu.memory_space<vmem>>, %arg6: memref<1x256x128xbf16, #tpu.memory_space<vmem>>, %arg7: memref<1x256x128xf32, #tpu.memory_space<vmem>>) attributes {dimension_semantics = [#tpu.dimension_semantics<parallel>, #tpu.dimension_semantics<parallel>], iteration_bounds = array<i64: 2, 2>, scalar_prefetch = 0 : i64, scratch_operands = 0 : i64, tpu.core_type = #tpu.core_type<tc>, window_params = [{transform_indices = @transform_0, window_bounds = array<i64: 1, 256, 128>}, {pipeline_mode = #tpu.pipeline_mode<synchronous>, transform_indices = @transform_1, window_bounds = array<i64: 128, 384>}, {transform_indices = @transform_2, window_bounds = array<i64: 1, 256, 128>}, {transform_indices = @transform_3, window_bounds = array<i64: 1, 256, 128>}, {transform_indices = @transform_4, window_bounds = array<i64: 1, 256, 128>}, {transform_indices = @transform_5, window_bounds = array<i64: 1, 256, 128>}]} {
    %c0 = arith.constant 0 : index
    %c0_0 = arith.constant 0 : index
    %c0_1 = arith.constant 0 : index
    %0 = vector.load %arg2[%c0, %c0_0, %c0_1] : memref<1x256x128xf32, #tpu.memory_space<vmem>>, vector<1x256x128xf32>
    %1 = vector.shape_cast %0 : vector<1x256x128xf32> to vector<256x128xf32>
    %2 = arith.truncf %1 : vector<256x128xf32> to vector<256x128xbf16>
    %c0_2 = arith.constant 0 : index
    %c0_3 = arith.constant 0 : index
    %3 = vector.load %arg3[%c0_2, %c0_3] : memref<128x384xbf16, #tpu.memory_space<vmem>>, vector<128x384xbf16>
    %cst = arith.constant dense<0.000000e+00> : vector<256x384xf32>
    %4 = tpu.matmul %2, %3, %cst {dimension_numbers = #tpu.dot_dimension_numbers<[1], [0], [0], [1], [0, 0, 1, 1], [], []>} : vector<256x128xbf16>, vector<128x384xbf16>, vector<256x384xf32> -> vector<256x384xf32>
    %5 = vector.extract_strided_slice %4 {offsets = [0, 0], sizes = [256, 128], strides = [1, 1]} : vector<256x384xf32> to vector<256x128xf32>
    %6 = vector.extract_strided_slice %4 {offsets = [0, 128], sizes = [256, 128], strides = [1, 1]} : vector<256x384xf32> to vector<256x128xf32>
    %7 = vector.extract_strided_slice %4 {offsets = [0, 256], sizes = [256, 128], strides = [1, 1]} : vector<256x384xf32> to vector<256x128xf32>
    %cst_4 = arith.constant 0.102062076 : f32
    %8 = vector.broadcast %cst_4 : f32 to vector<256x128xf32>
    %9 = arith.mulf %5, %8 : vector<256x128xf32>
    %10 = arith.truncf %9 : vector<256x128xf32> to vector<256x128xbf16>
    %c0_5 = arith.constant 0 : index
    %c0_6 = arith.constant 0 : index
    %c0_7 = arith.constant 0 : index
    %11 = vector.load %arg4[%c0_5, %c0_6, %c0_7] : memref<1x256x128xbf16, #tpu.memory_space<vmem>>, vector<1x256x128xbf16>
    %12 = vector.shape_cast %11 : vector<1x256x128xbf16> to vector<256x128xbf16>
    %13 = vector.shape_cast %10 : vector<256x128xbf16> to vector<1x256x128xbf16>
    tpu.vector_store %arg4[%c0_5, %c0_6, %c0_7], %13 {strides = array<i32>} : memref<1x256x128xbf16, #tpu.memory_space<vmem>>, vector<1x256x128xbf16>,
    %14 = arith.truncf %6 : vector<256x128xf32> to vector<256x128xbf16>
    %c0_8 = arith.constant 0 : index
    %c0_9 = arith.constant 0 : index
    %c0_10 = arith.constant 0 : index
    %15 = vector.load %arg5[%c0_8, %c0_9, %c0_10] : memref<1x256x128xbf16, #tpu.memory_space<vmem>>, vector<1x256x128xbf16>
    %16 = vector.shape_cast %15 : vector<1x256x128xbf16> to vector<256x128xbf16>
    %17 = vector.shape_cast %14 : vector<256x128xbf16> to vector<1x256x128xbf16>
    tpu.vector_store %arg5[%c0_8, %c0_9, %c0_10], %17 {strides = array<i32>} : memref<1x256x128xbf16, #tpu.memory_space<vmem>>, vector<1x256x128xbf16>,
    %18 = arith.truncf %7 : vector<256x128xf32> to vector<256x128xbf16>
    %c0_11 = arith.constant 0 : index
    %c0_12 = arith.constant 0 : index
    %c0_13 = arith.constant 0 : index
    %19 = vector.load %arg6[%c0_11, %c0_12, %c0_13] : memref<1x256x128xbf16, #tpu.memory_space<vmem>>, vector<1x256x128xbf16>
    %20 = vector.shape_cast %19 : vector<1x256x128xbf16> to vector<256x128xbf16>
    %21 = vector.shape_cast %18 : vector<256x128xbf16> to vector<1x256x128xbf16>
    tpu.vector_store %arg6[%c0_11, %c0_12, %c0_13], %21 {strides = array<i32>} : memref<1x256x128xbf16, #tpu.memory_space<vmem>>, vector<1x256x128xbf16>,
    %c0_14 = arith.constant 0 : index
    %c0_15 = arith.constant 0 : index
    %c0_16 = arith.constant 0 : index
    %22 = vector.load %arg7[%c0_14, %c0_15, %c0_16] : memref<1x256x128xf32, #tpu.memory_space<vmem>>, vector<1x256x128xf32>
    %23 = vector.shape_cast %22 : vector<1x256x128xf32> to vector<256x128xf32>
    %24 = vector.shape_cast %7 : vector<256x128xf32> to vector<1x256x128xf32>
    tpu.vector_store %arg7[%c0_14, %c0_15, %c0_16], %24 {strides = array<i32>} : memref<1x256x128xf32, #tpu.memory_space<vmem>>, vector<1x256x128xf32>,
    return
  }
  func.func @transform_0(%arg0: i32, %arg1: i32) -> (i32, i32, i32) {
    %c0_i32 = arith.constant 0 : i32
    %c0_i32_0 = arith.constant 0 : i32
    return %arg0, %arg1, %c0_i32 : i32, i32, i32
  }
  func.func @transform_1(%arg0: i32, %arg1: i32) -> (i32, i32) {
    %c0_i32 = arith.constant 0 : i32
    %c0_i32_0 = arith.constant 0 : i32
    %c0_i32_1 = arith.constant 0 : i32
    return %c0_i32, %c0_i32_0 : i32, i32
  }
  func.func @transform_2(%arg0: i32, %arg1: i32) -> (i32, i32, i32) {
    %c0_i32 = arith.constant 0 : i32
    %c0_i32_0 = arith.constant 0 : i32
    return %arg0, %arg1, %c0_i32 : i32, i32, i32
  }
  func.func @transform_3(%arg0: i32, %arg1: i32) -> (i32, i32, i32) {
    %c0_i32 = arith.constant 0 : i32
    %c0_i32_0 = arith.constant 0 : i32
    return %arg0, %arg1, %c0_i32 : i32, i32, i32
  }
  func.func @transform_4(%arg0: i32, %arg1: i32) -> (i32, i32, i32) {
    %c0_i32 = arith.constant 0 : i32
    %c0_i32_0 = arith.constant 0 : i32
    return %arg0, %arg1, %c0_i32 : i32, i32, i32
  }
  func.func @transform_5(%arg0: i32, %arg1: i32) -> (i32, i32, i32) {
    %c0_i32 = arith.constant 0 : i32
    %c0_i32_0 = arith.constant 0 : i32
    return %arg0, %arg1, %c0_i32 : i32, i32, i32
  }
}

module attributes {stable_mosaic.version = 11 : i64} {
  func.func @_attn_kernel(%arg0: i32, %arg1: i32, %arg2: i32, %arg3: memref<1x256x128xbf16, #tpu.memory_space<vmem>>, %arg4: memref<1x256x128xbf16, #tpu.memory_space<vmem>>, %arg5: memref<1x256x128xbf16, #tpu.memory_space<vmem>>, %arg6: memref<1x256xf32, #tpu.memory_space<vmem>>, %arg7: memref<1x256x128xf32, #tpu.memory_space<vmem>>, %arg8: memref<128x128xbf16, #tpu.memory_space<vmem>>, %arg9: memref<1x128xf32, #tpu.memory_space<vmem>>, %arg10: memref<1x256x128xf32, #tpu.memory_space<vmem>>, %arg11: memref<256x1xf32, #tpu.memory_space<vmem>>, %arg12: memref<256x1xf32, #tpu.memory_space<vmem>>, %arg13: memref<256x128xf32, #tpu.memory_space<vmem>>) attributes {dimension_semantics = [#tpu.dimension_semantics<parallel>, #tpu.dimension_semantics<parallel>, #tpu.dimension_semantics<arbitrary>], iteration_bounds = array<i64: 2, 2, 2>, scalar_prefetch = 0 : i64, scratch_operands = 3 : i64, tpu.core_type = #tpu.core_type<tc>, window_params = [{transform_indices = @transform_0, window_bounds = array<i64: 1, 256, 128>}, {transform_indices = @transform_1, window_bounds = array<i64: 1, 256, 128>}, {transform_indices = @transform_2, window_bounds = array<i64: 1, 256, 128>}, {transform_indices = @transform_3, window_bounds = array<i64: 1, 256>}, {transform_indices = @transform_4, window_bounds = array<i64: 1, 256, 128>}, {pipeline_mode = #tpu.pipeline_mode<synchronous>, transform_indices = @transform_5, window_bounds = array<i64: 128, 128>}, {pipeline_mode = #tpu.pipeline_mode<synchronous>, transform_indices = @transform_6, window_bounds = array<i64: 1, 128>}, {transform_indices = @transform_7, window_bounds = array<i64: 1, 256, 128>}]} {
    %c0_i32 = arith.constant 0 : i32
    %0 = arith.cmpi eq, %arg2, %c0_i32 : i32
    %1 = arith.extui %0 : i1 to i32
    %c0_i32_0 = arith.constant 0 : i32
    %2 = arith.cmpi ne, %1, %c0_i32_0 : i32
    scf.if %2 {
      %cst_27 = arith.constant 0xFF800000 : f32
      %39 = vector.broadcast %cst_27 : f32 to vector<256x1xf32>
      %c0_28 = arith.constant 0 : index
      %c0_29 = arith.constant 0 : index
      %40 = vector.load %arg11[%c0_28, %c0_29] : memref<256x1xf32, #tpu.memory_space<vmem>>, vector<256x1xf32>
      tpu.vector_store %arg11[%c0_28, %c0_29], %39 {strides = array<i32>} : memref<256x1xf32, #tpu.memory_space<vmem>>, vector<256x1xf32>,
      %cst_30 = arith.constant 0.000000e+00 : f32
      %41 = vector.broadcast %cst_30 : f32 to vector<256x1xf32>
      %c0_31 = arith.constant 0 : index
      %c0_32 = arith.constant 0 : index
      %42 = vector.load %arg12[%c0_31, %c0_32] : memref<256x1xf32, #tpu.memory_space<vmem>>, vector<256x1xf32>
      tpu.vector_store %arg12[%c0_31, %c0_32], %41 {strides = array<i32>} : memref<256x1xf32, #tpu.memory_space<vmem>>, vector<256x1xf32>,
      %cst_33 = arith.constant 0.000000e+00 : f32
      %43 = vector.broadcast %cst_33 : f32 to vector<256x128xf32>
      %c0_34 = arith.constant 0 : index
      %c0_35 = arith.constant 0 : index
      %44 = vector.load %arg13[%c0_34, %c0_35] : memref<256x128xf32, #tpu.memory_space<vmem>>, vector<256x128xf32>
      tpu.vector_store %arg13[%c0_34, %c0_35], %43 {strides = array<i32>} : memref<256x128xf32, #tpu.memory_space<vmem>>, vector<256x128xf32>,
    } else {
    }
    %c0 = arith.constant 0 : index
    %c0_1 = arith.constant 0 : index
    %c0_2 = arith.constant 0 : index
    %3 = vector.load %arg3[%c0, %c0_1, %c0_2] : memref<1x256x128xbf16, #tpu.memory_space<vmem>>, vector<1x256x128xbf16>
    %4 = vector.shape_cast %3 : vector<1x256x128xbf16> to vector<256x128xbf16>
    %c0_3 = arith.constant 0 : index
    %c0_4 = arith.constant 0 : index
    %c0_5 = arith.constant 0 : index
    %5 = vector.load %arg4[%c0_3, %c0_4, %c0_5] : memref<1x256x128xbf16, #tpu.memory_space<vmem>>, vector<1x256x128xbf16>
    %6 = vector.shape_cast %5 : vector<1x256x128xbf16> to vector<256x128xbf16>
    %cst = arith.constant dense<0.000000e+00> : vector<256x256xf32>
    %7 = tpu.matmul %4, %6, %cst {dimension_numbers = #tpu.dot_dimension_numbers<[1], [1], [0], [0], [0, 0, 1, 0], [], []>} : vector<256x128xbf16>, vector<256x128xbf16>, vector<256x256xf32> -> vector<256x256xf32>
    %c0_6 = arith.constant 0 : index
    %c0_7 = arith.constant 0 : index
    %8 = vector.load %arg6[%c0_6, %c0_7] : memref<1x256xf32, #tpu.memory_space<vmem>>, vector<1x256xf32>
    %9 = vector.broadcast %8 : vector<1x256xf32> to vector<256x256xf32>
    %10 = arith.addf %7, %9 : vector<256x256xf32>
    %c0_8 = arith.constant 0 : index
    %c0_9 = arith.constant 0 : index
    %11 = vector.load %arg11[%c0_8, %c0_9] : memref<256x1xf32, #tpu.memory_space<vmem>>, vector<256x1xf32>
    %cst_10 = arith.constant dense<0xFF800000> : vector<256xf32>
    %12 = vector.multi_reduction <maximumf>, %10, %cst_10 [1] : vector<256x256xf32> to vector<256xf32>
    %13 = vector.shape_cast %12 : vector<256xf32> to vector<256x1xf32>
    %14 = arith.maximumf %11, %13 : vector<256x1xf32>
    %15 = arith.subf %11, %14 : vector<256x1xf32>
    %16 = math.exp %15 : vector<256x1xf32>
    %17 = vector.broadcast %14 : vector<256x1xf32> to vector<256x256xf32>
    %18 = arith.subf %10, %17 : vector<256x256xf32>
    %19 = math.exp %18 : vector<256x256xf32>
    %cst_11 = arith.constant dense<0.000000e+00> : vector<256xf32>
    %20 = vector.multi_reduction <add>, %19, %cst_11 [1] : vector<256x256xf32> to vector<256xf32>
    %21 = vector.shape_cast %20 : vector<256xf32> to vector<256x1xf32>
    %22 = arith.truncf %19 : vector<256x256xf32> to vector<256x256xbf16>
    %c0_12 = arith.constant 0 : index
    %c0_13 = arith.constant 0 : index
    %23 = vector.load %arg12[%c0_12, %c0_13] : memref<256x1xf32, #tpu.memory_space<vmem>>, vector<256x1xf32>
    %24 = arith.mulf %16, %23 : vector<256x1xf32>
    %25 = arith.addf %24, %21 : vector<256x1xf32>
    %c0_14 = arith.constant 0 : index
    %c0_15 = arith.constant 0 : index
    %26 = vector.load %arg12[%c0_14, %c0_15] : memref<256x1xf32, #tpu.memory_space<vmem>>, vector<256x1xf32>
    tpu.vector_store %arg12[%c0_14, %c0_15], %25 {strides = array<i32>} : memref<256x1xf32, #tpu.memory_space<vmem>>, vector<256x1xf32>,
    %c0_16 = arith.constant 0 : index
    %c0_17 = arith.constant 0 : index
    %27 = vector.load %arg13[%c0_16, %c0_17] : memref<256x128xf32, #tpu.memory_space<vmem>>, vector<256x128xf32>
    %28 = vector.broadcast %16 : vector<256x1xf32> to vector<256x128xf32>
    %29 = arith.mulf %28, %27 : vector<256x128xf32>
    %c0_18 = arith.constant 0 : index
    %c0_19 = arith.constant 0 : index
    %c0_20 = arith.constant 0 : index
    %30 = vector.load %arg5[%c0_18, %c0_19, %c0_20] : memref<1x256x128xbf16, #tpu.memory_space<vmem>>, vector<1x256x128xbf16>
    %31 = vector.shape_cast %30 : vector<1x256x128xbf16> to vector<256x128xbf16>
    %cst_21 = arith.constant dense<0.000000e+00> : vector<256x128xf32>
    %32 = tpu.matmul %22, %31, %cst_21 {dimension_numbers = #tpu.dot_dimension_numbers<[1], [0], [0], [1], [0, 0, 1, 1], [], []>} : vector<256x256xbf16>, vector<256x128xbf16>, vector<256x128xf32> -> vector<256x128xf32>
    %33 = arith.addf %29, %32 : vector<256x128xf32>
    %c0_22 = arith.constant 0 : index
    %c0_23 = arith.constant 0 : index
    %34 = vector.load %arg13[%c0_22, %c0_23] : memref<256x128xf32, #tpu.memory_space<vmem>>, vector<256x128xf32>
    tpu.vector_store %arg13[%c0_22, %c0_23], %33 {strides = array<i32>} : memref<256x128xf32, #tpu.memory_space<vmem>>, vector<256x128xf32>,
    %c0_24 = arith.constant 0 : index
    %c0_25 = arith.constant 0 : index
    %35 = vector.load %arg11[%c0_24, %c0_25] : memref<256x1xf32, #tpu.memory_space<vmem>>, vector<256x1xf32>
    tpu.vector_store %arg11[%c0_24, %c0_25], %14 {strides = array<i32>} : memref<256x1xf32, #tpu.memory_space<vmem>>, vector<256x1xf32>,
    %c1_i32 = arith.constant 1 : i32
    %36 = arith.cmpi eq, %arg2, %c1_i32 : i32
    %37 = arith.extui %36 : i1 to i32
    %c0_i32_26 = arith.constant 0 : i32
    %38 = arith.cmpi ne, %37, %c0_i32_26 : i32
    scf.if %38 {
      %c0_27 = arith.constant 0 : index
      %c0_28 = arith.constant 0 : index
      %39 = vector.load %arg13[%c0_27, %c0_28] : memref<256x128xf32, #tpu.memory_space<vmem>>, vector<256x128xf32>
      %c0_29 = arith.constant 0 : index
      %c0_30 = arith.constant 0 : index
      %40 = vector.load %arg12[%c0_29, %c0_30] : memref<256x1xf32, #tpu.memory_space<vmem>>, vector<256x1xf32>
      %41 = tpu.reciprocal %40 {approx = true} : vector<256x1xf32> -> vector<256x1xf32>
      %42 = vector.broadcast %41 : vector<256x1xf32> to vector<256x128xf32>
      %43 = arith.mulf %39, %42 : vector<256x128xf32>
      %44 = arith.truncf %43 : vector<256x128xf32> to vector<256x128xbf16>
      %c0_31 = arith.constant 0 : index
      %c0_32 = arith.constant 0 : index
      %45 = vector.load %arg8[%c0_31, %c0_32] : memref<128x128xbf16, #tpu.memory_space<vmem>>, vector<128x128xbf16>
      %cst_33 = arith.constant dense<0.000000e+00> : vector<256x128xf32>
      %46 = tpu.matmul %44, %45, %cst_33 {dimension_numbers = #tpu.dot_dimension_numbers<[1], [0], [0], [1], [0, 0, 1, 1], [], []>} : vector<256x128xbf16>, vector<128x128xbf16>, vector<256x128xf32> -> vector<256x128xf32>
      %c0_34 = arith.constant 0 : index
      %c0_35 = arith.constant 0 : index
      %47 = vector.load %arg9[%c0_34, %c0_35] : memref<1x128xf32, #tpu.memory_space<vmem>>, vector<1x128xf32>
      %48 = vector.broadcast %47 : vector<1x128xf32> to vector<256x128xf32>
      %49 = arith.addf %46, %48 : vector<256x128xf32>
      %c0_36 = arith.constant 0 : index
      %c0_37 = arith.constant 0 : index
      %c0_38 = arith.constant 0 : index
      %50 = vector.load %arg7[%c0_36, %c0_37, %c0_38] : memref<1x256x128xf32, #tpu.memory_space<vmem>>, vector<1x256x128xf32>
      %51 = vector.shape_cast %50 : vector<1x256x128xf32> to vector<256x128xf32>
      %52 = arith.addf %51, %49 : vector<256x128xf32>
      %c0_39 = arith.constant 0 : index
      %c0_40 = arith.constant 0 : index
      %c0_41 = arith.constant 0 : index
      %53 = vector.load %arg10[%c0_39, %c0_40, %c0_41] : memref<1x256x128xf32, #tpu.memory_space<vmem>>, vector<1x256x128xf32>
      %54 = vector.shape_cast %53 : vector<1x256x128xf32> to vector<256x128xf32>
      %55 = vector.shape_cast %52 : vector<256x128xf32> to vector<1x256x128xf32>
      tpu.vector_store %arg10[%c0_39, %c0_40, %c0_41], %55 {strides = array<i32>} : memref<1x256x128xf32, #tpu.memory_space<vmem>>, vector<1x256x128xf32>,
    } else {
    }
    return
  }
  func.func @transform_0(%arg0: i32, %arg1: i32, %arg2: i32) -> (i32, i32, i32) {
    %c0_i32 = arith.constant 0 : i32
    %c0_i32_0 = arith.constant 0 : i32
    return %arg0, %arg1, %c0_i32 : i32, i32, i32
  }
  func.func @transform_1(%arg0: i32, %arg1: i32, %arg2: i32) -> (i32, i32, i32) {
    %c0_i32 = arith.constant 0 : i32
    %c0_i32_0 = arith.constant 0 : i32
    return %arg0, %arg2, %c0_i32 : i32, i32, i32
  }
  func.func @transform_2(%arg0: i32, %arg1: i32, %arg2: i32) -> (i32, i32, i32) {
    %c0_i32 = arith.constant 0 : i32
    %c0_i32_0 = arith.constant 0 : i32
    return %arg0, %arg2, %c0_i32 : i32, i32, i32
  }
  func.func @transform_3(%arg0: i32, %arg1: i32, %arg2: i32) -> (i32, i32) {
    %c0_i32 = arith.constant 0 : i32
    %c0_i32_0 = arith.constant 0 : i32
    return %c0_i32, %arg2 : i32, i32
  }
  func.func @transform_4(%arg0: i32, %arg1: i32, %arg2: i32) -> (i32, i32, i32) {
    %c0_i32 = arith.constant 0 : i32
    %c0_i32_0 = arith.constant 0 : i32
    return %arg0, %arg1, %c0_i32 : i32, i32, i32
  }
  func.func @transform_5(%arg0: i32, %arg1: i32, %arg2: i32) -> (i32, i32) {
    %c0_i32 = arith.constant 0 : i32
    %c0_i32_0 = arith.constant 0 : i32
    %c0_i32_1 = arith.constant 0 : i32
    return %c0_i32, %c0_i32_0 : i32, i32
  }
  func.func @transform_6(%arg0: i32, %arg1: i32, %arg2: i32) -> (i32, i32) {
    %c0_i32 = arith.constant 0 : i32
    %c0_i32_0 = arith.constant 0 : i32
    %c0_i32_1 = arith.constant 0 : i32
    return %c0_i32, %c0_i32_0 : i32, i32
  }
  func.func @transform_7(%arg0: i32, %arg1: i32, %arg2: i32) -> (i32, i32, i32) {
    %c0_i32 = arith.constant 0 : i32
    %c0_i32_0 = arith.constant 0 : i32
    return %arg0, %arg1, %c0_i32 : i32, i32, i32
  }
}

</mosaic_0001>

<llo_original>
// kernel: attention_forward.2
$region0: #{attention_forward.2}
  #allocation0 [shape = 'u32[]', space=smem, size = 0x4, offset = 0x4, fixed_abs, tag = 'smem constant byte address 0x4 - core index']
  #allocation1 [shape = 'u32[144,128]{1,0:T(1,128)}', space=vmem, size = 0x12000, scoped, tag = 'internal scratch']
  %s0 = inlined_call_operand.vmem [shape: f32[2,512,128], index: 0, kind: input, shape index: {}]
  %s1 = inlined_call_operand.vmem [shape: bf16[128,384], index: 1, kind: input, shape index: {}]
  %s2 = inlined_call_operand.vmem [shape: bf16[2,512,128], index: 2, kind: output, shape index: {0}]
  %s3 = inlined_call_operand.vmem [shape: bf16[2,512,128], index: 3, kind: output, shape index: {1}]
  %s4 = inlined_call_operand.vmem [shape: bf16[2,512,128], index: 4, kind: output, shape index: {2}]
  %s5 = inlined_call_operand.vmem [shape: f32[2,512,128], index: 5, kind: output, shape index: {3}]
  %6 = xla_tuple %s2, %s3, %s4, %s5
  %s7 = sld [smem:[#allocation0]]
  $region65: #{attention_forward.2} parent=0
    _
  %s9 = ssub.s32 1, %s7
  %s10 = scalar_select 0, %s9, %s7
  loop: start=0, step=1, limit=6
  $region2: #{attention_forward.2} parent=0 // loop_pre_header
    _
  $region3: #{attention_forward.2} parent=0 // loop_header
    %s12 = sphi 0, %s16
    %p13 = scmp.ge.s32.totalorder %s12, 6
    %s19 = sphi 0, %s31
    %s20 = sphi 0, %s27
    %s21 = sphi 0, %s19
    %s22 = sphi 0, %s20
    %s23 = sphi 0, %s21
    %s24 = sphi 0, %s22
    %s36 = sphi 0, %s38
    %s39 = sphi 0, %s36
    %s40 = sphi 0, %s39
    %s56 = sphi 0, %s40
    %s60 = sphi 0, %s60
    %s62 = sphi 0, %s60
    %s63 = sphi 0, %s62
    %s77 = sphi 0, %s63
    %s85 = sphi 0, %s87
    %s88 = sphi 0, %s85
    %s89 = sphi 0, %s88
    %s105 = sphi 0, %s89
    %s113 = sphi 0, %s115
    %s116 = sphi 0, %s113
    %s117 = sphi 0, %s116
    %s133 = sphi 0, %s117
    %s141 = sphi 0, %s143
    %s144 = sphi 0, %s141
    %s145 = sphi 0, %s144
    %s161 = sphi 0, %s145
    %s169 = sphi 0, %s171
    %s172 = sphi 0, %s169
    %s173 = sphi 0, %s172
    %s189 = sphi 0, %s173
  $region4: #{attention_forward.2} parent=0 // loop_header_branch
    %15 = sbr.rel (%p13) target = $region8
  $region5: #{attention_forward.2} parent=0 // loop_body
    %s17 = ssub.s32 %s12, 1
    %s18 = ssub.s32 %s12, 2
    %s25 = sadd.s32 1, %s20
    %p26 = scmp.ge.s32.totalorder %s25, 2
    %s27 = scalar_select %p26, 0, %s25
    %s28 = sadd.s32 1, %s19
    %s29 = scalar_select %p26, %s28, %s19
    %p30 = scmp.ge.s32.totalorder %s29, 2
    %s31 = scalar_select %p30, 0, %s29
    %s32 = ssub.s32 %s19, %s31
    %s33 = ssub.s32 %s20, %s27
    %s34 = sor.u32 %s32, %s33
    %p35 = scmp.eq.s32.totalorder %s34, 0
    %s37 = sadd.s32 %s36, 1
    %s38 = scalar_select %p35, %s36, %s37
    %p41 = pneg %p35
    %p42 = scmp.eq.s32.totalorder %s12, 3
    %p43 = por %p41, %p42
    %p44 = scmp.ne.s32.totalorder %s36, %s39
    %p45 = scmp.eq.s32.totalorder %s12, 0
    %p46 = por %p44, %p45
    %p47 = scmp.ne.s32.totalorder %s36, %s39
    %p48 = scmp.eq.s32.totalorder %s17, 3
    %p49 = por %p47, %p48
    %p50 = scmp.ne.s32.totalorder %s39, %s40
    %p51 = scmp.eq.s32.totalorder %s17, 0
    %p52 = por %p50, %p51
    %p53 = scmp.ne.s32.totalorder %s39, %s40
    %p54 = scmp.eq.s32.totalorder %s18, 3
    %p55 = por %p53, %p54
    %p57 = scmp.ne.s32.totalorder %s40, %s56
    %p58 = scmp.eq.s32.totalorder %s18, 0
    %p59 = por %p57, %p58
    %s61 = sadd.s32 %s60, 1
    %p64 = scmp.eq.s32.totalorder %s12, 3
    %p65 = scmp.ne.s32.totalorder %s60, %s62
    %p66 = scmp.eq.s32.totalorder %s12, 0
    %p67 = por %p65, %p66
    %p68 = scmp.ne.s32.totalorder %s60, %s62
    %p69 = scmp.eq.s32.totalorder %s17, 3
    %p70 = por %p68, %p69
    %p71 = scmp.ne.s32.totalorder %s62, %s63
    %p72 = scmp.eq.s32.totalorder %s17, 0
    %p73 = por %p71, %p72
    %p74 = scmp.ne.s32.totalorder %s62, %s63
    %p75 = scmp.eq.s32.totalorder %s18, 3
    %p76 = por %p74, %p75
    %p78 = scmp.ne.s32.totalorder %s63, %s77
    %p79 = scmp.eq.s32.totalorder %s18, 0
    %p80 = por %p78, %p79
    %s81 = ssub.s32 %s19, %s31
    %s82 = ssub.s32 %s20, %s27
    %s83 = sor.u32 %s81, %s82
    %p84 = scmp.eq.s32.totalorder %s83, 0
    %s86 = sadd.s32 %s85, 1
    %s87 = scalar_select %p84, %s85, %s86
    %p90 = pneg %p84
    %p91 = scmp.eq.s32.totalorder %s12, 3
    %p92 = por %p90, %p91
    %p93 = scmp.ne.s32.totalorder %s85, %s88
    %p94 = scmp.eq.s32.totalorder %s12, 0
    %p95 = por %p93, %p94
    %p96 = scmp.ne.s32.totalorder %s85, %s88
    %p97 = scmp.eq.s32.totalorder %s17, 3
    %p98 = por %p96, %p97
    %p99 = scmp.ne.s32.totalorder %s88, %s89
    %p100 = scmp.eq.s32.totalorder %s17, 0
    %p101 = por %p99, %p100
    %p102 = scmp.ne.s32.totalorder %s88, %s89
    %p103 = scmp.eq.s32.totalorder %s18, 3
    %p104 = por %p102, %p103
    %p106 = scmp.ne.s32.totalorder %s89, %s105
    %p107 = scmp.eq.s32.totalorder %s18, 0
    %p108 = por %p106, %p107
    %s109 = ssub.s32 %s19, %s31
    %s110 = ssub.s32 %s20, %s27
    %s111 = sor.u32 %s109, %s110
    %p112 = scmp.eq.s32.totalorder %s111, 0
    %s114 = sadd.s32 %s113, 1
    %s115 = scalar_select %p112, %s113, %s114
    %p118 = pneg %p112
    %p119 = scmp.eq.s32.totalorder %s12, 3
    %p120 = por %p118, %p119
    %p121 = scmp.ne.s32.totalorder %s113, %s116
    %p122 = scmp.eq.s32.totalorder %s12, 0
    %p123 = por %p121, %p122
    %p124 = scmp.ne.s32.totalorder %s113, %s116
    %p125 = scmp.eq.s32.totalorder %s17, 3
    %p126 = por %p124, %p125
    %p127 = scmp.ne.s32.totalorder %s116, %s117
    %p128 = scmp.eq.s32.totalorder %s17, 0
    %p129 = por %p127, %p128
    %p130 = scmp.ne.s32.totalorder %s116, %s117
    %p131 = scmp.eq.s32.totalorder %s18, 3
    %p132 = por %p130, %p131
    %p134 = scmp.ne.s32.totalorder %s117, %s133
    %p135 = scmp.eq.s32.totalorder %s18, 0
    %p136 = por %p134, %p135
    %s137 = ssub.s32 %s19, %s31
    %s138 = ssub.s32 %s20, %s27
    %s139 = sor.u32 %s137, %s138
    %p140 = scmp.eq.s32.totalorder %s139, 0
    %s142 = sadd.s32 %s141, 1
    %s143 = scalar_select %p140, %s141, %s142
    %p146 = pneg %p140
    %p147 = scmp.eq.s32.totalorder %s12, 3
    %p148 = por %p146, %p147
    %p149 = scmp.ne.s32.totalorder %s141, %s144
    %p150 = scmp.eq.s32.totalorder %s12, 0
    %p151 = por %p149, %p150
    %p152 = scmp.ne.s32.totalorder %s141, %s144
    %p153 = scmp.eq.s32.totalorder %s17, 3
    %p154 = por %p152, %p153
    %p155 = scmp.ne.s32.totalorder %s144, %s145
    %p156 = scmp.eq.s32.totalorder %s17, 0
    %p157 = por %p155, %p156
    %p158 = scmp.ne.s32.totalorder %s144, %s145
    %p159 = scmp.eq.s32.totalorder %s18, 3
    %p160 = por %p158, %p159
    %p162 = scmp.ne.s32.totalorder %s145, %s161
    %p163 = scmp.eq.s32.totalorder %s18, 0
    %p164 = por %p162, %p163
    %s165 = ssub.s32 %s19, %s31
    %s166 = ssub.s32 %s20, %s27
    %s167 = sor.u32 %s165, %s166
    %p168 = scmp.eq.s32.totalorder %s167, 0
    %s170 = sadd.s32 %s169, 1
    %s171 = scalar_select %p168, %s169, %s170
    %p174 = pneg %p168
    %p175 = scmp.eq.s32.totalorder %s12, 3
    %p176 = por %p174, %p175
    %p177 = scmp.ne.s32.totalorder %s169, %s172
    %p178 = scmp.eq.s32.totalorder %s12, 0
    %p179 = por %p177, %p178
    %p180 = scmp.ne.s32.totalorder %s169, %s172
    %p181 = scmp.eq.s32.totalorder %s17, 3
    %p182 = por %p180, %p181
    %p183 = scmp.ne.s32.totalorder %s172, %s173
    %p184 = scmp.eq.s32.totalorder %s17, 0
    %p185 = por %p183, %p184
    %p186 = scmp.ne.s32.totalorder %s172, %s173
    %p187 = scmp.eq.s32.totalorder %s18, 3
    %p188 = por %p186, %p187
    %p190 = scmp.ne.s32.totalorder %s173, %s189
    %p191 = scmp.eq.s32.totalorder %s18, 0
    %p192 = por %p190, %p191
    %p193 = scmp.le.s32.totalorder 1, %s12
    %p194 = scmp.lt.s32.totalorder %s12, 5
    %p195 = pnand %p193, %p194
    %p196 = pneg %p195
    // Predicated region
    $region9: #{attention_forward.2} parent=5 // pred_check
      _
    $region10: #{attention_forward.2} parent=5 // pred_check_branch
      %198 = sbr.rel (%p195) target = $region12
    $region11: #{attention_forward.2} parent=5 // pred_region
      %s199 = ssub.s32 %s12, 1
      // Predicated region
      $region13: #{attention_forward.2} parent=11 // pred_check
        %p200 = pneg %p73
      $region14: #{attention_forward.2} parent=11 // pred_check_branch
        %202 = sbr.rel (%p200) target = $region16
      $region15: #{attention_forward.2} parent=11 // pred_region
        _
      $region16: #{attention_forward.2} parent=11 // pred_fallthru
        _
    $region12: #{attention_forward.2} parent=5 // pred_fallthru
      _
    %p203 = scmp.lt.s32.totalorder %s12, 4
    // Predicated region
    $region17: #{attention_forward.2} parent=5 // pred_check
      %p204 = pneg %p203
    $region18: #{attention_forward.2} parent=5 // pred_check_branch
      %206 = sbr.rel (%p204) target = $region20
    $region19: #{attention_forward.2} parent=5 // pred_region
      // Predicated region
      $region21: #{attention_forward.2} parent=19 // pred_check
        %p207 = pneg %p46
      $region22: #{attention_forward.2} parent=19 // pred_check_branch
        %209 = sbr.rel (%p207) target = $region24
      $region23: #{attention_forward.2} parent=19 // pred_region
        %s210 = smul.u32 32, %s20
        %p211 = scmp.lt.s32.totalorder %s19, 1
        %s212 = scalar_select %p211, %s19, 1
        %p213 = scmp.lt.s32.totalorder %s210, 63
        %s214 = scalar_select %p213, %s210, 63
        %s215 = smul.addr %s212, 64
        %s216 = sadd.s32 %s214, %s215
        %s217 = smul.addr %s216, 8
        %s218 = scalar_lea.vmem %s0, %s217
        %s219 = smul.u32 32, %s20
      $region24: #{attention_forward.2} parent=19 // pred_fallthru
        _
    $region20: #{attention_forward.2} parent=5 // pred_fallthru
      _
    %p220 = scmp.le.s32.totalorder 1, %s12
    %p221 = scmp.lt.s32.totalorder %s12, 5
    %p222 = pnand %p220, %p221
    %p223 = pneg %p222
    // Predicated region
    $region25: #{attention_forward.2} parent=5 // pred_check
      _
    $region26: #{attention_forward.2} parent=5 // pred_check_branch
      %225 = sbr.rel (%p222) target = $region28
    $region27: #{attention_forward.2} parent=5 // pred_region
      %s226 = ssub.s32 %s12, 1
      %s227 = smul.u32 32, %s22
      %p228 = scmp.lt.s32.totalorder %s21, 1
      %s229 = scalar_select %p228, %s21, 1
      %p230 = scmp.lt.s32.totalorder %s227, 63
      %s231 = scalar_select %p230, %s227, 63
      %s232 = smul.addr %s229, 64
      %s233 = sadd.s32 %s231, %s232
      %s234 = smul.addr %s233, 8
      %s235 = scalar_lea.vmem %s0, %s234
      %p236 = pneg %p52
      %p237 = pneg %p49
      %p238 = pneg %p73
      %p239 = pneg %p70
      %p240 = pneg %p101
      %p241 = pneg %p98
      %s242 = smul.u32 32, %s22
      %p243 = scmp.lt.s32.totalorder %s21, 1
      %s244 = scalar_select %p243, %s21, 1
      %p245 = scmp.lt.s32.totalorder %s242, 63
      %s246 = scalar_select %p245, %s242, 63
      %s247 = smul.addr %s244, 64
      %s248 = sadd.s32 %s246, %s247
      %s249 = smul.addr %s248, 4
      %s250 = scalar_lea.vmem %s2, %s249
      %p251 = pneg %p129
      %p252 = pneg %p126
      %s253 = smul.u32 32, %s22
      %p254 = scmp.lt.s32.totalorder %s21, 1
      %s255 = scalar_select %p254, %s21, 1
      %p256 = scmp.lt.s32.totalorder %s253, 63
      %s257 = scalar_select %p256, %s253, 63
      %s258 = smul.addr %s255, 64
      %s259 = sadd.s32 %s257, %s258
      %s260 = smul.addr %s259, 4
      %s261 = scalar_lea.vmem %s3, %s260
      %p262 = pneg %p157
      %p263 = pneg %p154
      %s264 = smul.u32 32, %s22
      %p265 = scmp.lt.s32.totalorder %s21, 1
      %s266 = scalar_select %p265, %s21, 1
      %p267 = scmp.lt.s32.totalorder %s264, 63
      %s268 = scalar_select %p267, %s264, 63
      %s269 = smul.addr %s266, 64
      %s270 = sadd.s32 %s268, %s269
      %s271 = smul.addr %s270, 4
      %s272 = scalar_lea.vmem %s4, %s271
      %p273 = pneg %p185
      %p274 = pneg %p182
      %s275 = smul.u32 32, %s22
      %p276 = scmp.lt.s32.totalorder %s21, 1
      %s277 = scalar_select %p276, %s21, 1
      %p278 = scmp.lt.s32.totalorder %s275, 63
      %s279 = scalar_select %p278, %s275, 63
      %s280 = smul.addr %s277, 64
      %s281 = sadd.s32 %s279, %s280
      %s282 = smul.addr %s281, 8
      %s283 = scalar_lea.vmem %s5, %s282
      %s284 = smul.u32 32, %s22
      %p285 = scmp.lt.s32.totalorder %s21, 1
      %s286 = scalar_select %p285, %s21, 1
      %p287 = scmp.lt.s32.totalorder %s284, 63
      %s288 = scalar_select %p287, %s284, 63
      %s289 = smul.addr %s286, 64
      %s290 = sadd.s32 %s288, %s289
      %s291 = smul.addr %s290, 8
      %s292 = scalar_lea.vmem %s0, %s291
      %s293 = smul.u32 32, %s22
      %s294 = smul.u32 32, %s22
      %p295 = scmp.lt.s32.totalorder %s21, 1
      %s296 = scalar_select %p295, %s21, 1
      %p297 = scmp.lt.s32.totalorder %s294, 63
      %s298 = scalar_select %p297, %s294, 63
      %s299 = smul.addr %s296, 64
      %s300 = sadd.s32 %s298, %s299
      %s301 = smul.addr %s300, 4
      %s302 = scalar_lea.vmem %s2, %s301
      %s303 = smul.u32 32, %s22
      %s304 = smul.u32 32, %s22
      %p305 = scmp.lt.s32.totalorder %s21, 1
      %s306 = scalar_select %p305, %s21, 1
      %p307 = scmp.lt.s32.totalorder %s304, 63
      %s308 = scalar_select %p307, %s304, 63
      %s309 = smul.addr %s306, 64
      %s310 = sadd.s32 %s308, %s309
      %s311 = smul.addr %s310, 4
      %s312 = scalar_lea.vmem %s3, %s311
      %s313 = smul.u32 32, %s22
      %s314 = smul.u32 32, %s22
      %p315 = scmp.lt.s32.totalorder %s21, 1
      %s316 = scalar_select %p315, %s21, 1
      %p317 = scmp.lt.s32.totalorder %s314, 63
      %s318 = scalar_select %p317, %s314, 63
      %s319 = smul.addr %s316, 64
      %s320 = sadd.s32 %s318, %s319
      %s321 = smul.addr %s320, 4
      %s322 = scalar_lea.vmem %s4, %s321
      %s323 = smul.u32 32, %s22
      %s324 = smul.u32 32, %s22
      %p325 = scmp.lt.s32.totalorder %s21, 1
      %s326 = scalar_select %p325, %s21, 1
      %p327 = scmp.lt.s32.totalorder %s324, 63
      %s328 = scalar_select %p327, %s324, 63
      %s329 = smul.addr %s326, 64
      %s330 = sadd.s32 %s328, %s329
      %s331 = smul.addr %s330, 8
      %s332 = scalar_lea.vmem %s5, %s331
      %s333 = smul.u32 32, %s22
      %v335 = vld [vmem:[%s292] sm:$0xff]
      %v336 = vld [vmem:[%s292 + $0x8] sm:$0xff]
      %v337 = vld [vmem:[%s292 + $0x10] sm:$0xff]
      %v338 = vld [vmem:[%s292 + $0x18] sm:$0xff]
      %v339 = vld [vmem:[%s292 + $0x20] sm:$0xff]
      %v340 = vld [vmem:[%s292 + $0x28] sm:$0xff]
      %v341 = vld [vmem:[%s292 + $0x30] sm:$0xff]
      %v342 = vld [vmem:[%s292 + $0x38] sm:$0xff]
      %v343 = vld [vmem:[%s292 + $0x40] sm:$0xff]
      %v344 = vld [vmem:[%s292 + $0x48] sm:$0xff]
      %v345 = vld [vmem:[%s292 + $0x50] sm:$0xff]
      %v346 = vld [vmem:[%s292 + $0x58] sm:$0xff]
      %v347 = vld [vmem:[%s292 + $0x60] sm:$0xff]
      %v348 = vld [vmem:[%s292 + $0x68] sm:$0xff]
      %v349 = vld [vmem:[%s292 + $0x70] sm:$0xff]
      %v350 = vld [vmem:[%s292 + $0x78] sm:$0xff]
      %v351 = vld [vmem:[%s292 + $0x80] sm:$0xff]
      %v352 = vld [vmem:[%s292 + $0x88] sm:$0xff]
      %v353 = vld [vmem:[%s292 + $0x90] sm:$0xff]
      %v354 = vld [vmem:[%s292 + $0x98] sm:$0xff]
      %v355 = vld [vmem:[%s292 + $0xa0] sm:$0xff]
      %v356 = vld [vmem:[%s292 + $0xa8] sm:$0xff]
      %v357 = vld [vmem:[%s292 + $0xb0] sm:$0xff]
      %v358 = vld [vmem:[%s292 + $0xb8] sm:$0xff]
      %v359 = vld [vmem:[%s292 + $0xc0] sm:$0xff]
      %v360 = vld [vmem:[%s292 + $0xc8] sm:$0xff]
      %v361 = vld [vmem:[%s292 + $0xd0] sm:$0xff]
      %v362 = vld [vmem:[%s292 + $0xd8] sm:$0xff]
      %v363 = vld [vmem:[%s292 + $0xe0] sm:$0xff]
      %v364 = vld [vmem:[%s292 + $0xe8] sm:$0xff]
      %v365 = vld [vmem:[%s292 + $0xf0] sm:$0xff]
      %v366 = vld [vmem:[%s292 + $0xf8] sm:$0xff]
      %v367 = vpack.c.bf16 %v336, %v335
      %v368 = vpack.c.bf16 %v338, %v337
      %v369 = vpack.c.bf16 %v340, %v339
      %v370 = vpack.c.bf16 %v342, %v341
      %v371 = vpack.c.bf16 %v344, %v343
      %v372 = vpack.c.bf16 %v346, %v345
      %v373 = vpack.c.bf16 %v348, %v347
      %v374 = vpack.c.bf16 %v350, %v349
      %v375 = vpack.c.bf16 %v352, %v351
      %v376 = vpack.c.bf16 %v354, %v353
      %v377 = vpack.c.bf16 %v356, %v355
      %v378 = vpack.c.bf16 %v358, %v357
      %v379 = vpack.c.bf16 %v360, %v359
      %v380 = vpack.c.bf16 %v362, %v361
      %v381 = vpack.c.bf16 %v364, %v363
      %v382 = vpack.c.bf16 %v366, %v365
      %v383 = vld [vmem:[%s1] sm:$0xff]
      %v384 = vld [vmem:[%s1 + $0x8] sm:$0xf]
      %v385 = vld [vmem:[%s1 + $0xc] sm:$0xff]
      %v386 = vld [vmem:[%s1 + $0x14] sm:$0xf]
      %v387 = vld [vmem:[%s1 + $0x18] sm:$0xff]
      %v388 = vld [vmem:[%s1 + $0x20] sm:$0xf]
      %v389 = vld [vmem:[%s1 + $0x24] sm:$0xff]
      %v390 = vld [vmem:[%s1 + $0x2c] sm:$0xf]
      %v391 = vld [vmem:[%s1 + $0x30] sm:$0xff]
      %v392 = vld [vmem:[%s1 + $0x38] sm:$0xf]
      %v393 = vld [vmem:[%s1 + $0x3c] sm:$0xff]
      %v394 = vld [vmem:[%s1 + $0x44] sm:$0xf]
      %v395 = vld [vmem:[%s1 + $0x48] sm:$0xff]
      %v396 = vld [vmem:[%s1 + $0x50] sm:$0xf]
      %v397 = vld [vmem:[%s1 + $0x54] sm:$0xff]
      %v398 = vld [vmem:[%s1 + $0x5c] sm:$0xf]
      %v399 = vld [vmem:[%s1 + $0x60] sm:$0xff]
      %v400 = vld [vmem:[%s1 + $0x68] sm:$0xf]
      %v401 = vld [vmem:[%s1 + $0x6c] sm:$0xff]
      %v402 = vld [vmem:[%s1 + $0x74] sm:$0xf]
      %v403 = vld [vmem:[%s1 + $0x78] sm:$0xff]
      %v404 = vld [vmem:[%s1 + $0x80] sm:$0xf]
      %v405 = vld [vmem:[%s1 + $0x84] sm:$0xff]
      %v406 = vld [vmem:[%s1 + $0x8c] sm:$0xf]
      %v407 = vld [vmem:[%s1 + $0x90] sm:$0xff]
      %v408 = vld [vmem:[%s1 + $0x98] sm:$0xf]
      %v409 = vld [vmem:[%s1 + $0x9c] sm:$0xff]
      %v410 = vld [vmem:[%s1 + $0xa4] sm:$0xf]
      %v411 = vld [vmem:[%s1 + $0xa8] sm:$0xff]
      %v412 = vld [vmem:[%s1 + $0xb0] sm:$0xf]
      %v413 = vld [vmem:[%s1 + $0xb4] sm:$0xff]
      %v414 = vld [vmem:[%s1 + $0xbc] sm:$0xf]
      %v447 = vunpack.c.l.b16 %v383
      %v448 = vunpack.c.h.b16 %v383
      %v449 = vunpack.c.l.b16 %v384
      %v450 = vunpack.c.l.b16 %v385
      %v451 = vunpack.c.h.b16 %v385
      %v452 = vunpack.c.l.b16 %v386
      %v453 = vunpack.c.l.b16 %v387
      %v454 = vunpack.c.h.b16 %v387
      %v455 = vunpack.c.l.b16 %v388
      %v456 = vunpack.c.l.b16 %v389
      %v457 = vunpack.c.h.b16 %v389
      %v458 = vunpack.c.l.b16 %v390
      %v459 = vunpack.c.l.b16 %v391
      %v460 = vunpack.c.h.b16 %v391
      %v461 = vunpack.c.l.b16 %v392
      %v462 = vunpack.c.l.b16 %v393
      %v463 = vunpack.c.h.b16 %v393
      %v464 = vunpack.c.l.b16 %v394
      %v465 = vunpack.c.l.b16 %v395
      %v466 = vunpack.c.h.b16 %v395
      %v467 = vunpack.c.l.b16 %v396
      %v468 = vunpack.c.l.b16 %v397
      %v469 = vunpack.c.h.b16 %v397
      %v470 = vunpack.c.l.b16 %v398
      %v471 = vunpack.c.l.b16 %v399
      %v472 = vunpack.c.h.b16 %v399
      %v473 = vunpack.c.l.b16 %v400
      %v474 = vunpack.c.l.b16 %v401
      %v475 = vunpack.c.h.b16 %v401
      %v476 = vunpack.c.l.b16 %v402
      %v477 = vunpack.c.l.b16 %v403
      %v478 = vunpack.c.h.b16 %v403
      %v479 = vunpack.c.l.b16 %v404
      %v480 = vunpack.c.l.b16 %v405
      %v481 = vunpack.c.h.b16 %v405
      %v482 = vunpack.c.l.b16 %v406
      %v483 = vunpack.c.l.b16 %v407
      %v484 = vunpack.c.h.b16 %v407
      %v485 = vunpack.c.l.b16 %v408
      %v486 = vunpack.c.l.b16 %v409
      %v487 = vunpack.c.h.b16 %v409
      %v488 = vunpack.c.l.b16 %v410
      %v489 = vunpack.c.l.b16 %v411
      %v490 = vunpack.c.h.b16 %v411
      %v491 = vunpack.c.l.b16 %v412
      %v492 = vunpack.c.l.b16 %v413
      %v493 = vunpack.c.h.b16 %v413
      %v494 = vunpack.c.l.b16 %v414
      %v495 = vpack.c.b16 %v450, %v447
      %v496 = vpack.c.b16 %v451, %v448
      %v497 = vpack.c.b16 %v452, %v449
      %v498 = vpack.c.b16 %v456, %v453
      %v499 = vpack.c.b16 %v457, %v454
      %v500 = vpack.c.b16 %v458, %v455
      %v501 = vpack.c.b16 %v462, %v459
      %v502 = vpack.c.b16 %v463, %v460
      %v503 = vpack.c.b16 %v464, %v461
      %v504 = vpack.c.b16 %v468, %v465
      %v505 = vpack.c.b16 %v469, %v466
      %v506 = vpack.c.b16 %v470, %v467
      %v507 = vpack.c.b16 %v474, %v471
      %v508 = vpack.c.b16 %v475, %v472
      %v509 = vpack.c.b16 %v476, %v473
      %v510 = vpack.c.b16 %v480, %v477
      %v511 = vpack.c.b16 %v481, %v478
      %v512 = vpack.c.b16 %v482, %v479
      %v513 = vpack.c.b16 %v486, %v483
      %v514 = vpack.c.b16 %v487, %v484
      %v515 = vpack.c.b16 %v488, %v485
      %v516 = vpack.c.b16 %v492, %v489
      %v517 = vpack.c.b16 %v493, %v490
      %v518 = vpack.c.b16 %v494, %v491
      %543 = vmatprep.subr.bf16.mxu0 %v496
      %544 = vmatpush1.bf16.msra.mxu0 %v495
      %545 = vmatprep.subr.bf16.mxu0 %v499
      %546 = vmatpush1.bf16.msra.mxu0 %v498
      %547 = vmatprep.subr.bf16.mxu0 %v502
      %548 = vmatpush1.bf16.msra.mxu0 %v501
      %549 = vmatprep.subr.bf16.mxu0 %v505
      %550 = vmatpush1.bf16.msra.mxu0 %v504
      %551 = vmatprep.subr.bf16.mxu0 %v508
      %552 = vmatpush1.bf16.msra.mxu0 %v507
      %553 = vmatprep.subr.bf16.mxu0 %v511
      %554 = vmatpush1.bf16.msra.mxu0 %v510
      %555 = vmatprep.subr.bf16.mxu0 %v514
      %556 = vmatpush1.bf16.msra.mxu0 %v513
      %557 = vmatprep.subr.bf16.mxu0 %v517
      %558 = vmatpush1.bf16.msra.mxu0 %v516
      %559 = vmatprep.subr.bf16.mxu0 0
      %560 = vmatpush1.bf16.msra.mxu0 0
      %561 = vmatprep.subr.bf16.mxu0 0
      %562 = vmatpush1.bf16.msra.mxu0 0
      %563 = vmatprep.subr.bf16.mxu0 0
      %564 = vmatpush1.bf16.msra.mxu0 0
      %565 = vmatprep.subr.bf16.mxu0 0
      %566 = vmatpush1.bf16.msra.mxu0 0
      %567 = vmatprep.subr.bf16.mxu0 0
      %568 = vmatpush1.bf16.msra.mxu0 0
      %569 = vmatprep.subr.bf16.mxu0 0
      %570 = vmatpush1.bf16.msra.mxu0 0
      %571 = vmatprep.subr.bf16.mxu0 0
      %572 = vmatpush1.bf16.msra.mxu0 0
      %573 = vmatprep.subr.bf16.mxu0 0
      %574 = vmatpush1.bf16.msra.mxu0 0
      %575 = vmatprep.mubr.bf16.mxu0 0
      %576 = vmatmul.mubr.bf16.gmra.mrb[0].mxu0 %v367
      %v577 = vpop.f32.mrb[0].mxu0
      %v578 = vadd.f32 0.0, %v577
      %v579 = vpop.f32.mrb[0].mxu0
      %v580 = vadd.f32 0.0, %v579
      %v581 = vpop.f32.mrb[0].mxu0
      %v582 = vadd.f32 0.0, %v581
      %v583 = vpop.f32.mrb[0].mxu0
      %v584 = vadd.f32 0.0, %v583
      %585 = vmatprep.mubr.bf16.mxu0 0
      %586 = vmatmul.mubr.bf16.gmra.mrb[0].mxu0 %v368
      %v587 = vpop.f32.mrb[0].mxu0
      %v588 = vadd.f32 0.0, %v587
      %v589 = vpop.f32.mrb[0].mxu0
      %v590 = vadd.f32 0.0, %v589
      %v591 = vpop.f32.mrb[0].mxu0
      %v592 = vadd.f32 0.0, %v591
      %v593 = vpop.f32.mrb[0].mxu0
      %v594 = vadd.f32 0.0, %v593
      %595 = vmatprep.mubr.bf16.mxu0 0
      %596 = vmatmul.mubr.bf16.gmra.mrb[0].mxu0 %v369
      %v597 = vpop.f32.mrb[0].mxu0
      %v598 = vadd.f32 0.0, %v597
      %v599 = vpop.f32.mrb[0].mxu0
      %v600 = vadd.f32 0.0, %v599
      %v601 = vpop.f32.mrb[0].mxu0
      %v602 = vadd.f32 0.0, %v601
      %v603 = vpop.f32.mrb[0].mxu0
      %v604 = vadd.f32 0.0, %v603
      %605 = vmatprep.mubr.bf16.mxu0 0
      %606 = vmatmul.mubr.bf16.gmra.mrb[0].mxu0 %v370
      %v607 = vpop.f32.mrb[0].mxu0
      %v608 = vadd.f32 0.0, %v607
      %v609 = vpop.f32.mrb[0].mxu0
      %v610 = vadd.f32 0.0, %v609
      %v611 = vpop.f32.mrb[0].mxu0
      %v612 = vadd.f32 0.0, %v611
      %v613 = vpop.f32.mrb[0].mxu0
      %v614 = vadd.f32 0.0, %v613
      %615 = vmatprep.mubr.bf16.mxu0 0
      %616 = vmatmul.mubr.bf16.gmra.mrb[0].mxu0 %v371
      %v617 = vpop.f32.mrb[0].mxu0
      %v618 = vadd.f32 0.0, %v617
      %v619 = vpop.f32.mrb[0].mxu0
      %v620 = vadd.f32 0.0, %v619
      %v621 = vpop.f32.mrb[0].mxu0
      %v622 = vadd.f32 0.0, %v621
      %v623 = vpop.f32.mrb[0].mxu0
      %v624 = vadd.f32 0.0, %v623
      %625 = vmatprep.mubr.bf16.mxu0 0
      %626 = vmatmul.mubr.bf16.gmra.mrb[0].mxu0 %v372
      %v627 = vpop.f32.mrb[0].mxu0
      %v628 = vadd.f32 0.0, %v627
      %v629 = vpop.f32.mrb[0].mxu0
      %v630 = vadd.f32 0.0, %v629
      %v631 = vpop.f32.mrb[0].mxu0
      %v632 = vadd.f32 0.0, %v631
      %v633 = vpop.f32.mrb[0].mxu0
      %v634 = vadd.f32 0.0, %v633
      %635 = vmatprep.mubr.bf16.mxu0 0
      %636 = vmatmul.mubr.bf16.gmra.mrb[0].mxu0 %v373
      %v637 = vpop.f32.mrb[0].mxu0
      %v638 = vadd.f32 0.0, %v637
      %v639 = vpop.f32.mrb[0].mxu0
      %v640 = vadd.f32 0.0, %v639
      %v641 = vpop.f32.mrb[0].mxu0
      %v642 = vadd.f32 0.0, %v641
      %v643 = vpop.f32.mrb[0].mxu0
      %v644 = vadd.f32 0.0, %v643
      %645 = vmatprep.mubr.bf16.mxu0 0
      %646 = vmatmul.mubr.bf16.gmra.mrb[0].mxu0 %v374
      %v647 = vpop.f32.mrb[0].mxu0
      %v648 = vadd.f32 0.0, %v647
      %v649 = vpop.f32.mrb[0].mxu0
      %v650 = vadd.f32 0.0, %v649
      %v651 = vpop.f32.mrb[0].mxu0
      %v652 = vadd.f32 0.0, %v651
      %v653 = vpop.f32.mrb[0].mxu0
      %v654 = vadd.f32 0.0, %v653
      %655 = vmatprep.mubr.bf16.mxu0 0
      %656 = vmatmul.mubr.bf16.gmra.mrb[0].mxu0 %v375
      %v657 = vpop.f32.mrb[0].mxu0
      %v658 = vadd.f32 0.0, %v657
      %v659 = vpop.f32.mrb[0].mxu0
      %v660 = vadd.f32 0.0, %v659
      %v661 = vpop.f32.mrb[0].mxu0
      %v662 = vadd.f32 0.0, %v661
      %v663 = vpop.f32.mrb[0].mxu0
      %v664 = vadd.f32 0.0, %v663
      %665 = vmatprep.mubr.bf16.mxu0 0
      %666 = vmatmul.mubr.bf16.gmra.mrb[0].mxu0 %v376
      %v667 = vpop.f32.mrb[0].mxu0
      %v668 = vadd.f32 0.0, %v667
      %v669 = vpop.f32.mrb[0].mxu0
      %v670 = vadd.f32 0.0, %v669
      %v671 = vpop.f32.mrb[0].mxu0
      %v672 = vadd.f32 0.0, %v671
      %v673 = vpop.f32.mrb[0].mxu0
      %v674 = vadd.f32 0.0, %v673
      %675 = vmatprep.mubr.bf16.mxu0 0
      %676 = vmatmul.mubr.bf16.gmra.mrb[0].mxu0 %v377
      %v677 = vpop.f32.mrb[0].mxu0
      %v678 = vadd.f32 0.0, %v677
      %v679 = vpop.f32.mrb[0].mxu0
      %v680 = vadd.f32 0.0, %v679
      %v681 = vpop.f32.mrb[0].mxu0
      %v682 = vadd.f32 0.0, %v681
      %v683 = vpop.f32.mrb[0].mxu0
      %v684 = vadd.f32 0.0, %v683
      %685 = vmatprep.mubr.bf16.mxu0 0
      %686 = vmatmul.mubr.bf16.gmra.mrb[0].mxu0 %v378
      %v687 = vpop.f32.mrb[0].mxu0
      %v688 = vadd.f32 0.0, %v687
      %v689 = vpop.f32.mrb[0].mxu0
      %v690 = vadd.f32 0.0, %v689
      %v691 = vpop.f32.mrb[0].mxu0
      %v692 = vadd.f32 0.0, %v691
      %v693 = vpop.f32.mrb[0].mxu0
      %v694 = vadd.f32 0.0, %v693
      %695 = vmatprep.mubr.bf16.mxu0 0
      %696 = vmatmul.mubr.bf16.gmra.mrb[0].mxu0 %v379
      %v697 = vpop.f32.mrb[0].mxu0
      %v698 = vadd.f32 0.0, %v697
      %v699 = vpop.f32.mrb[0].mxu0
      %v700 = vadd.f32 0.0, %v699
      %v701 = vpop.f32.mrb[0].mxu0
      %v702 = vadd.f32 0.0, %v701
      %v703 = vpop.f32.mrb[0].mxu0
      %v704 = vadd.f32 0.0, %v703
      %705 = vmatprep.mubr.bf16.mxu0 0
      %706 = vmatmul.mubr.bf16.gmra.mrb[0].mxu0 %v380
      %v707 = vpop.f32.mrb[0].mxu0
      %v708 = vadd.f32 0.0, %v707
      %v709 = vpop.f32.mrb[0].mxu0
      %v710 = vadd.f32 0.0, %v709
      %v711 = vpop.f32.mrb[0].mxu0
      %v712 = vadd.f32 0.0, %v711
      %v713 = vpop.f32.mrb[0].mxu0
      %v714 = vadd.f32 0.0, %v713
      %715 = vmatprep.mubr.bf16.mxu0 0
      %716 = vmatmul.mubr.bf16.gmra.mrb[0].mxu0 %v381
      %v717 = vpop.f32.mrb[0].mxu0
      %v718 = vadd.f32 0.0, %v717
      %v719 = vpop.f32.mrb[0].mxu0
      %v720 = vadd.f32 0.0, %v719
      %v721 = vpop.f32.mrb[0].mxu0
      %v722 = vadd.f32 0.0, %v721
      %v723 = vpop.f32.mrb[0].mxu0
      %v724 = vadd.f32 0.0, %v723
      %725 = vmatprep.mubr.bf16.mxu0 0
      %726 = vmatmul.mubr.bf16.gmra.mrb[0].mxu0 %v382
      %v727 = vpop.f32.mrb[0].mxu0
      %v728 = vadd.f32 0.0, %v727
      %v729 = vpop.f32.mrb[0].mxu0
      %v730 = vadd.f32 0.0, %v729
      %v731 = vpop.f32.mrb[0].mxu0
      %v732 = vadd.f32 0.0, %v731
      %v733 = vpop.f32.mrb[0].mxu0
      %v734 = vadd.f32 0.0, %v733
      %735 = vdwg.mxu0
      %736 = vmatprep.subr.bf16.mxu0 0
      %737 = vmatpush1.bf16.msra.mxu0 %v497
      %738 = vmatprep.subr.bf16.mxu0 0
      %739 = vmatpush1.bf16.msra.mxu0 %v500
      %740 = vmatprep.subr.bf16.mxu0 0
      %741 = vmatpush1.bf16.msra.mxu0 %v503
      %742 = vmatprep.subr.bf16.mxu0 0
      %743 = vmatpush1.bf16.msra.mxu0 %v506
      %744 = vmatprep.subr.bf16.mxu0 0
      %745 = vmatpush1.bf16.msra.mxu0 %v509
      %746 = vmatprep.subr.bf16.mxu0 0
      %747 = vmatpush1.bf16.msra.mxu0 %v512
      %748 = vmatprep.subr.bf16.mxu0 0
      %749 = vmatpush1.bf16.msra.mxu0 %v515
      %750 = vmatprep.subr.bf16.mxu0 0
      %751 = vmatpush1.bf16.msra.mxu0 %v518
      %752 = vmatprep.subr.bf16.mxu0 0
      %753 = vmatpush1.bf16.msra.mxu0 0
      %754 = vmatprep.subr.bf16.mxu0 0
      %755 = vmatpush1.bf16.msra.mxu0 0
      %756 = vmatprep.subr.bf16.mxu0 0
      %757 = vmatpush1.bf16.msra.mxu0 0
      %758 = vmatprep.subr.bf16.mxu0 0
      %759 = vmatpush1.bf16.msra.mxu0 0
      %760 = vmatprep.subr.bf16.mxu0 0
      %761 = vmatpush1.bf16.msra.mxu0 0
      %762 = vmatprep.subr.bf16.mxu0 0
      %763 = vmatpush1.bf16.msra.mxu0 0
      %764 = vmatprep.subr.bf16.mxu0 0
      %765 = vmatpush1.bf16.msra.mxu0 0
      %766 = vmatprep.subr.bf16.mxu0 0
      %767 = vmatpush1.bf16.msra.mxu0 0
      %768 = vmatprep.mubr.bf16.mxu0 0
      %769 = vmatmul.mubr.bf16.gmra.mrb[0].mxu0 %v367
      %v770 = vpop.f32.mrb[0].mxu0
      %v771 = vadd.f32 0.0, %v770
      %v772 = vpop.f32.mrb[0].mxu0
      %v773 = vpop.f32.mrb[0].mxu0
      %v774 = vadd.f32 0.0, %v773
      %v775 = vpop.f32.mrb[0].mxu0
      %776 = vmatprep.mubr.bf16.mxu0 0
      %777 = vmatmul.mubr.bf16.gmra.mrb[0].mxu0 %v368
      %v778 = vpop.f32.mrb[0].mxu0
      %v779 = vadd.f32 0.0, %v778
      %v780 = vpop.f32.mrb[0].mxu0
      %v781 = vpop.f32.mrb[0].mxu0
      %v782 = vadd.f32 0.0, %v781
      %v783 = vpop.f32.mrb[0].mxu0
      %784 = vmatprep.mubr.bf16.mxu0 0
      %785 = vmatmul.mubr.bf16.gmra.mrb[0].mxu0 %v369
      %v786 = vpop.f32.mrb[0].mxu0
      %v787 = vadd.f32 0.0, %v786
      %v788 = vpop.f32.mrb[0].mxu0
      %v789 = vpop.f32.mrb[0].mxu0
      %v790 = vadd.f32 0.0, %v789
      %v791 = vpop.f32.mrb[0].mxu0
      %792 = vmatprep.mubr.bf16.mxu0 0
      %793 = vmatmul.mubr.bf16.gmra.mrb[0].mxu0 %v370
      %v794 = vpop.f32.mrb[0].mxu0
      %v795 = vadd.f32 0.0, %v794
      %v796 = vpop.f32.mrb[0].mxu0
      %v797 = vpop.f32.mrb[0].mxu0
      %v798 = vadd.f32 0.0, %v797
      %v799 = vpop.f32.mrb[0].mxu0
      %800 = vmatprep.mubr.bf16.mxu0 0
      %801 = vmatmul.mubr.bf16.gmra.mrb[0].mxu0 %v371
      %v802 = vpop.f32.mrb[0].mxu0
      %v803 = vadd.f32 0.0, %v802
      %v804 = vpop.f32.mrb[0].mxu0
      %v805 = vpop.f32.mrb[0].mxu0
      %v806 = vadd.f32 0.0, %v805
      %v807 = vpop.f32.mrb[0].mxu0
      %808 = vmatprep.mubr.bf16.mxu0 0
      %809 = vmatmul.mubr.bf16.gmra.mrb[0].mxu0 %v372
      %v810 = vpop.f32.mrb[0].mxu0
      %v811 = vadd.f32 0.0, %v810
      %v812 = vpop.f32.mrb[0].mxu0
      %v813 = vpop.f32.mrb[0].mxu0
      %v814 = vadd.f32 0.0, %v813
      %v815 = vpop.f32.mrb[0].mxu0
      %816 = vmatprep.mubr.bf16.mxu0 0
      %817 = vmatmul.mubr.bf16.gmra.mrb[0].mxu0 %v373
      %v818 = vpop.f32.mrb[0].mxu0
      %v819 = vadd.f32 0.0, %v818
      %v820 = vpop.f32.mrb[0].mxu0
      %v821 = vpop.f32.mrb[0].mxu0
      %v822 = vadd.f32 0.0, %v821
      %v823 = vpop.f32.mrb[0].mxu0
      %824 = vmatprep.mubr.bf16.mxu0 0
      %825 = vmatmul.mubr.bf16.gmra.mrb[0].mxu0 %v374
      %v826 = vpop.f32.mrb[0].mxu0
      %v827 = vadd.f32 0.0, %v826
      %v828 = vpop.f32.mrb[0].mxu0
      %v829 = vpop.f32.mrb[0].mxu0
      %v830 = vadd.f32 0.0, %v829
      %v831 = vpop.f32.mrb[0].mxu0
      %832 = vmatprep.mubr.bf16.mxu0 0
      %833 = vmatmul.mubr.bf16.gmra.mrb[0].mxu0 %v375
      %v834 = vpop.f32.mrb[0].mxu0
      %v835 = vadd.f32 0.0, %v834
      %v836 = vpop.f32.mrb[0].mxu0
      %v837 = vpop.f32.mrb[0].mxu0
      %v838 = vadd.f32 0.0, %v837
      %v839 = vpop.f32.mrb[0].mxu0
      %840 = vmatprep.mubr.bf16.mxu0 0
      %841 = vmatmul.mubr.bf16.gmra.mrb[0].mxu0 %v376
      %v842 = vpop.f32.mrb[0].mxu0
      %v843 = vadd.f32 0.0, %v842
      %v844 = vpop.f32.mrb[0].mxu0
      %v845 = vpop.f32.mrb[0].mxu0
      %v846 = vadd.f32 0.0, %v845
      %v847 = vpop.f32.mrb[0].mxu0
      %848 = vmatprep.mubr.bf16.mxu0 0
      %849 = vmatmul.mubr.bf16.gmra.mrb[0].mxu0 %v377
      %v850 = vpop.f32.mrb[0].mxu0
      %v851 = vadd.f32 0.0, %v850
      %v852 = vpop.f32.mrb[0].mxu0
      %v853 = vpop.f32.mrb[0].mxu0
      %v854 = vadd.f32 0.0, %v853
      %v855 = vpop.f32.mrb[0].mxu0
      %856 = vmatprep.mubr.bf16.mxu0 0
      %857 = vmatmul.mubr.bf16.gmra.mrb[0].mxu0 %v378
      %v858 = vpop.f32.mrb[0].mxu0
      %v859 = vadd.f32 0.0, %v858
      %v860 = vpop.f32.mrb[0].mxu0
      %v861 = vpop.f32.mrb[0].mxu0
      %v862 = vadd.f32 0.0, %v861
      %v863 = vpop.f32.mrb[0].mxu0
      %864 = vmatprep.mubr.bf16.mxu0 0
      %865 = vmatmul.mubr.bf16.gmra.mrb[0].mxu0 %v379
      %v866 = vpop.f32.mrb[0].mxu0
      %v867 = vadd.f32 0.0, %v866
      %v868 = vpop.f32.mrb[0].mxu0
      %v869 = vpop.f32.mrb[0].mxu0
      %v870 = vadd.f32 0.0, %v869
      %v871 = vpop.f32.mrb[0].mxu0
      %872 = vmatprep.mubr.bf16.mxu0 0
      %873 = vmatmul.mubr.bf16.gmra.mrb[0].mxu0 %v380
      %v874 = vpop.f32.mrb[0].mxu0
      %v875 = vadd.f32 0.0, %v874
      %v876 = vpop.f32.mrb[0].mxu0
      %v877 = vpop.f32.mrb[0].mxu0
      %v878 = vadd.f32 0.0, %v877
      %v879 = vpop.f32.mrb[0].mxu0
      %880 = vmatprep.mubr.bf16.mxu0 0
      %881 = vmatmul.mubr.bf16.gmra.mrb[0].mxu0 %v381
      %v882 = vpop.f32.mrb[0].mxu0
      %v883 = vadd.f32 0.0, %v882
      %v884 = vpop.f32.mrb[0].mxu0
      %v885 = vpop.f32.mrb[0].mxu0
      %v886 = vadd.f32 0.0, %v885
      %v887 = vpop.f32.mrb[0].mxu0
      %888 = vmatprep.mubr.bf16.mxu0 0
      %889 = vmatmul.mubr.bf16.gmra.mrb[0].mxu0 %v382
      %v890 = vpop.f32.mrb[0].mxu0
      %v891 = vadd.f32 0.0, %v890
      %v892 = vpop.f32.mrb[0].mxu0
      %v893 = vpop.f32.mrb[0].mxu0
      %v894 = vadd.f32 0.0, %v893
      %v895 = vpop.f32.mrb[0].mxu0
      %896 = vdwg.mxu0
      %v897 = vmul.f32 %v578, 0.10206208
      %v898 = vmul.f32 %v582, 0.10206208
      %v899 = vmul.f32 %v588, 0.10206208
      %v900 = vmul.f32 %v592, 0.10206208
      %v901 = vmul.f32 %v598, 0.10206208
      %v902 = vmul.f32 %v602, 0.10206208
      %v903 = vmul.f32 %v608, 0.10206208
      %v904 = vmul.f32 %v612, 0.10206208
      %v905 = vmul.f32 %v618, 0.10206208
      %v906 = vmul.f32 %v622, 0.10206208
      %v907 = vmul.f32 %v628, 0.10206208
      %v908 = vmul.f32 %v632, 0.10206208
      %v909 = vmul.f32 %v638, 0.10206208
      %v910 = vmul.f32 %v642, 0.10206208
      %v911 = vmul.f32 %v648, 0.10206208
      %v912 = vmul.f32 %v652, 0.10206208
      %v913 = vmul.f32 %v658, 0.10206208
      %v914 = vmul.f32 %v662, 0.10206208
      %v915 = vmul.f32 %v668, 0.10206208
      %v916 = vmul.f32 %v672, 0.10206208
      %v917 = vmul.f32 %v678, 0.10206208
      %v918 = vmul.f32 %v682, 0.10206208
      %v919 = vmul.f32 %v688, 0.10206208
      %v920 = vmul.f32 %v692, 0.10206208
      %v921 = vmul.f32 %v698, 0.10206208
      %v922 = vmul.f32 %v702, 0.10206208
      %v923 = vmul.f32 %v708, 0.10206208
      %v924 = vmul.f32 %v712, 0.10206208
      %v925 = vmul.f32 %v718, 0.10206208
      %v926 = vmul.f32 %v722, 0.10206208
      %v927 = vmul.f32 %v728, 0.10206208
      %v928 = vmul.f32 %v732, 0.10206208
      %v929 = vpack.c.bf16 %v898, %v897
      %v930 = vpack.c.bf16 %v900, %v899
      %v931 = vpack.c.bf16 %v902, %v901
      %v932 = vpack.c.bf16 %v904, %v903
      %v933 = vpack.c.bf16 %v906, %v905
      %v934 = vpack.c.bf16 %v908, %v907
      %v935 = vpack.c.bf16 %v910, %v909
      %v936 = vpack.c.bf16 %v912, %v911
      %v937 = vpack.c.bf16 %v914, %v913
      %v938 = vpack.c.bf16 %v916, %v915
      %v939 = vpack.c.bf16 %v918, %v917
      %v940 = vpack.c.bf16 %v920, %v919
      %v941 = vpack.c.bf16 %v922, %v921
      %v942 = vpack.c.bf16 %v924, %v923
      %v943 = vpack.c.bf16 %v926, %v925
      %v944 = vpack.c.bf16 %v928, %v927
      %v961 = vunpack.c.l.b16 %v929
      %v962 = vunpack.c.h.b16 %v929
      %v963 = vunpack.c.l.b16 %v930
      %v964 = vunpack.c.h.b16 %v930
      %v965 = vunpack.c.l.b16 %v931
      %v966 = vunpack.c.h.b16 %v931
      %v967 = vunpack.c.l.b16 %v932
      %v968 = vunpack.c.h.b16 %v932
      %v969 = vunpack.c.l.b16 %v933
      %v970 = vunpack.c.h.b16 %v933
      %v971 = vunpack.c.l.b16 %v934
      %v972 = vunpack.c.h.b16 %v934
      %v973 = vunpack.c.l.b16 %v935
      %v974 = vunpack.c.h.b16 %v935
      %v975 = vunpack.c.l.b16 %v936
      %v976 = vunpack.c.h.b16 %v936
      %v977 = vunpack.c.l.b16 %v937
      %v978 = vunpack.c.h.b16 %v937
      %v979 = vunpack.c.l.b16 %v938
      %v980 = vunpack.c.h.b16 %v938
      %v981 = vunpack.c.l.b16 %v939
      %v982 = vunpack.c.h.b16 %v939
      %v983 = vunpack.c.l.b16 %v940
      %v984 = vunpack.c.h.b16 %v940
      %v985 = vunpack.c.l.b16 %v941
      %v986 = vunpack.c.h.b16 %v941
      %v987 = vunpack.c.l.b16 %v942
      %v988 = vunpack.c.h.b16 %v942
      %v989 = vunpack.c.l.b16 %v943
      %v990 = vunpack.c.h.b16 %v943
      %v991 = vunpack.c.l.b16 %v944
      %v992 = vunpack.c.h.b16 %v944
      %v993 = vpack.c.b16 %v961, %v961
      %v994 = vpack.c.b16 %v962, %v962
      %v995 = vpack.c.b16 %v963, %v963
      %v996 = vpack.c.b16 %v964, %v964
      %v997 = vpack.c.b16 %v965, %v965
      %v998 = vpack.c.b16 %v966, %v966
      %v999 = vpack.c.b16 %v967, %v967
      %v1000 = vpack.c.b16 %v968, %v968
      %v1001 = vpack.c.b16 %v969, %v969
      %v1002 = vpack.c.b16 %v970, %v970
      %v1003 = vpack.c.b16 %v971, %v971
      %v1004 = vpack.c.b16 %v972, %v972
      %v1005 = vpack.c.b16 %v973, %v973
      %v1006 = vpack.c.b16 %v974, %v974
      %v1007 = vpack.c.b16 %v975, %v975
      %v1008 = vpack.c.b16 %v976, %v976
      %v1009 = vpack.c.b16 %v977, %v977
      %v1010 = vpack.c.b16 %v978, %v978
      %v1011 = vpack.c.b16 %v979, %v979
      %v1012 = vpack.c.b16 %v980, %v980
      %v1013 = vpack.c.b16 %v981, %v981
      %v1014 = vpack.c.b16 %v982, %v982
      %v1015 = vpack.c.b16 %v983, %v983
      %v1016 = vpack.c.b16 %v984, %v984
      %v1017 = vpack.c.b16 %v985, %v985
      %v1018 = vpack.c.b16 %v986, %v986
      %v1019 = vpack.c.b16 %v987, %v987
      %v1020 = vpack.c.b16 %v988, %v988
      %v1021 = vpack.c.b16 %v989, %v989
      %v1022 = vpack.c.b16 %v990, %v990
      %v1023 = vpack.c.b16 %v991, %v991
      %v1024 = vpack.c.b16 %v992, %v992
      %1057 = vst [vmem:[%s302] sm:$0xf] %v993
      %1058 = vst [vmem:[%s302 + $0x4] sm:$0xf] %v994
      %1059 = vst [vmem:[%s302 + $0x8] sm:$0xf] %v995
      %1060 = vst [vmem:[%s302 + $0xc] sm:$0xf] %v996
      %1061 = vst [vmem:[%s302 + $0x10] sm:$0xf] %v997
      %1062 = vst [vmem:[%s302 + $0x14] sm:$0xf] %v998
      %1063 = vst [vmem:[%s302 + $0x18] sm:$0xf] %v999
      %1064 = vst [vmem:[%s302 + $0x1c] sm:$0xf] %v1000
      %1065 = vst [vmem:[%s302 + $0x20] sm:$0xf] %v1001
      %1066 = vst [vmem:[%s302 + $0x24] sm:$0xf] %v1002
      %1067 = vst [vmem:[%s302 + $0x28] sm:$0xf] %v1003
      %1068 = vst [vmem:[%s302 + $0x2c] sm:$0xf] %v1004
      %1069 = vst [vmem:[%s302 + $0x30] sm:$0xf] %v1005
      %1070 = vst [vmem:[%s302 + $0x34] sm:$0xf] %v1006
      %1071 = vst [vmem:[%s302 + $0x38] sm:$0xf] %v1007
      %1072 = vst [vmem:[%s302 + $0x3c] sm:$0xf] %v1008
      %1073 = vst [vmem:[%s302 + $0x40] sm:$0xf] %v1009
      %1074 = vst [vmem:[%s302 + $0x44] sm:$0xf] %v1010
      %1075 = vst [vmem:[%s302 + $0x48] sm:$0xf] %v1011
      %1076 = vst [vmem:[%s302 + $0x4c] sm:$0xf] %v1012
      %1077 = vst [vmem:[%s302 + $0x50] sm:$0xf] %v1013
      %1078 = vst [vmem:[%s302 + $0x54] sm:$0xf] %v1014
      %1079 = vst [vmem:[%s302 + $0x58] sm:$0xf] %v1015
      %1080 = vst [vmem:[%s302 + $0x5c] sm:$0xf] %v1016
      %1081 = vst [vmem:[%s302 + $0x60] sm:$0xf] %v1017
      %1082 = vst [vmem:[%s302 + $0x64] sm:$0xf] %v1018
      %1083 = vst [vmem:[%s302 + $0x68] sm:$0xf] %v1019
      %1084 = vst [vmem:[%s302 + $0x6c] sm:$0xf] %v1020
      %1085 = vst [vmem:[%s302 + $0x70] sm:$0xf] %v1021
      %1086 = vst [vmem:[%s302 + $0x74] sm:$0xf] %v1022
      %1087 = vst [vmem:[%s302 + $0x78] sm:$0xf] %v1023
      %1088 = vst [vmem:[%s302 + $0x7c] sm:$0xf] %v1024
      %v1089 = vpack.c.bf16 %v584, %v580
      %v1090 = vpack.c.bf16 %v594, %v590
      %v1091 = vpack.c.bf16 %v604, %v600
      %v1092 = vpack.c.bf16 %v614, %v610
      %v1093 = vpack.c.bf16 %v624, %v620
      %v1094 = vpack.c.bf16 %v634, %v630
      %v1095 = vpack.c.bf16 %v644, %v640
      %v1096 = vpack.c.bf16 %v654, %v650
      %v1097 = vpack.c.bf16 %v664, %v660
      %v1098 = vpack.c.bf16 %v674, %v670
      %v1099 = vpack.c.bf16 %v684, %v680
      %v1100 = vpack.c.bf16 %v694, %v690
      %v1101 = vpack.c.bf16 %v704, %v700
      %v1102 = vpack.c.bf16 %v714, %v710
      %v1103 = vpack.c.bf16 %v724, %v720
      %v1104 = vpack.c.bf16 %v734, %v730
      %v1121 = vunpack.c.l.b16 %v1089
      %v1122 = vunpack.c.h.b16 %v1089
      %v1123 = vunpack.c.l.b16 %v1090
      %v1124 = vunpack.c.h.b16 %v1090
      %v1125 = vunpack.c.l.b16 %v1091
      %v1126 = vunpack.c.h.b16 %v1091
      %v1127 = vunpack.c.l.b16 %v1092
      %v1128 = vunpack.c.h.b16 %v1092
      %v1129 = vunpack.c.l.b16 %v1093
      %v1130 = vunpack.c.h.b16 %v1093
      %v1131 = vunpack.c.l.b16 %v1094
      %v1132 = vunpack.c.h.b16 %v1094
      %v1133 = vunpack.c.l.b16 %v1095
      %v1134 = vunpack.c.h.b16 %v1095
      %v1135 = vunpack.c.l.b16 %v1096
      %v1136 = vunpack.c.h.b16 %v1096
      %v1137 = vunpack.c.l.b16 %v1097
      %v1138 = vunpack.c.h.b16 %v1097
      %v1139 = vunpack.c.l.b16 %v1098
      %v1140 = vunpack.c.h.b16 %v1098
      %v1141 = vunpack.c.l.b16 %v1099
      %v1142 = vunpack.c.h.b16 %v1099
      %v1143 = vunpack.c.l.b16 %v1100
      %v1144 = vunpack.c.h.b16 %v1100
      %v1145 = vunpack.c.l.b16 %v1101
      %v1146 = vunpack.c.h.b16 %v1101
      %v1147 = vunpack.c.l.b16 %v1102
      %v1148 = vunpack.c.h.b16 %v1102
      %v1149 = vunpack.c.l.b16 %v1103
      %v1150 = vunpack.c.h.b16 %v1103
      %v1151 = vunpack.c.l.b16 %v1104
      %v1152 = vunpack.c.h.b16 %v1104
      %v1153 = vpack.c.b16 %v1121, %v1121
      %v1154 = vpack.c.b16 %v1122, %v1122
      %v1155 = vpack.c.b16 %v1123, %v1123
      %v1156 = vpack.c.b16 %v1124, %v1124
      %v1157 = vpack.c.b16 %v1125, %v1125
      %v1158 = vpack.c.b16 %v1126, %v1126
      %v1159 = vpack.c.b16 %v1127, %v1127
      %v1160 = vpack.c.b16 %v1128, %v1128
      %v1161 = vpack.c.b16 %v1129, %v1129
      %v1162 = vpack.c.b16 %v1130, %v1130
      %v1163 = vpack.c.b16 %v1131, %v1131
      %v1164 = vpack.c.b16 %v1132, %v1132
      %v1165 = vpack.c.b16 %v1133, %v1133
      %v1166 = vpack.c.b16 %v1134, %v1134
      %v1167 = vpack.c.b16 %v1135, %v1135
      %v1168 = vpack.c.b16 %v1136, %v1136
      %v1169 = vpack.c.b16 %v1137, %v1137
      %v1170 = vpack.c.b16 %v1138, %v1138
      %v1171 = vpack.c.b16 %v1139, %v1139
      %v1172 = vpack.c.b16 %v1140, %v1140
      %v1173 = vpack.c.b16 %v1141, %v1141
      %v1174 = vpack.c.b16 %v1142, %v1142
      %v1175 = vpack.c.b16 %v1143, %v1143
      %v1176 = vpack.c.b16 %v1144, %v1144
      %v1177 = vpack.c.b16 %v1145, %v1145
      %v1178 = vpack.c.b16 %v1146, %v1146
      %v1179 = vpack.c.b16 %v1147, %v1147
      %v1180 = vpack.c.b16 %v1148, %v1148
      %v1181 = vpack.c.b16 %v1149, %v1149
      %v1182 = vpack.c.b16 %v1150, %v1150
      %v1183 = vpack.c.b16 %v1151, %v1151
      %v1184 = vpack.c.b16 %v1152, %v1152
      %1217 = vst [vmem:[%s312] sm:$0xf] %v1153
      %1218 = vst [vmem:[%s312 + $0x4] sm:$0xf] %v1154
      %1219 = vst [vmem:[%s312 + $0x8] sm:$0xf] %v1155
      %1220 = vst [vmem:[%s312 + $0xc] sm:$0xf] %v1156
      %1221 = vst [vmem:[%s312 + $0x10] sm:$0xf] %v1157
      %1222 = vst [vmem:[%s312 + $0x14] sm:$0xf] %v1158
      %1223 = vst [vmem:[%s312 + $0x18] sm:$0xf] %v1159
      %1224 = vst [vmem:[%s312 + $0x1c] sm:$0xf] %v1160
      %1225 = vst [vmem:[%s312 + $0x20] sm:$0xf] %v1161
      %1226 = vst [vmem:[%s312 + $0x24] sm:$0xf] %v1162
      %1227 = vst [vmem:[%s312 + $0x28] sm:$0xf] %v1163
      %1228 = vst [vmem:[%s312 + $0x2c] sm:$0xf] %v1164
      %1229 = vst [vmem:[%s312 + $0x30] sm:$0xf] %v1165
      %1230 = vst [vmem:[%s312 + $0x34] sm:$0xf] %v1166
      %1231 = vst [vmem:[%s312 + $0x38] sm:$0xf] %v1167
      %1232 = vst [vmem:[%s312 + $0x3c] sm:$0xf] %v1168
      %1233 = vst [vmem:[%s312 + $0x40] sm:$0xf] %v1169
      %1234 = vst [vmem:[%s312 + $0x44] sm:$0xf] %v1170
      %1235 = vst [vmem:[%s312 + $0x48] sm:$0xf] %v1171
      %1236 = vst [vmem:[%s312 + $0x4c] sm:$0xf] %v1172
      %1237 = vst [vmem:[%s312 + $0x50] sm:$0xf] %v1173
      %1238 = vst [vmem:[%s312 + $0x54] sm:$0xf] %v1174
      %1239 = vst [vmem:[%s312 + $0x58] sm:$0xf] %v1175
      %1240 = vst [vmem:[%s312 + $0x5c] sm:$0xf] %v1176
      %1241 = vst [vmem:[%s312 + $0x60] sm:$0xf] %v1177
      %1242 = vst [vmem:[%s312 + $0x64] sm:$0xf] %v1178
      %1243 = vst [vmem:[%s312 + $0x68] sm:$0xf] %v1179
      %1244 = vst [vmem:[%s312 + $0x6c] sm:$0xf] %v1180
      %1245 = vst [vmem:[%s312 + $0x70] sm:$0xf] %v1181
      %1246 = vst [vmem:[%s312 + $0x74] sm:$0xf] %v1182
      %1247 = vst [vmem:[%s312 + $0x78] sm:$0xf] %v1183
      %1248 = vst [vmem:[%s312 + $0x7c] sm:$0xf] %v1184
      %v1249 = vpack.c.bf16 %v774, %v771
      %v1250 = vpack.c.bf16 %v782, %v779
      %v1251 = vpack.c.bf16 %v790, %v787
      %v1252 = vpack.c.bf16 %v798, %v795
      %v1253 = vpack.c.bf16 %v806, %v803
      %v1254 = vpack.c.bf16 %v814, %v811
      %v1255 = vpack.c.bf16 %v822, %v819
      %v1256 = vpack.c.bf16 %v830, %v827
      %v1257 = vpack.c.bf16 %v838, %v835
      %v1258 = vpack.c.bf16 %v846, %v843
      %v1259 = vpack.c.bf16 %v854, %v851
      %v1260 = vpack.c.bf16 %v862, %v859
      %v1261 = vpack.c.bf16 %v870, %v867
      %v1262 = vpack.c.bf16 %v878, %v875
      %v1263 = vpack.c.bf16 %v886, %v883
      %v1264 = vpack.c.bf16 %v894, %v891
      %v1281 = vunpack.c.l.b16 %v1249
      %v1282 = vunpack.c.h.b16 %v1249
      %v1283 = vunpack.c.l.b16 %v1250
      %v1284 = vunpack.c.h.b16 %v1250
      %v1285 = vunpack.c.l.b16 %v1251
      %v1286 = vunpack.c.h.b16 %v1251
      %v1287 = vunpack.c.l.b16 %v1252
      %v1288 = vunpack.c.h.b16 %v1252
      %v1289 = vunpack.c.l.b16 %v1253
      %v1290 = vunpack.c.h.b16 %v1253
      %v1291 = vunpack.c.l.b16 %v1254
      %v1292 = vunpack.c.h.b16 %v1254
      %v1293 = vunpack.c.l.b16 %v1255
      %v1294 = vunpack.c.h.b16 %v1255
      %v1295 = vunpack.c.l.b16 %v1256
      %v1296 = vunpack.c.h.b16 %v1256
      %v1297 = vunpack.c.l.b16 %v1257
      %v1298 = vunpack.c.h.b16 %v1257
      %v1299 = vunpack.c.l.b16 %v1258
      %v1300 = vunpack.c.h.b16 %v1258
      %v1301 = vunpack.c.l.b16 %v1259
      %v1302 = vunpack.c.h.b16 %v1259
      %v1303 = vunpack.c.l.b16 %v1260
      %v1304 = vunpack.c.h.b16 %v1260
      %v1305 = vunpack.c.l.b16 %v1261
      %v1306 = vunpack.c.h.b16 %v1261
      %v1307 = vunpack.c.l.b16 %v1262
      %v1308 = vunpack.c.h.b16 %v1262
      %v1309 = vunpack.c.l.b16 %v1263
      %v1310 = vunpack.c.h.b16 %v1263
      %v1311 = vunpack.c.l.b16 %v1264
      %v1312 = vunpack.c.h.b16 %v1264
      %v1313 = vpack.c.b16 %v1281, %v1281
      %v1314 = vpack.c.b16 %v1282, %v1282
      %v1315 = vpack.c.b16 %v1283, %v1283
      %v1316 = vpack.c.b16 %v1284, %v1284
      %v1317 = vpack.c.b16 %v1285, %v1285
      %v1318 = vpack.c.b16 %v1286, %v1286
      %v1319 = vpack.c.b16 %v1287, %v1287
      %v1320 = vpack.c.b16 %v1288, %v1288
      %v1321 = vpack.c.b16 %v1289, %v1289
      %v1322 = vpack.c.b16 %v1290, %v1290
      %v1323 = vpack.c.b16 %v1291, %v1291
      %v1324 = vpack.c.b16 %v1292, %v1292
      %v1325 = vpack.c.b16 %v1293, %v1293
      %v1326 = vpack.c.b16 %v1294, %v1294
      %v1327 = vpack.c.b16 %v1295, %v1295
      %v1328 = vpack.c.b16 %v1296, %v1296
      %v1329 = vpack.c.b16 %v1297, %v1297
      %v1330 = vpack.c.b16 %v1298, %v1298
      %v1331 = vpack.c.b16 %v1299, %v1299
      %v1332 = vpack.c.b16 %v1300, %v1300
      %v1333 = vpack.c.b16 %v1301, %v1301
      %v1334 = vpack.c.b16 %v1302, %v1302
      %v1335 = vpack.c.b16 %v1303, %v1303
      %v1336 = vpack.c.b16 %v1304, %v1304
      %v1337 = vpack.c.b16 %v1305, %v1305
      %v1338 = vpack.c.b16 %v1306, %v1306
      %v1339 = vpack.c.b16 %v1307, %v1307
      %v1340 = vpack.c.b16 %v1308, %v1308
      %v1341 = vpack.c.b16 %v1309, %v1309
      %v1342 = vpack.c.b16 %v1310, %v1310
      %v1343 = vpack.c.b16 %v1311, %v1311
      %v1344 = vpack.c.b16 %v1312, %v1312
      %1377 = vst [vmem:[%s322] sm:$0xf] %v1313
      %1378 = vst [vmem:[%s322 + $0x4] sm:$0xf] %v1314
      %1379 = vst [vmem:[%s322 + $0x8] sm:$0xf] %v1315
      %1380 = vst [vmem:[%s322 + $0xc] sm:$0xf] %v1316
      %1381 = vst [vmem:[%s322 + $0x10] sm:$0xf] %v1317
      %1382 = vst [vmem:[%s322 + $0x14] sm:$0xf] %v1318
      %1383 = vst [vmem:[%s322 + $0x18] sm:$0xf] %v1319
      %1384 = vst [vmem:[%s322 + $0x1c] sm:$0xf] %v1320
      %1385 = vst [vmem:[%s322 + $0x20] sm:$0xf] %v1321
      %1386 = vst [vmem:[%s322 + $0x24] sm:$0xf] %v1322
      %1387 = vst [vmem:[%s322 + $0x28] sm:$0xf] %v1323
      %1388 = vst [vmem:[%s322 + $0x2c] sm:$0xf] %v1324
      %1389 = vst [vmem:[%s322 + $0x30] sm:$0xf] %v1325
      %1390 = vst [vmem:[%s322 + $0x34] sm:$0xf] %v1326
      %1391 = vst [vmem:[%s322 + $0x38] sm:$0xf] %v1327
      %1392 = vst [vmem:[%s322 + $0x3c] sm:$0xf] %v1328
      %1393 = vst [vmem:[%s322 + $0x40] sm:$0xf] %v1329
      %1394 = vst [vmem:[%s322 + $0x44] sm:$0xf] %v1330
      %1395 = vst [vmem:[%s322 + $0x48] sm:$0xf] %v1331
      %1396 = vst [vmem:[%s322 + $0x4c] sm:$0xf] %v1332
      %1397 = vst [vmem:[%s322 + $0x50] sm:$0xf] %v1333
      %1398 = vst [vmem:[%s322 + $0x54] sm:$0xf] %v1334
      %1399 = vst [vmem:[%s322 + $0x58] sm:$0xf] %v1335
      %1400 = vst [vmem:[%s322 + $0x5c] sm:$0xf] %v1336
      %1401 = vst [vmem:[%s322 + $0x60] sm:$0xf] %v1337
      %1402 = vst [vmem:[%s322 + $0x64] sm:$0xf] %v1338
      %1403 = vst [vmem:[%s322 + $0x68] sm:$0xf] %v1339
      %1404 = vst [vmem:[%s322 + $0x6c] sm:$0xf] %v1340
      %1405 = vst [vmem:[%s322 + $0x70] sm:$0xf] %v1341
      %1406 = vst [vmem:[%s322 + $0x74] sm:$0xf] %v1342
      %1407 = vst [vmem:[%s322 + $0x78] sm:$0xf] %v1343
      %1408 = vst [vmem:[%s322 + $0x7c] sm:$0xf] %v1344
      %1409 = vst [vmem:[%s332] sm:$0xff] %v771
      %1410 = vst [vmem:[%s332 + $0x8] sm:$0xff] %v774
      %1411 = vst [vmem:[%s332 + $0x10] sm:$0xff] %v779
      %1412 = vst [vmem:[%s332 + $0x18] sm:$0xff] %v782
      %1413 = vst [vmem:[%s332 + $0x20] sm:$0xff] %v787
      %1414 = vst [vmem:[%s332 + $0x28] sm:$0xff] %v790
      %1415 = vst [vmem:[%s332 + $0x30] sm:$0xff] %v795
      %1416 = vst [vmem:[%s332 + $0x38] sm:$0xff] %v798
      %1417 = vst [vmem:[%s332 + $0x40] sm:$0xff] %v803
      %1418 = vst [vmem:[%s332 + $0x48] sm:$0xff] %v806
      %1419 = vst [vmem:[%s332 + $0x50] sm:$0xff] %v811
      %1420 = vst [vmem:[%s332 + $0x58] sm:$0xff] %v814
      %1421 = vst [vmem:[%s332 + $0x60] sm:$0xff] %v819
      %1422 = vst [vmem:[%s332 + $0x68] sm:$0xff] %v822
      %1423 = vst [vmem:[%s332 + $0x70] sm:$0xff] %v827
      %1424 = vst [vmem:[%s332 + $0x78] sm:$0xff] %v830
      %1425 = vst [vmem:[%s332 + $0x80] sm:$0xff] %v835
      %1426 = vst [vmem:[%s332 + $0x88] sm:$0xff] %v838
      %1427 = vst [vmem:[%s332 + $0x90] sm:$0xff] %v843
      %1428 = vst [vmem:[%s332 + $0x98] sm:$0xff] %v846
      %1429 = vst [vmem:[%s332 + $0xa0] sm:$0xff] %v851
      %1430 = vst [vmem:[%s332 + $0xa8] sm:$0xff] %v854
      %1431 = vst [vmem:[%s332 + $0xb0] sm:$0xff] %v859
      %1432 = vst [vmem:[%s332 + $0xb8] sm:$0xff] %v862
      %1433 = vst [vmem:[%s332 + $0xc0] sm:$0xff] %v867
      %1434 = vst [vmem:[%s332 + $0xc8] sm:$0xff] %v870
      %1435 = vst [vmem:[%s332 + $0xd0] sm:$0xff] %v875
      %1436 = vst [vmem:[%s332 + $0xd8] sm:$0xff] %v878
      %1437 = vst [vmem:[%s332 + $0xe0] sm:$0xff] %v883
      %1438 = vst [vmem:[%s332 + $0xe8] sm:$0xff] %v886
      %1439 = vst [vmem:[%s332 + $0xf0] sm:$0xff] %v891
      %1440 = vst [vmem:[%s332 + $0xf8] sm:$0xff] %v894
      %s1441 = smul.u32 32, %s22
      %p1442 = scmp.lt.s32.totalorder %s21, 1
      %s1443 = scalar_select %p1442, %s21, 1
      %p1444 = scmp.lt.s32.totalorder %s1441, 63
      %s1445 = scalar_select %p1444, %s1441, 63
      %s1446 = smul.addr %s1443, 64
      %s1447 = sadd.s32 %s1445, %s1446
      %s1448 = smul.addr %s1447, 4
      %s1449 = scalar_lea.vmem %s2, %s1448
      %s1450 = smul.u32 32, %s22
      %p1451 = scmp.lt.s32.totalorder %s21, 1
      %s1452 = scalar_select %p1451, %s21, 1
      %p1453 = scmp.lt.s32.totalorder %s1450, 63
      %s1454 = scalar_select %p1453, %s1450, 63
      %s1455 = smul.addr %s1452, 64
      %s1456 = sadd.s32 %s1454, %s1455
      %s1457 = smul.addr %s1456, 4
      %s1458 = scalar_lea.vmem %s3, %s1457
      %s1459 = smul.u32 32, %s22
      %p1460 = scmp.lt.s32.totalorder %s21, 1
      %s1461 = scalar_select %p1460, %s21, 1
      %p1462 = scmp.lt.s32.totalorder %s1459, 63
      %s1463 = scalar_select %p1462, %s1459, 63
      %s1464 = smul.addr %s1461, 64
      %s1465 = sadd.s32 %s1463, %s1464
      %s1466 = smul.addr %s1465, 4
      %s1467 = scalar_lea.vmem %s4, %s1466
      %s1468 = smul.u32 32, %s22
      %p1469 = scmp.lt.s32.totalorder %s21, 1
      %s1470 = scalar_select %p1469, %s21, 1
      %p1471 = scmp.lt.s32.totalorder %s1468, 63
      %s1472 = scalar_select %p1471, %s1468, 63
      %s1473 = smul.addr %s1470, 64
      %s1474 = sadd.s32 %s1472, %s1473
      %s1475 = smul.addr %s1474, 8
      %s1476 = scalar_lea.vmem %s5, %s1475
      // Predicated region
      $region29: #{attention_forward.2} parent=27 // pred_check
        %p1477 = pneg %p98
      $region30: #{attention_forward.2} parent=27 // pred_check_branch
        %1479 = sbr.rel (%p1477) target = $region32
      $region31: #{attention_forward.2} parent=27 // pred_region
        %s1480 = smul.u32 32, %s22
      $region32: #{attention_forward.2} parent=27 // pred_fallthru
        _
      // Predicated region
      $region33: #{attention_forward.2} parent=27 // pred_check
        %p1481 = pneg %p126
      $region34: #{attention_forward.2} parent=27 // pred_check_branch
        %1483 = sbr.rel (%p1481) target = $region36
      $region35: #{attention_forward.2} parent=27 // pred_region
        %s1484 = smul.u32 32, %s22
      $region36: #{attention_forward.2} parent=27 // pred_fallthru
        _
      // Predicated region
      $region37: #{attention_forward.2} parent=27 // pred_check
        %p1485 = pneg %p154
      $region38: #{attention_forward.2} parent=27 // pred_check_branch
        %1487 = sbr.rel (%p1485) target = $region40
      $region39: #{attention_forward.2} parent=27 // pred_region
        %s1488 = smul.u32 32, %s22
      $region40: #{attention_forward.2} parent=27 // pred_fallthru
        _
      // Predicated region
      $region41: #{attention_forward.2} parent=27 // pred_check
        %p1489 = pneg %p182
      $region42: #{attention_forward.2} parent=27 // pred_check_branch
        %1491 = sbr.rel (%p1489) target = $region44
      $region43: #{attention_forward.2} parent=27 // pred_region
        %s1492 = smul.u32 32, %s22
      $region44: #{attention_forward.2} parent=27 // pred_fallthru
        _
    $region28: #{attention_forward.2} parent=5 // pred_fallthru
      _
    %p1493 = scmp.le.s32.totalorder 2, %s12
    // Predicated region
    $region45: #{attention_forward.2} parent=5 // pred_check
      %p1494 = pneg %p1493
    $region46: #{attention_forward.2} parent=5 // pred_check_branch
      %1496 = sbr.rel (%p1494) target = $region48
    $region47: #{attention_forward.2} parent=5 // pred_region
      %s1497 = ssub.s32 %s12, 2
      // Predicated region
      $region49: #{attention_forward.2} parent=47 // pred_check
        %p1498 = pneg %p104
      $region50: #{attention_forward.2} parent=47 // pred_check_branch
        %1500 = sbr.rel (%p1498) target = $region52
      $region51: #{attention_forward.2} parent=47 // pred_region
        %s1501 = smul.u32 32, %s24
        %p1502 = scmp.lt.s32.totalorder %s23, 1
        %s1503 = scalar_select %p1502, %s23, 1
        %p1504 = scmp.lt.s32.totalorder %s1501, 63
        %s1505 = scalar_select %p1504, %s1501, 63
        %s1506 = smul.addr %s1503, 64
        %s1507 = sadd.s32 %s1505, %s1506
        %s1508 = smul.addr %s1507, 4
        %s1509 = scalar_lea.vmem %s2, %s1508
      $region52: #{attention_forward.2} parent=47 // pred_fallthru
        _
      // Predicated region
      $region53: #{attention_forward.2} parent=47 // pred_check
        %p1510 = pneg %p132
      $region54: #{attention_forward.2} parent=47 // pred_check_branch
        %1512 = sbr.rel (%p1510) target = $region56
      $region55: #{attention_forward.2} parent=47 // pred_region
        %s1513 = smul.u32 32, %s24
        %p1514 = scmp.lt.s32.totalorder %s23, 1
        %s1515 = scalar_select %p1514, %s23, 1
        %p1516 = scmp.lt.s32.totalorder %s1513, 63
        %s1517 = scalar_select %p1516, %s1513, 63
        %s1518 = smul.addr %s1515, 64
        %s1519 = sadd.s32 %s1517, %s1518
        %s1520 = smul.addr %s1519, 4
        %s1521 = scalar_lea.vmem %s3, %s1520
      $region56: #{attention_forward.2} parent=47 // pred_fallthru
        _
      // Predicated region
      $region57: #{attention_forward.2} parent=47 // pred_check
        %p1522 = pneg %p160
      $region58: #{attention_forward.2} parent=47 // pred_check_branch
        %1524 = sbr.rel (%p1522) target = $region60
      $region59: #{attention_forward.2} parent=47 // pred_region
        %s1525 = smul.u32 32, %s24
        %p1526 = scmp.lt.s32.totalorder %s23, 1
        %s1527 = scalar_select %p1526, %s23, 1
        %p1528 = scmp.lt.s32.totalorder %s1525, 63
        %s1529 = scalar_select %p1528, %s1525, 63
        %s1530 = smul.addr %s1527, 64
        %s1531 = sadd.s32 %s1529, %s1530
        %s1532 = smul.addr %s1531, 4
        %s1533 = scalar_lea.vmem %s4, %s1532
      $region60: #{attention_forward.2} parent=47 // pred_fallthru
        _
      // Predicated region
      $region61: #{attention_forward.2} parent=47 // pred_check
        %p1534 = pneg %p188
      $region62: #{attention_forward.2} parent=47 // pred_check_branch
        %1536 = sbr.rel (%p1534) target = $region64
      $region63: #{attention_forward.2} parent=47 // pred_region
        %s1537 = smul.u32 32, %s24
        %p1538 = scmp.lt.s32.totalorder %s23, 1
        %s1539 = scalar_select %p1538, %s23, 1
        %p1540 = scmp.lt.s32.totalorder %s1537, 63
        %s1541 = scalar_select %p1540, %s1537, 63
        %s1542 = smul.addr %s1539, 64
        %s1543 = sadd.s32 %s1541, %s1542
        %s1544 = smul.addr %s1543, 8
        %s1545 = scalar_lea.vmem %s5, %s1544
      $region64: #{attention_forward.2} parent=47 // pred_fallthru
        _
    $region48: #{attention_forward.2} parent=5 // pred_fallthru
      _
  $region6: #{attention_forward.2} parent=0 // loop_footer
    %s16 = sadd.s32 1, %s12
  $region7: #{attention_forward.2} parent=0 // loop_footer_branch
    %11 = sbr.rel target = $region3
  $region8: #{attention_forward.2} parent=0 // loop_exit
    _

// kernel: attention_forward.3
$region0: #{attention_forward.3}
  #allocation0 [shape = 'u32[]', space=smem, size = 0x4, offset = 0x4, fixed_abs, tag = 'smem constant byte address 0x4 - core index']
  #allocation1 [shape = 'u32[144,128]{1,0:T(1,128)}', space=vmem, size = 0x12000, scoped, tag = 'internal scratch']
  #allocation2 [shape = 'f32[256,1]{1,0:T(8,128)}', space=vmem, size = 0x20000, scoped, tag = 'scratch operand']
  #allocation3 [shape = 'f32[256,1]{1,0:T(8,128)}', space=vmem, size = 0x20000, scoped, tag = 'scratch operand']
  #allocation4 [shape = 'f32[256,128]{1,0:T(8,128)}', space=vmem, size = 0x20000, scoped, tag = 'scratch operand']
  %s0 = inlined_call_operand.vmem [shape: bf16[2,512,128], index: 0, kind: input, shape index: {}]
  %s1 = inlined_call_operand.vmem [shape: bf16[2,512,128], index: 1, kind: input, shape index: {}]
  %s2 = inlined_call_operand.vmem [shape: bf16[2,512,128], index: 2, kind: input, shape index: {}]
  %s3 = inlined_call_operand.vmem [shape: f32[1,512], index: 3, kind: input, shape index: {}]
  %s4 = inlined_call_operand.vmem [shape: f32[2,512,128], index: 4, kind: input, shape index: {}]
  %s5 = inlined_call_operand.vmem [shape: bf16[128,128], index: 5, kind: input, shape index: {}]
  %s6 = inlined_call_operand.vmem [shape: f32[1,128], index: 6, kind: input, shape index: {}]
  %s7 = inlined_call_operand.vmem [shape: f32[2,512,128], index: 7, kind: output, shape index: {}]
  %s8 = sld [smem:[#allocation0]]
  $region69: #{attention_forward.3} parent=0
    _
  %s10 = ssub.s32 1, %s8
  %s11 = scalar_select 0, %s10, %s8
  loop: start=0, step=1, limit=10
  $region2: #{attention_forward.3} parent=0 // loop_pre_header
    _
  $region3: #{attention_forward.3} parent=0 // loop_header
    %s13 = sphi 0, %s17
    %p14 = scmp.ge.s32.totalorder %s13, 10
    %s20 = sphi 0, %s39
    %s21 = sphi 0, %s35
    %s22 = sphi 0, %s31
    %s23 = sphi 0, %s20
    %s24 = sphi 0, %s21
    %s25 = sphi 0, %s22
    %s26 = sphi 0, %s23
    %s27 = sphi 0, %s24
    %s28 = sphi 0, %s25
    %s44 = sphi 0, %s46
    %s47 = sphi 0, %s44
    %s48 = sphi 0, %s47
    %s64 = sphi 0, %s48
    %s72 = sphi 0, %s74
    %s75 = sphi 0, %s72
    %s76 = sphi 0, %s75
    %s92 = sphi 0, %s76
    %s100 = sphi 0, %s102
    %s103 = sphi 0, %s100
    %s104 = sphi 0, %s103
    %s120 = sphi 0, %s104
    %s126 = sphi 0, %s128
    %s129 = sphi 0, %s126
    %s130 = sphi 0, %s129
    %s146 = sphi 0, %s130
    %s154 = sphi 0, %s156
    %s157 = sphi 0, %s154
    %s158 = sphi 0, %s157
    %s174 = sphi 0, %s158
    %s178 = sphi 0, %s178
    %s180 = sphi 0, %s178
    %s181 = sphi 0, %s180
    %s195 = sphi 0, %s181
    %s199 = sphi 0, %s199
    %s201 = sphi 0, %s199
    %s202 = sphi 0, %s201
    %s216 = sphi 0, %s202
    %s224 = sphi 0, %s226
    %s227 = sphi 0, %s224
    %s228 = sphi 0, %s227
    %s244 = sphi 0, %s228
  $region4: #{attention_forward.3} parent=0 // loop_header_branch
    %16 = sbr.rel (%p14) target = $region8
  $region5: #{attention_forward.3} parent=0 // loop_body
    %s18 = ssub.s32 %s13, 1
    %s19 = ssub.s32 %s13, 2
    %s29 = sadd.s32 1, %s22
    %p30 = scmp.ge.s32.totalorder %s29, 2
    %s31 = scalar_select %p30, 0, %s29
    %s32 = sadd.s32 1, %s21
    %s33 = scalar_select %p30, %s32, %s21
    %p34 = scmp.ge.s32.totalorder %s33, 2
    %s35 = scalar_select %p34, 0, %s33
    %s36 = sadd.s32 1, %s20
    %s37 = scalar_select %p34, %s36, %s20
    %p38 = scmp.ge.s32.totalorder %s37, 2
    %s39 = scalar_select %p38, 0, %s37
    %s40 = ssub.s32 %s20, %s39
    %s41 = ssub.s32 %s21, %s35
    %s42 = sor.u32 %s40, %s41
    %p43 = scmp.eq.s32.totalorder %s42, 0
    %s45 = sadd.s32 %s44, 1
    %s46 = scalar_select %p43, %s44, %s45
    %p49 = pneg %p43
    %p50 = scmp.eq.s32.totalorder %s13, 7
    %p51 = por %p49, %p50
    %p52 = scmp.ne.s32.totalorder %s44, %s47
    %p53 = scmp.eq.s32.totalorder %s13, 0
    %p54 = por %p52, %p53
    %p55 = scmp.ne.s32.totalorder %s44, %s47
    %p56 = scmp.eq.s32.totalorder %s18, 7
    %p57 = por %p55, %p56
    %p58 = scmp.ne.s32.totalorder %s47, %s48
    %p59 = scmp.eq.s32.totalorder %s18, 0
    %p60 = por %p58, %p59
    %p61 = scmp.ne.s32.totalorder %s47, %s48
    %p62 = scmp.eq.s32.totalorder %s19, 7
    %p63 = por %p61, %p62
    %p65 = scmp.ne.s32.totalorder %s48, %s64
    %p66 = scmp.eq.s32.totalorder %s19, 0
    %p67 = por %p65, %p66
    %s68 = ssub.s32 %s20, %s39
    %s69 = ssub.s32 %s22, %s31
    %s70 = sor.u32 %s68, %s69
    %p71 = scmp.eq.s32.totalorder %s70, 0
    %s73 = sadd.s32 %s72, 1
    %s74 = scalar_select %p71, %s72, %s73
    %p77 = pneg %p71
    %p78 = scmp.eq.s32.totalorder %s13, 7
    %p79 = por %p77, %p78
    %p80 = scmp.ne.s32.totalorder %s72, %s75
    %p81 = scmp.eq.s32.totalorder %s13, 0
    %p82 = por %p80, %p81
    %p83 = scmp.ne.s32.totalorder %s72, %s75
    %p84 = scmp.eq.s32.totalorder %s18, 7
    %p85 = por %p83, %p84
    %p86 = scmp.ne.s32.totalorder %s75, %s76
    %p87 = scmp.eq.s32.totalorder %s18, 0
    %p88 = por %p86, %p87
    %p89 = scmp.ne.s32.totalorder %s75, %s76
    %p90 = scmp.eq.s32.totalorder %s19, 7
    %p91 = por %p89, %p90
    %p93 = scmp.ne.s32.totalorder %s76, %s92
    %p94 = scmp.eq.s32.totalorder %s19, 0
    %p95 = por %p93, %p94
    %s96 = ssub.s32 %s20, %s39
    %s97 = ssub.s32 %s22, %s31
    %s98 = sor.u32 %s96, %s97
    %p99 = scmp.eq.s32.totalorder %s98, 0
    %s101 = sadd.s32 %s100, 1
    %s102 = scalar_select %p99, %s100, %s101
    %p105 = pneg %p99
    %p106 = scmp.eq.s32.totalorder %s13, 7
    %p107 = por %p105, %p106
    %p108 = scmp.ne.s32.totalorder %s100, %s103
    %p109 = scmp.eq.s32.totalorder %s13, 0
    %p110 = por %p108, %p109
    %p111 = scmp.ne.s32.totalorder %s100, %s103
    %p112 = scmp.eq.s32.totalorder %s18, 7
    %p113 = por %p111, %p112
    %p114 = scmp.ne.s32.totalorder %s103, %s104
    %p115 = scmp.eq.s32.totalorder %s18, 0
    %p116 = por %p114, %p115
    %p117 = scmp.ne.s32.totalorder %s103, %s104
    %p118 = scmp.eq.s32.totalorder %s19, 7
    %p119 = por %p117, %p118
    %p121 = scmp.ne.s32.totalorder %s104, %s120
    %p122 = scmp.eq.s32.totalorder %s19, 0
    %p123 = por %p121, %p122
    %s124 = ssub.s32 %s22, %s31
    %p125 = scmp.eq.s32.totalorder %s124, 0
    %s127 = sadd.s32 %s126, 1
    %s128 = scalar_select %p125, %s126, %s127
    %p131 = pneg %p125
    %p132 = scmp.eq.s32.totalorder %s13, 7
    %p133 = por %p131, %p132
    %p134 = scmp.ne.s32.totalorder %s126, %s129
    %p135 = scmp.eq.s32.totalorder %s13, 0
    %p136 = por %p134, %p135
    %p137 = scmp.ne.s32.totalorder %s126, %s129
    %p138 = scmp.eq.s32.totalorder %s18, 7
    %p139 = por %p137, %p138
    %p140 = scmp.ne.s32.totalorder %s129, %s130
    %p141 = scmp.eq.s32.totalorder %s18, 0
    %p142 = por %p140, %p141
    %p143 = scmp.ne.s32.totalorder %s129, %s130
    %p144 = scmp.eq.s32.totalorder %s19, 7
    %p145 = por %p143, %p144
    %p147 = scmp.ne.s32.totalorder %s130, %s146
    %p148 = scmp.eq.s32.totalorder %s19, 0
    %p149 = por %p147, %p148
    %s150 = ssub.s32 %s20, %s39
    %s151 = ssub.s32 %s21, %s35
    %s152 = sor.u32 %s150, %s151
    %p153 = scmp.eq.s32.totalorder %s152, 0
    %s155 = sadd.s32 %s154, 1
    %s156 = scalar_select %p153, %s154, %s155
    %p159 = pneg %p153
    %p160 = scmp.eq.s32.totalorder %s13, 7
    %p161 = por %p159, %p160
    %p162 = scmp.ne.s32.totalorder %s154, %s157
    %p163 = scmp.eq.s32.totalorder %s13, 0
    %p164 = por %p162, %p163
    %p165 = scmp.ne.s32.totalorder %s154, %s157
    %p166 = scmp.eq.s32.totalorder %s18, 7
    %p167 = por %p165, %p166
    %p168 = scmp.ne.s32.totalorder %s157, %s158
    %p169 = scmp.eq.s32.totalorder %s18, 0
    %p170 = por %p168, %p169
    %p171 = scmp.ne.s32.totalorder %s157, %s158
    %p172 = scmp.eq.s32.totalorder %s19, 7
    %p173 = por %p171, %p172
    %p175 = scmp.ne.s32.totalorder %s158, %s174
    %p176 = scmp.eq.s32.totalorder %s19, 0
    %p177 = por %p175, %p176
    %s179 = sadd.s32 %s178, 1
    %p182 = scmp.eq.s32.totalorder %s13, 7
    %p183 = scmp.ne.s32.totalorder %s178, %s180
    %p184 = scmp.eq.s32.totalorder %s13, 0
    %p185 = por %p183, %p184
    %p186 = scmp.ne.s32.totalorder %s178, %s180
    %p187 = scmp.eq.s32.totalorder %s18, 7
    %p188 = por %p186, %p187
    %p189 = scmp.ne.s32.totalorder %s180, %s181
    %p190 = scmp.eq.s32.totalorder %s18, 0
    %p191 = por %p189, %p190
    %p192 = scmp.ne.s32.totalorder %s180, %s181
    %p193 = scmp.eq.s32.totalorder %s19, 7
    %p194 = por %p192, %p193
    %p196 = scmp.ne.s32.totalorder %s181, %s195
    %p197 = scmp.eq.s32.totalorder %s19, 0
    %p198 = por %p196, %p197
    %s200 = sadd.s32 %s199, 1
    %p203 = scmp.eq.s32.totalorder %s13, 7
    %p204 = scmp.ne.s32.totalorder %s199, %s201
    %p205 = scmp.eq.s32.totalorder %s13, 0
    %p206 = por %p204, %p205
    %p207 = scmp.ne.s32.totalorder %s199, %s201
    %p208 = scmp.eq.s32.totalorder %s18, 7
    %p209 = por %p207, %p208
    %p210 = scmp.ne.s32.totalorder %s201, %s202
    %p211 = scmp.eq.s32.totalorder %s18, 0
    %p212 = por %p210, %p211
    %p213 = scmp.ne.s32.totalorder %s201, %s202
    %p214 = scmp.eq.s32.totalorder %s19, 7
    %p215 = por %p213, %p214
    %p217 = scmp.ne.s32.totalorder %s202, %s216
    %p218 = scmp.eq.s32.totalorder %s19, 0
    %p219 = por %p217, %p218
    %s220 = ssub.s32 %s20, %s39
    %s221 = ssub.s32 %s21, %s35
    %s222 = sor.u32 %s220, %s221
    %p223 = scmp.eq.s32.totalorder %s222, 0
    %s225 = sadd.s32 %s224, 1
    %s226 = scalar_select %p223, %s224, %s225
    %p229 = pneg %p223
    %p230 = scmp.eq.s32.totalorder %s13, 7
    %p231 = por %p229, %p230
    %p232 = scmp.ne.s32.totalorder %s224, %s227
    %p233 = scmp.eq.s32.totalorder %s13, 0
    %p234 = por %p232, %p233
    %p235 = scmp.ne.s32.totalorder %s224, %s227
    %p236 = scmp.eq.s32.totalorder %s18, 7
    %p237 = por %p235, %p236
    %p238 = scmp.ne.s32.totalorder %s227, %s228
    %p239 = scmp.eq.s32.totalorder %s18, 0
    %p240 = por %p238, %p239
    %p241 = scmp.ne.s32.totalorder %s227, %s228
    %p242 = scmp.eq.s32.totalorder %s19, 7
    %p243 = por %p241, %p242
    %p245 = scmp.ne.s32.totalorder %s228, %s244
    %p246 = scmp.eq.s32.totalorder %s19, 0
    %p247 = por %p245, %p246
    %p248 = scmp.le.s32.totalorder 1, %s13
    %p249 = scmp.lt.s32.totalorder %s13, 9
    %p250 = pnand %p248, %p249
    %p251 = pneg %p250
    // Predicated region
    $region9: #{attention_forward.3} parent=5 // pred_check
      _
    $region10: #{attention_forward.3} parent=5 // pred_check_branch
      %253 = sbr.rel (%p250) target = $region12
    $region11: #{attention_forward.3} parent=5 // pred_region
      %s254 = ssub.s32 %s13, 1
      // Predicated region
      $region13: #{attention_forward.3} parent=11 // pred_check
        %p255 = pneg %p191
      $region14: #{attention_forward.3} parent=11 // pred_check_branch
        %257 = sbr.rel (%p255) target = $region16
      $region15: #{attention_forward.3} parent=11 // pred_region
        _
      $region16: #{attention_forward.3} parent=11 // pred_fallthru
        _
      // Predicated region
      $region17: #{attention_forward.3} parent=11 // pred_check
        %p258 = pneg %p212
      $region18: #{attention_forward.3} parent=11 // pred_check_branch
        %260 = sbr.rel (%p258) target = $region20
      $region19: #{attention_forward.3} parent=11 // pred_region
        _
      $region20: #{attention_forward.3} parent=11 // pred_fallthru
        _
    $region12: #{attention_forward.3} parent=5 // pred_fallthru
      _
    %p261 = scmp.lt.s32.totalorder %s13, 8
    // Predicated region
    $region21: #{attention_forward.3} parent=5 // pred_check
      %p262 = pneg %p261
    $region22: #{attention_forward.3} parent=5 // pred_check_branch
      %264 = sbr.rel (%p262) target = $region24
    $region23: #{attention_forward.3} parent=5 // pred_region
      // Predicated region
      $region25: #{attention_forward.3} parent=23 // pred_check
        %p265 = pneg %p54
      $region26: #{attention_forward.3} parent=23 // pred_check_branch
        %267 = sbr.rel (%p265) target = $region28
      $region27: #{attention_forward.3} parent=23 // pred_region
        %s268 = smul.u32 32, %s21
        %p269 = scmp.lt.s32.totalorder %s20, 1
        %s270 = scalar_select %p269, %s20, 1
        %p271 = scmp.lt.s32.totalorder %s268, 63
        %s272 = scalar_select %p271, %s268, 63
        %s273 = smul.addr %s270, 64
        %s274 = sadd.s32 %s272, %s273
        %s275 = smul.addr %s274, 4
        %s276 = scalar_lea.vmem %s0, %s275
        %s277 = smul.u32 32, %s21
      $region28: #{attention_forward.3} parent=23 // pred_fallthru
        _
      // Predicated region
      $region29: #{attention_forward.3} parent=23 // pred_check
        %p278 = pneg %p82
      $region30: #{attention_forward.3} parent=23 // pred_check_branch
        %280 = sbr.rel (%p278) target = $region32
      $region31: #{attention_forward.3} parent=23 // pred_region
        %s281 = smul.u32 32, %s22
        %p282 = scmp.lt.s32.totalorder %s20, 1
        %s283 = scalar_select %p282, %s20, 1
        %p284 = scmp.lt.s32.totalorder %s281, 63
        %s285 = scalar_select %p284, %s281, 63
        %s286 = smul.addr %s283, 64
        %s287 = sadd.s32 %s285, %s286
        %s288 = smul.addr %s287, 4
        %s289 = scalar_lea.vmem %s1, %s288
        %s290 = smul.u32 32, %s22
      $region32: #{attention_forward.3} parent=23 // pred_fallthru
        _
      // Predicated region
      $region33: #{attention_forward.3} parent=23 // pred_check
        %p291 = pneg %p110
      $region34: #{attention_forward.3} parent=23 // pred_check_branch
        %293 = sbr.rel (%p291) target = $region36
      $region35: #{attention_forward.3} parent=23 // pred_region
        %s294 = smul.u32 32, %s22
        %p295 = scmp.lt.s32.totalorder %s20, 1
        %s296 = scalar_select %p295, %s20, 1
        %p297 = scmp.lt.s32.totalorder %s294, 63
        %s298 = scalar_select %p297, %s294, 63
        %s299 = smul.addr %s296, 64
        %s300 = sadd.s32 %s298, %s299
        %s301 = smul.addr %s300, 4
        %s302 = scalar_lea.vmem %s2, %s301
        %s303 = smul.u32 32, %s22
      $region36: #{attention_forward.3} parent=23 // pred_fallthru
        _
      // Predicated region
      $region37: #{attention_forward.3} parent=23 // pred_check
        %p304 = pneg %p136
      $region38: #{attention_forward.3} parent=23 // pred_check_branch
        %306 = sbr.rel (%p304) target = $region40
      $region39: #{attention_forward.3} parent=23 // pred_region
        %s307 = smul.u32 2, %s22
        %p308 = scmp.lt.s32.totalorder %s307, 3
        %s309 = scalar_select %p308, %s307, 3
        %s310 = scalar_lea.vmem %s3, %s309
        %s311 = smul.u32 2, %s22
      $region40: #{attention_forward.3} parent=23 // pred_fallthru
        _
      // Predicated region
      $region41: #{attention_forward.3} parent=23 // pred_check
        %p312 = pneg %p164
      $region42: #{attention_forward.3} parent=23 // pred_check_branch
        %314 = sbr.rel (%p312) target = $region44
      $region43: #{attention_forward.3} parent=23 // pred_region
        %s315 = smul.u32 32, %s21
        %p316 = scmp.lt.s32.totalorder %s20, 1
        %s317 = scalar_select %p316, %s20, 1
        %p318 = scmp.lt.s32.totalorder %s315, 63
        %s319 = scalar_select %p318, %s315, 63
        %s320 = smul.addr %s317, 64
        %s321 = sadd.s32 %s319, %s320
        %s322 = smul.addr %s321, 8
        %s323 = scalar_lea.vmem %s4, %s322
        %s324 = smul.u32 32, %s21
      $region44: #{attention_forward.3} parent=23 // pred_fallthru
        _
    $region24: #{attention_forward.3} parent=5 // pred_fallthru
      _
    %p325 = scmp.le.s32.totalorder 1, %s13
    %p326 = scmp.lt.s32.totalorder %s13, 9
    %p327 = pnand %p325, %p326
    %p328 = pneg %p327
    // Predicated region
    $region45: #{attention_forward.3} parent=5 // pred_check
      _
    $region46: #{attention_forward.3} parent=5 // pred_check_branch
      %330 = sbr.rel (%p327) target = $region48
    $region47: #{attention_forward.3} parent=5 // pred_region
      %s331 = ssub.s32 %s13, 1
      %s332 = smul.u32 32, %s24
      %p333 = scmp.lt.s32.totalorder %s23, 1
      %s334 = scalar_select %p333, %s23, 1
      %p335 = scmp.lt.s32.totalorder %s332, 63
      %s336 = scalar_select %p335, %s332, 63
      %s337 = smul.addr %s334, 64
      %s338 = sadd.s32 %s336, %s337
      %s339 = smul.addr %s338, 4
      %s340 = scalar_lea.vmem %s0, %s339
      %p341 = pneg %p60
      %p342 = pneg %p57
      %s343 = smul.u32 32, %s25
      %p344 = scmp.lt.s32.totalorder %s23, 1
      %s345 = scalar_select %p344, %s23, 1
      %p346 = scmp.lt.s32.totalorder %s343, 63
      %s347 = scalar_select %p346, %s343, 63
      %s348 = smul.addr %s345, 64
      %s349 = sadd.s32 %s347, %s348
      %s350 = smul.addr %s349, 4
      %s351 = scalar_lea.vmem %s1, %s350
      %p352 = pneg %p88
      %p353 = pneg %p85
      %s354 = smul.u32 32, %s25
      %p355 = scmp.lt.s32.totalorder %s23, 1
      %s356 = scalar_select %p355, %s23, 1
      %p357 = scmp.lt.s32.totalorder %s354, 63
      %s358 = scalar_select %p357, %s354, 63
      %s359 = smul.addr %s356, 64
      %s360 = sadd.s32 %s358, %s359
      %s361 = smul.addr %s360, 4
      %s362 = scalar_lea.vmem %s2, %s361
      %p363 = pneg %p116
      %p364 = pneg %p113
      %s365 = smul.u32 2, %s25
      %p366 = scmp.lt.s32.totalorder %s365, 3
      %s367 = scalar_select %p366, %s365, 3
      %s368 = scalar_lea.vmem %s3, %s367
      %p369 = pneg %p142
      %p370 = pneg %p139
      %s371 = smul.u32 32, %s24
      %p372 = scmp.lt.s32.totalorder %s23, 1
      %s373 = scalar_select %p372, %s23, 1
      %p374 = scmp.lt.s32.totalorder %s371, 63
      %s375 = scalar_select %p374, %s371, 63
      %s376 = smul.addr %s373, 64
      %s377 = sadd.s32 %s375, %s376
      %s378 = smul.addr %s377, 8
      %s379 = scalar_lea.vmem %s4, %s378
      %p380 = pneg %p170
      %p381 = pneg %p167
      %p382 = pneg %p191
      %p383 = pneg %p188
      %p384 = pneg %p212
      %p385 = pneg %p209
      %p386 = pneg %p240
      %p387 = pneg %p237
      %s388 = smul.u32 32, %s24
      %p389 = scmp.lt.s32.totalorder %s23, 1
      %s390 = scalar_select %p389, %s23, 1
      %p391 = scmp.lt.s32.totalorder %s388, 63
      %s392 = scalar_select %p391, %s388, 63
      %s393 = smul.addr %s390, 64
      %s394 = sadd.s32 %s392, %s393
      %s395 = smul.addr %s394, 8
      %s396 = scalar_lea.vmem %s7, %s395
      %s397 = smul.u32 32, %s24
      %p398 = scmp.lt.s32.totalorder %s23, 1
      %s399 = scalar_select %p398, %s23, 1
      %p400 = scmp.lt.s32.totalorder %s397, 63
      %s401 = scalar_select %p400, %s397, 63
      %s402 = smul.addr %s399, 64
      %s403 = sadd.s32 %s401, %s402
      %s404 = smul.addr %s403, 4
      %s405 = scalar_lea.vmem %s0, %s404
      %s406 = smul.u32 32, %s24
      %s407 = smul.u32 32, %s25
      %p408 = scmp.lt.s32.totalorder %s23, 1
      %s409 = scalar_select %p408, %s23, 1
      %p410 = scmp.lt.s32.totalorder %s407, 63
      %s411 = scalar_select %p410, %s407, 63
      %s412 = smul.addr %s409, 64
      %s413 = sadd.s32 %s411, %s412
      %s414 = smul.addr %s413, 4
      %s415 = scalar_lea.vmem %s1, %s414
      %s416 = smul.u32 32, %s25
      %s417 = smul.u32 32, %s25
      %p418 = scmp.lt.s32.totalorder %s23, 1
      %s419 = scalar_select %p418, %s23, 1
      %p420 = scmp.lt.s32.totalorder %s417, 63
      %s421 = scalar_select %p420, %s417, 63
      %s422 = smul.addr %s419, 64
      %s423 = sadd.s32 %s421, %s422
      %s424 = smul.addr %s423, 4
      %s425 = scalar_lea.vmem %s2, %s424
      %s426 = smul.u32 32, %s25
      %s427 = smul.u32 2, %s25
      %p428 = scmp.lt.s32.totalorder %s427, 3
      %s429 = scalar_select %p428, %s427, 3
      %s430 = scalar_lea.vmem %s3, %s429
      %s431 = smul.u32 2, %s25
      %s432 = smul.u32 32, %s24
      %p433 = scmp.lt.s32.totalorder %s23, 1
      %s434 = scalar_select %p433, %s23, 1
      %p435 = scmp.lt.s32.totalorder %s432, 63
      %s436 = scalar_select %p435, %s432, 63
      %s437 = smul.addr %s434, 64
      %s438 = sadd.s32 %s436, %s437
      %s439 = smul.addr %s438, 8
      %s440 = scalar_lea.vmem %s4, %s439
      %s441 = smul.u32 32, %s24
      %s442 = smul.u32 32, %s24
      %p443 = scmp.lt.s32.totalorder %s23, 1
      %s444 = scalar_select %p443, %s23, 1
      %p445 = scmp.lt.s32.totalorder %s442, 63
      %s446 = scalar_select %p445, %s442, 63
      %s447 = smul.addr %s444, 64
      %s448 = sadd.s32 %s446, %s447
      %s449 = smul.addr %s448, 8
      %s450 = scalar_lea.vmem %s7, %s449
      %s451 = smul.u32 32, %s24
      %p453 = scmp.eq.s32.totalorder %s25, 0
      // Predicated region
      $region49: #{attention_forward.3} parent=47 // pred_check
        %p454 = pneg %p453
      $region50: #{attention_forward.3} parent=47 // pred_check_branch
        %456 = sbr.rel (%p454) target = $region52
      $region51: #{attention_forward.3} parent=47 // pred_region
        %vm457 = vcmask 7168
        %458 = vst.msk [vmem:[#allocation2] sm:$0xff] %vm457, -inf
        %459 = vst.msk [vmem:[#allocation2 + $0x8] sm:$0xff] %vm457, -inf
        %460 = vst.msk [vmem:[#allocation2 + $0x10] sm:$0xff] %vm457, -inf
        %461 = vst.msk [vmem:[#allocation2 + $0x18] sm:$0xff] %vm457, -inf
        %462 = vst.msk [vmem:[#allocation2 + $0x20] sm:$0xff] %vm457, -inf
        %463 = vst.msk [vmem:[#allocation2 + $0x28] sm:$0xff] %vm457, -inf
        %464 = vst.msk [vmem:[#allocation2 + $0x30] sm:$0xff] %vm457, -inf
        %465 = vst.msk [vmem:[#allocation2 + $0x38] sm:$0xff] %vm457, -inf
        %466 = vst.msk [vmem:[#allocation2 + $0x40] sm:$0xff] %vm457, -inf
        %467 = vst.msk [vmem:[#allocation2 + $0x48] sm:$0xff] %vm457, -inf
        %468 = vst.msk [vmem:[#allocation2 + $0x50] sm:$0xff] %vm457, -inf
        %469 = vst.msk [vmem:[#allocation2 + $0x58] sm:$0xff] %vm457, -inf
        %470 = vst.msk [vmem:[#allocation2 + $0x60] sm:$0xff] %vm457, -inf
        %471 = vst.msk [vmem:[#allocation2 + $0x68] sm:$0xff] %vm457, -inf
        %472 = vst.msk [vmem:[#allocation2 + $0x70] sm:$0xff] %vm457, -inf
        %473 = vst.msk [vmem:[#allocation2 + $0x78] sm:$0xff] %vm457, -inf
        %474 = vst.msk [vmem:[#allocation2 + $0x80] sm:$0xff] %vm457, -inf
        %475 = vst.msk [vmem:[#allocation2 + $0x88] sm:$0xff] %vm457, -inf
        %476 = vst.msk [vmem:[#allocation2 + $0x90] sm:$0xff] %vm457, -inf
        %477 = vst.msk [vmem:[#allocation2 + $0x98] sm:$0xff] %vm457, -inf
        %478 = vst.msk [vmem:[#allocation2 + $0xa0] sm:$0xff] %vm457, -inf
        %479 = vst.msk [vmem:[#allocation2 + $0xa8] sm:$0xff] %vm457, -inf
        %480 = vst.msk [vmem:[#allocation2 + $0xb0] sm:$0xff] %vm457, -inf
        %481 = vst.msk [vmem:[#allocation2 + $0xb8] sm:$0xff] %vm457, -inf
        %482 = vst.msk [vmem:[#allocation2 + $0xc0] sm:$0xff] %vm457, -inf
        %483 = vst.msk [vmem:[#allocation2 + $0xc8] sm:$0xff] %vm457, -inf
        %484 = vst.msk [vmem:[#allocation2 + $0xd0] sm:$0xff] %vm457, -inf
        %485 = vst.msk [vmem:[#allocation2 + $0xd8] sm:$0xff] %vm457, -inf
        %486 = vst.msk [vmem:[#allocation2 + $0xe0] sm:$0xff] %vm457, -inf
        %487 = vst.msk [vmem:[#allocation2 + $0xe8] sm:$0xff] %vm457, -inf
        %488 = vst.msk [vmem:[#allocation2 + $0xf0] sm:$0xff] %vm457, -inf
        %489 = vst.msk [vmem:[#allocation2 + $0xf8] sm:$0xff] %vm457, -inf
        %490 = vst.msk [vmem:[#allocation3] sm:$0xff] %vm457, 0.0
        %491 = vst.msk [vmem:[#allocation3 + $0x8] sm:$0xff] %vm457, 0.0
        %492 = vst.msk [vmem:[#allocation3 + $0x10] sm:$0xff] %vm457, 0.0
        %493 = vst.msk [vmem:[#allocation3 + $0x18] sm:$0xff] %vm457, 0.0
        %494 = vst.msk [vmem:[#allocation3 + $0x20] sm:$0xff] %vm457, 0.0
        %495 = vst.msk [vmem:[#allocation3 + $0x28] sm:$0xff] %vm457, 0.0
        %496 = vst.msk [vmem:[#allocation3 + $0x30] sm:$0xff] %vm457, 0.0
        %497 = vst.msk [vmem:[#allocation3 + $0x38] sm:$0xff] %vm457, 0.0
        %498 = vst.msk [vmem:[#allocation3 + $0x40] sm:$0xff] %vm457, 0.0
        %499 = vst.msk [vmem:[#allocation3 + $0x48] sm:$0xff] %vm457, 0.0
        %500 = vst.msk [vmem:[#allocation3 + $0x50] sm:$0xff] %vm457, 0.0
        %501 = vst.msk [vmem:[#allocation3 + $0x58] sm:$0xff] %vm457, 0.0
        %502 = vst.msk [vmem:[#allocation3 + $0x60] sm:$0xff] %vm457, 0.0
        %503 = vst.msk [vmem:[#allocation3 + $0x68] sm:$0xff] %vm457, 0.0
        %504 = vst.msk [vmem:[#allocation3 + $0x70] sm:$0xff] %vm457, 0.0
        %505 = vst.msk [vmem:[#allocation3 + $0x78] sm:$0xff] %vm457, 0.0
        %506 = vst.msk [vmem:[#allocation3 + $0x80] sm:$0xff] %vm457, 0.0
        %507 = vst.msk [vmem:[#allocation3 + $0x88] sm:$0xff] %vm457, 0.0
        %508 = vst.msk [vmem:[#allocation3 + $0x90] sm:$0xff] %vm457, 0.0
        %509 = vst.msk [vmem:[#allocation3 + $0x98] sm:$0xff] %vm457, 0.0
        %510 = vst.msk [vmem:[#allocation3 + $0xa0] sm:$0xff] %vm457, 0.0
        %511 = vst.msk [vmem:[#allocation3 + $0xa8] sm:$0xff] %vm457, 0.0
        %512 = vst.msk [vmem:[#allocation3 + $0xb0] sm:$0xff] %vm457, 0.0
        %513 = vst.msk [vmem:[#allocation3 + $0xb8] sm:$0xff] %vm457, 0.0
        %514 = vst.msk [vmem:[#allocation3 + $0xc0] sm:$0xff] %vm457, 0.0
        %515 = vst.msk [vmem:[#allocation3 + $0xc8] sm:$0xff] %vm457, 0.0
        %516 = vst.msk [vmem:[#allocation3 + $0xd0] sm:$0xff] %vm457, 0.0
        %517 = vst.msk [vmem:[#allocation3 + $0xd8] sm:$0xff] %vm457, 0.0
        %518 = vst.msk [vmem:[#allocation3 + $0xe0] sm:$0xff] %vm457, 0.0
        %519 = vst.msk [vmem:[#allocation3 + $0xe8] sm:$0xff] %vm457, 0.0
        %520 = vst.msk [vmem:[#allocation3 + $0xf0] sm:$0xff] %vm457, 0.0
        %521 = vst.msk [vmem:[#allocation3 + $0xf8] sm:$0xff] %vm457, 0.0
        %522 = vst [vmem:[#allocation4] sm:$0xff] 0.0
        %523 = vst [vmem:[#allocation4 + $0x8] sm:$0xff] 0.0
        %524 = vst [vmem:[#allocation4 + $0x10] sm:$0xff] 0.0
        %525 = vst [vmem:[#allocation4 + $0x18] sm:$0xff] 0.0
        %526 = vst [vmem:[#allocation4 + $0x20] sm:$0xff] 0.0
        %527 = vst [vmem:[#allocation4 + $0x28] sm:$0xff] 0.0
        %528 = vst [vmem:[#allocation4 + $0x30] sm:$0xff] 0.0
        %529 = vst [vmem:[#allocation4 + $0x38] sm:$0xff] 0.0
        %530 = vst [vmem:[#allocation4 + $0x40] sm:$0xff] 0.0
        %531 = vst [vmem:[#allocation4 + $0x48] sm:$0xff] 0.0
        %532 = vst [vmem:[#allocation4 + $0x50] sm:$0xff] 0.0
        %533 = vst [vmem:[#allocation4 + $0x58] sm:$0xff] 0.0
        %534 = vst [vmem:[#allocation4 + $0x60] sm:$0xff] 0.0
        %535 = vst [vmem:[#allocation4 + $0x68] sm:$0xff] 0.0
        %536 = vst [vmem:[#allocation4 + $0x70] sm:$0xff] 0.0
        %537 = vst [vmem:[#allocation4 + $0x78] sm:$0xff] 0.0
        %538 = vst [vmem:[#allocation4 + $0x80] sm:$0xff] 0.0
        %539 = vst [vmem:[#allocation4 + $0x88] sm:$0xff] 0.0
        %540 = vst [vmem:[#allocation4 + $0x90] sm:$0xff] 0.0
        %541 = vst [vmem:[#allocation4 + $0x98] sm:$0xff] 0.0
        %542 = vst [vmem:[#allocation4 + $0xa0] sm:$0xff] 0.0
        %543 = vst [vmem:[#allocation4 + $0xa8] sm:$0xff] 0.0
        %544 = vst [vmem:[#allocation4 + $0xb0] sm:$0xff] 0.0
        %545 = vst [vmem:[#allocation4 + $0xb8] sm:$0xff] 0.0
        %546 = vst [vmem:[#allocation4 + $0xc0] sm:$0xff] 0.0
        %547 = vst [vmem:[#allocation4 + $0xc8] sm:$0xff] 0.0
        %548 = vst [vmem:[#allocation4 + $0xd0] sm:$0xff] 0.0
        %549 = vst [vmem:[#allocation4 + $0xd8] sm:$0xff] 0.0
        %550 = vst [vmem:[#allocation4 + $0xe0] sm:$0xff] 0.0
        %551 = vst [vmem:[#allocation4 + $0xe8] sm:$0xff] 0.0
        %552 = vst [vmem:[#allocation4 + $0xf0] sm:$0xff] 0.0
        %553 = vst [vmem:[#allocation4 + $0xf8] sm:$0xff] 0.0
      $region52: #{attention_forward.3} parent=47 // pred_fallthru
        _
      %v554 = vld [vmem:[%s405] sm:$0xf]
      %v555 = vld [vmem:[%s405 + $0x4] sm:$0xf]
      %v556 = vld [vmem:[%s405 + $0x8] sm:$0xf]
      %v557 = vld [vmem:[%s405 + $0xc] sm:$0xf]
      %v558 = vld [vmem:[%s405 + $0x10] sm:$0xf]
      %v559 = vld [vmem:[%s405 + $0x14] sm:$0xf]
      %v560 = vld [vmem:[%s405 + $0x18] sm:$0xf]
      %v561 = vld [vmem:[%s405 + $0x1c] sm:$0xf]
      %v562 = vld [vmem:[%s405 + $0x20] sm:$0xf]
      %v563 = vld [vmem:[%s405 + $0x24] sm:$0xf]
      %v564 = vld [vmem:[%s405 + $0x28] sm:$0xf]
      %v565 = vld [vmem:[%s405 + $0x2c] sm:$0xf]
      %v566 = vld [vmem:[%s405 + $0x30] sm:$0xf]
      %v567 = vld [vmem:[%s405 + $0x34] sm:$0xf]
      %v568 = vld [vmem:[%s405 + $0x38] sm:$0xf]
      %v569 = vld [vmem:[%s405 + $0x3c] sm:$0xf]
      %v570 = vld [vmem:[%s405 + $0x40] sm:$0xf]
      %v571 = vld [vmem:[%s405 + $0x44] sm:$0xf]
      %v572 = vld [vmem:[%s405 + $0x48] sm:$0xf]
      %v573 = vld [vmem:[%s405 + $0x4c] sm:$0xf]
      %v574 = vld [vmem:[%s405 + $0x50] sm:$0xf]
      %v575 = vld [vmem:[%s405 + $0x54] sm:$0xf]
      %v576 = vld [vmem:[%s405 + $0x58] sm:$0xf]
      %v577 = vld [vmem:[%s405 + $0x5c] sm:$0xf]
      %v578 = vld [vmem:[%s405 + $0x60] sm:$0xf]
      %v579 = vld [vmem:[%s405 + $0x64] sm:$0xf]
      %v580 = vld [vmem:[%s405 + $0x68] sm:$0xf]
      %v581 = vld [vmem:[%s405 + $0x6c] sm:$0xf]
      %v582 = vld [vmem:[%s405 + $0x70] sm:$0xf]
      %v583 = vld [vmem:[%s405 + $0x74] sm:$0xf]
      %v584 = vld [vmem:[%s405 + $0x78] sm:$0xf]
      %v585 = vld [vmem:[%s405 + $0x7c] sm:$0xf]
      %v586 = vld [vmem:[%s415] sm:$0xf]
      %v587 = vld [vmem:[%s415 + $0x4] sm:$0xf]
      %v588 = vld [vmem:[%s415 + $0x8] sm:$0xf]
      %v589 = vld [vmem:[%s415 + $0xc] sm:$0xf]
      %v590 = vld [vmem:[%s415 + $0x10] sm:$0xf]
      %v591 = vld [vmem:[%s415 + $0x14] sm:$0xf]
      %v592 = vld [vmem:[%s415 + $0x18] sm:$0xf]
      %v593 = vld [vmem:[%s415 + $0x1c] sm:$0xf]
      %v594 = vld [vmem:[%s415 + $0x20] sm:$0xf]
      %v595 = vld [vmem:[%s415 + $0x24] sm:$0xf]
      %v596 = vld [vmem:[%s415 + $0x28] sm:$0xf]
      %v597 = vld [vmem:[%s415 + $0x2c] sm:$0xf]
      %v598 = vld [vmem:[%s415 + $0x30] sm:$0xf]
      %v599 = vld [vmem:[%s415 + $0x34] sm:$0xf]
      %v600 = vld [vmem:[%s415 + $0x38] sm:$0xf]
      %v601 = vld [vmem:[%s415 + $0x3c] sm:$0xf]
      %v602 = vld [vmem:[%s415 + $0x40] sm:$0xf]
      %v603 = vld [vmem:[%s415 + $0x44] sm:$0xf]
      %v604 = vld [vmem:[%s415 + $0x48] sm:$0xf]
      %v605 = vld [vmem:[%s415 + $0x4c] sm:$0xf]
      %v606 = vld [vmem:[%s415 + $0x50] sm:$0xf]
      %v607 = vld [vmem:[%s415 + $0x54] sm:$0xf]
      %v608 = vld [vmem:[%s415 + $0x58] sm:$0xf]
      %v609 = vld [vmem:[%s415 + $0x5c] sm:$0xf]
      %v610 = vld [vmem:[%s415 + $0x60] sm:$0xf]
      %v611 = vld [vmem:[%s415 + $0x64] sm:$0xf]
      %v612 = vld [vmem:[%s415 + $0x68] sm:$0xf]
      %v613 = vld [vmem:[%s415 + $0x6c] sm:$0xf]
      %v614 = vld [vmem:[%s415 + $0x70] sm:$0xf]
      %v615 = vld [vmem:[%s415 + $0x74] sm:$0xf]
      %v616 = vld [vmem:[%s415 + $0x78] sm:$0xf]
      %v617 = vld [vmem:[%s415 + $0x7c] sm:$0xf]
      %v618 = vld [vmem:[%s430] sm:$0x3]
      %v620 = vlaneseq
      %v621 = vshrl.u32 %v620, 7
      %v622 = vsub.s32 0, %v621
      %v623 = vrot.slane %v618, %v622
      %v624 = vlaneseq
      %v625 = vshrl.u32 %v624, 7
      %v626 = vsub.s32 1, %v625
      %v627 = vrot.slane %v618, %v626
      %v662 = vunpack.c.l.b16 %v554
      %v663 = vunpack.c.l.b16 %v555
      %v664 = vunpack.c.l.b16 %v556
      %v665 = vunpack.c.l.b16 %v557
      %v666 = vunpack.c.l.b16 %v558
      %v667 = vunpack.c.l.b16 %v559
      %v668 = vunpack.c.l.b16 %v560
      %v669 = vunpack.c.l.b16 %v561
      %v670 = vunpack.c.l.b16 %v562
      %v671 = vunpack.c.l.b16 %v563
      %v672 = vunpack.c.l.b16 %v564
      %v673 = vunpack.c.l.b16 %v565
      %v674 = vunpack.c.l.b16 %v566
      %v675 = vunpack.c.l.b16 %v567
      %v676 = vunpack.c.l.b16 %v568
      %v677 = vunpack.c.l.b16 %v569
      %v678 = vunpack.c.l.b16 %v570
      %v679 = vunpack.c.l.b16 %v571
      %v680 = vunpack.c.l.b16 %v572
      %v681 = vunpack.c.l.b16 %v573
      %v682 = vunpack.c.l.b16 %v574
      %v683 = vunpack.c.l.b16 %v575
      %v684 = vunpack.c.l.b16 %v576
      %v685 = vunpack.c.l.b16 %v577
      %v686 = vunpack.c.l.b16 %v578
      %v687 = vunpack.c.l.b16 %v579
      %v688 = vunpack.c.l.b16 %v580
      %v689 = vunpack.c.l.b16 %v581
      %v690 = vunpack.c.l.b16 %v582
      %v691 = vunpack.c.l.b16 %v583
      %v692 = vunpack.c.l.b16 %v584
      %v693 = vunpack.c.l.b16 %v585
      %v694 = vpack.c.b16 %v663, %v662
      %v695 = vpack.c.b16 %v665, %v664
      %v696 = vpack.c.b16 %v667, %v666
      %v697 = vpack.c.b16 %v669, %v668
      %v698 = vpack.c.b16 %v671, %v670
      %v699 = vpack.c.b16 %v673, %v672
      %v700 = vpack.c.b16 %v675, %v674
      %v701 = vpack.c.b16 %v677, %v676
      %v702 = vpack.c.b16 %v679, %v678
      %v703 = vpack.c.b16 %v681, %v680
      %v704 = vpack.c.b16 %v683, %v682
      %v705 = vpack.c.b16 %v685, %v684
      %v706 = vpack.c.b16 %v687, %v686
      %v707 = vpack.c.b16 %v689, %v688
      %v708 = vpack.c.b16 %v691, %v690
      %v709 = vpack.c.b16 %v693, %v692
      %v758 = vunpack.c.l.b16 %v586
      %v759 = vunpack.c.l.b16 %v587
      %v760 = vunpack.c.l.b16 %v588
      %v761 = vunpack.c.l.b16 %v589
      %v762 = vunpack.c.l.b16 %v590
      %v763 = vunpack.c.l.b16 %v591
      %v764 = vunpack.c.l.b16 %v592
      %v765 = vunpack.c.l.b16 %v593
      %v766 = vunpack.c.l.b16 %v594
      %v767 = vunpack.c.l.b16 %v595
      %v768 = vunpack.c.l.b16 %v596
      %v769 = vunpack.c.l.b16 %v597
      %v770 = vunpack.c.l.b16 %v598
      %v771 = vunpack.c.l.b16 %v599
      %v772 = vunpack.c.l.b16 %v600
      %v773 = vunpack.c.l.b16 %v601
      %v774 = vunpack.c.l.b16 %v602
      %v775 = vunpack.c.l.b16 %v603
      %v776 = vunpack.c.l.b16 %v604
      %v777 = vunpack.c.l.b16 %v605
      %v778 = vunpack.c.l.b16 %v606
      %v779 = vunpack.c.l.b16 %v607
      %v780 = vunpack.c.l.b16 %v608
      %v781 = vunpack.c.l.b16 %v609
      %v782 = vunpack.c.l.b16 %v610
      %v783 = vunpack.c.l.b16 %v611
      %v784 = vunpack.c.l.b16 %v612
      %v785 = vunpack.c.l.b16 %v613
      %v786 = vunpack.c.l.b16 %v614
      %v787 = vunpack.c.l.b16 %v615
      %v788 = vunpack.c.l.b16 %v616
      %v789 = vunpack.c.l.b16 %v617
      %v790 = vpack.c.b16 %v759, %v758
      %v791 = vpack.c.b16 %v761, %v760
      %v792 = vpack.c.b16 %v763, %v762
      %v793 = vpack.c.b16 %v765, %v764
      %v794 = vpack.c.b16 %v767, %v766
      %v795 = vpack.c.b16 %v769, %v768
      %v796 = vpack.c.b16 %v771, %v770
      %v797 = vpack.c.b16 %v773, %v772
      %v798 = vpack.c.b16 %v775, %v774
      %v799 = vpack.c.b16 %v777, %v776
      %v800 = vpack.c.b16 %v779, %v778
      %v801 = vpack.c.b16 %v781, %v780
      %v802 = vpack.c.b16 %v783, %v782
      %v803 = vpack.c.b16 %v785, %v784
      %v804 = vpack.c.b16 %v787, %v786
      %v805 = vpack.c.b16 %v789, %v788
      %822 = vmatprep.subr.bf16.mxu0 0
      %823 = vmatpush1.bf16.xpose.msra.mxu0 %v790
      %824 = vmatprep.subr.bf16.mxu0 0
      %825 = vmatpush1.bf16.xpose.msra.mxu0 %v791
      %826 = vmatprep.subr.bf16.mxu0 0
      %827 = vmatpush1.bf16.xpose.msra.mxu0 %v792
      %828 = vmatprep.subr.bf16.mxu0 0
      %829 = vmatpush1.bf16.xpose.msra.mxu0 %v793
      %830 = vmatprep.subr.bf16.mxu0 0
      %831 = vmatpush1.bf16.xpose.msra.mxu0 %v794
      %832 = vmatprep.subr.bf16.mxu0 0
      %833 = vmatpush1.bf16.xpose.msra.mxu0 %v795
      %834 = vmatprep.subr.bf16.mxu0 0
      %835 = vmatpush1.bf16.xpose.msra.mxu0 %v796
      %836 = vmatprep.subr.bf16.mxu0 0
      %837 = vmatpush1.bf16.xpose.msra.mxu0 %v797
      %838 = vmatprep.subr.bf16.mxu0 0
      %839 = vmatpush1.bf16.xpose.msra.mxu0 %v798
      %840 = vmatprep.subr.bf16.mxu0 0
      %841 = vmatpush1.bf16.xpose.msra.mxu0 %v799
      %842 = vmatprep.subr.bf16.mxu0 0
      %843 = vmatpush1.bf16.xpose.msra.mxu0 %v800
      %844 = vmatprep.subr.bf16.mxu0 0
      %845 = vmatpush1.bf16.xpose.msra.mxu0 %v801
      %846 = vmatprep.subr.bf16.mxu0 0
      %847 = vmatpush1.bf16.xpose.msra.mxu0 %v802
      %848 = vmatprep.subr.bf16.mxu0 0
      %849 = vmatpush1.bf16.xpose.msra.mxu0 %v803
      %850 = vmatprep.subr.bf16.mxu0 0
      %851 = vmatpush1.bf16.xpose.msra.mxu0 %v804
      %852 = vmatprep.subr.bf16.mxu0 0
      %853 = vmatpush1.bf16.xpose.msra.mxu0 %v805
      %854 = vmatprep.mubr.bf16.mxu0 0
      %855 = vmatmul.mubr.bf16.gmra.mrb[0].mxu0 %v694
      %v856 = vpop.f32.mrb[0].mxu0
      %v857 = vadd.f32 %v623, %v856
      %v858 = vpop.f32.mrb[0].mxu0
      %v859 = vadd.f32 %v627, %v858
      %v860 = vpop.f32.mrb[0].mxu0
      %v861 = vadd.f32 %v623, %v860
      %v862 = vpop.f32.mrb[0].mxu0
      %v863 = vadd.f32 %v627, %v862
      %864 = vmatprep.mubr.bf16.mxu0 0
      %865 = vmatmul.mubr.bf16.gmra.mrb[0].mxu0 %v695
      %v866 = vpop.f32.mrb[0].mxu0
      %v867 = vadd.f32 %v623, %v866
      %v868 = vpop.f32.mrb[0].mxu0
      %v869 = vadd.f32 %v627, %v868
      %v870 = vpop.f32.mrb[0].mxu0
      %v871 = vadd.f32 %v623, %v870
      %v872 = vpop.f32.mrb[0].mxu0
      %v873 = vadd.f32 %v627, %v872
      %874 = vmatprep.mubr.bf16.mxu0 0
      %875 = vmatmul.mubr.bf16.gmra.mrb[0].mxu0 %v696
      %v876 = vpop.f32.mrb[0].mxu0
      %v877 = vadd.f32 %v623, %v876
      %v878 = vpop.f32.mrb[0].mxu0
      %v879 = vadd.f32 %v627, %v878
      %v880 = vpop.f32.mrb[0].mxu0
      %v881 = vadd.f32 %v623, %v880
      %v882 = vpop.f32.mrb[0].mxu0
      %v883 = vadd.f32 %v627, %v882
      %884 = vmatprep.mubr.bf16.mxu0 0
      %885 = vmatmul.mubr.bf16.gmra.mrb[0].mxu0 %v697
      %v886 = vpop.f32.mrb[0].mxu0
      %v887 = vadd.f32 %v623, %v886
      %v888 = vpop.f32.mrb[0].mxu0
      %v889 = vadd.f32 %v627, %v888
      %v890 = vpop.f32.mrb[0].mxu0
      %v891 = vadd.f32 %v623, %v890
      %v892 = vpop.f32.mrb[0].mxu0
      %v893 = vadd.f32 %v627, %v892
      %894 = vmatprep.mubr.bf16.mxu0 0
      %895 = vmatmul.mubr.bf16.gmra.mrb[0].mxu0 %v698
      %v896 = vpop.f32.mrb[0].mxu0
      %v897 = vadd.f32 %v623, %v896
      %v898 = vpop.f32.mrb[0].mxu0
      %v899 = vadd.f32 %v627, %v898
      %v900 = vpop.f32.mrb[0].mxu0
      %v901 = vadd.f32 %v623, %v900
      %v902 = vpop.f32.mrb[0].mxu0
      %v903 = vadd.f32 %v627, %v902
      %904 = vmatprep.mubr.bf16.mxu0 0
      %905 = vmatmul.mubr.bf16.gmra.mrb[0].mxu0 %v699
      %v906 = vpop.f32.mrb[0].mxu0
      %v907 = vadd.f32 %v623, %v906
      %v908 = vpop.f32.mrb[0].mxu0
      %v909 = vadd.f32 %v627, %v908
      %v910 = vpop.f32.mrb[0].mxu0
      %v911 = vadd.f32 %v623, %v910
      %v912 = vpop.f32.mrb[0].mxu0
      %v913 = vadd.f32 %v627, %v912
      %914 = vmatprep.mubr.bf16.mxu0 0
      %915 = vmatmul.mubr.bf16.gmra.mrb[0].mxu0 %v700
      %v916 = vpop.f32.mrb[0].mxu0
      %v917 = vadd.f32 %v623, %v916
      %v918 = vpop.f32.mrb[0].mxu0
      %v919 = vadd.f32 %v627, %v918
      %v920 = vpop.f32.mrb[0].mxu0
      %v921 = vadd.f32 %v623, %v920
      %v922 = vpop.f32.mrb[0].mxu0
      %v923 = vadd.f32 %v627, %v922
      %924 = vmatprep.mubr.bf16.mxu0 0
      %925 = vmatmul.mubr.bf16.gmra.mrb[0].mxu0 %v701
      %v926 = vpop.f32.mrb[0].mxu0
      %v927 = vadd.f32 %v623, %v926
      %v928 = vpop.f32.mrb[0].mxu0
      %v929 = vadd.f32 %v627, %v928
      %v930 = vpop.f32.mrb[0].mxu0
      %v931 = vadd.f32 %v623, %v930
      %v932 = vpop.f32.mrb[0].mxu0
      %v933 = vadd.f32 %v627, %v932
      %934 = vmatprep.mubr.bf16.mxu0 0
      %935 = vmatmul.mubr.bf16.gmra.mrb[0].mxu0 %v702
      %v936 = vpop.f32.mrb[0].mxu0
      %v937 = vadd.f32 %v623, %v936
      %v938 = vpop.f32.mrb[0].mxu0
      %v939 = vadd.f32 %v627, %v938
      %v940 = vpop.f32.mrb[0].mxu0
      %v941 = vadd.f32 %v623, %v940
      %v942 = vpop.f32.mrb[0].mxu0
      %v943 = vadd.f32 %v627, %v942
      %944 = vmatprep.mubr.bf16.mxu0 0
      %945 = vmatmul.mubr.bf16.gmra.mrb[0].mxu0 %v703
      %v946 = vpop.f32.mrb[0].mxu0
      %v947 = vadd.f32 %v623, %v946
      %v948 = vpop.f32.mrb[0].mxu0
      %v949 = vadd.f32 %v627, %v948
      %v950 = vpop.f32.mrb[0].mxu0
      %v951 = vadd.f32 %v623, %v950
      %v952 = vpop.f32.mrb[0].mxu0
      %v953 = vadd.f32 %v627, %v952
      %954 = vmatprep.mubr.bf16.mxu0 0
      %955 = vmatmul.mubr.bf16.gmra.mrb[0].mxu0 %v704
      %v956 = vpop.f32.mrb[0].mxu0
      %v957 = vadd.f32 %v623, %v956
      %v958 = vpop.f32.mrb[0].mxu0
      %v959 = vadd.f32 %v627, %v958
      %v960 = vpop.f32.mrb[0].mxu0
      %v961 = vadd.f32 %v623, %v960
      %v962 = vpop.f32.mrb[0].mxu0
      %v963 = vadd.f32 %v627, %v962
      %964 = vmatprep.mubr.bf16.mxu0 0
      %965 = vmatmul.mubr.bf16.gmra.mrb[0].mxu0 %v705
      %v966 = vpop.f32.mrb[0].mxu0
      %v967 = vadd.f32 %v623, %v966
      %v968 = vpop.f32.mrb[0].mxu0
      %v969 = vadd.f32 %v627, %v968
      %v970 = vpop.f32.mrb[0].mxu0
      %v971 = vadd.f32 %v623, %v970
      %v972 = vpop.f32.mrb[0].mxu0
      %v973 = vadd.f32 %v627, %v972
      %974 = vmatprep.mubr.bf16.mxu0 0
      %975 = vmatmul.mubr.bf16.gmra.mrb[0].mxu0 %v706
      %v976 = vpop.f32.mrb[0].mxu0
      %v977 = vadd.f32 %v623, %v976
      %v978 = vpop.f32.mrb[0].mxu0
      %v979 = vadd.f32 %v627, %v978
      %v980 = vpop.f32.mrb[0].mxu0
      %v981 = vadd.f32 %v623, %v980
      %v982 = vpop.f32.mrb[0].mxu0
      %v983 = vadd.f32 %v627, %v982
      %984 = vmatprep.mubr.bf16.mxu0 0
      %985 = vmatmul.mubr.bf16.gmra.mrb[0].mxu0 %v707
      %v986 = vpop.f32.mrb[0].mxu0
      %v987 = vadd.f32 %v623, %v986
      %v988 = vpop.f32.mrb[0].mxu0
      %v989 = vadd.f32 %v627, %v988
      %v990 = vpop.f32.mrb[0].mxu0
      %v991 = vadd.f32 %v623, %v990
      %v992 = vpop.f32.mrb[0].mxu0
      %v993 = vadd.f32 %v627, %v992
      %994 = vmatprep.mubr.bf16.mxu0 0
      %995 = vmatmul.mubr.bf16.gmra.mrb[0].mxu0 %v708
      %v996 = vpop.f32.mrb[0].mxu0
      %v997 = vadd.f32 %v623, %v996
      %v998 = vpop.f32.mrb[0].mxu0
      %v999 = vadd.f32 %v627, %v998
      %v1000 = vpop.f32.mrb[0].mxu0
      %v1001 = vadd.f32 %v623, %v1000
      %v1002 = vpop.f32.mrb[0].mxu0
      %v1003 = vadd.f32 %v627, %v1002
      %1004 = vmatprep.mubr.bf16.mxu0 0
      %1005 = vmatmul.mubr.bf16.gmra.mrb[0].mxu0 %v709
      %v1006 = vpop.f32.mrb[0].mxu0
      %v1007 = vadd.f32 %v623, %v1006
      %v1008 = vpop.f32.mrb[0].mxu0
      %v1009 = vadd.f32 %v627, %v1008
      %v1010 = vpop.f32.mrb[0].mxu0
      %v1011 = vadd.f32 %v623, %v1010
      %v1012 = vpop.f32.mrb[0].mxu0
      %v1013 = vadd.f32 %v627, %v1012
      %1014 = vdwg.mxu0
      %v1015 = vld [vmem:[#allocation2] sm:$0xff]
      %v1016 = vld [vmem:[#allocation2 + $0x8] sm:$0xff]
      %v1017 = vld [vmem:[#allocation2 + $0x10] sm:$0xff]
      %v1018 = vld [vmem:[#allocation2 + $0x18] sm:$0xff]
      %v1019 = vld [vmem:[#allocation2 + $0x20] sm:$0xff]
      %v1020 = vld [vmem:[#allocation2 + $0x28] sm:$0xff]
      %v1021 = vld [vmem:[#allocation2 + $0x30] sm:$0xff]
      %v1022 = vld [vmem:[#allocation2 + $0x38] sm:$0xff]
      %v1023 = vld [vmem:[#allocation2 + $0x40] sm:$0xff]
      %v1024 = vld [vmem:[#allocation2 + $0x48] sm:$0xff]
      %v1025 = vld [vmem:[#allocation2 + $0x50] sm:$0xff]
      %v1026 = vld [vmem:[#allocation2 + $0x58] sm:$0xff]
      %v1027 = vld [vmem:[#allocation2 + $0x60] sm:$0xff]
      %v1028 = vld [vmem:[#allocation2 + $0x68] sm:$0xff]
      %v1029 = vld [vmem:[#allocation2 + $0x70] sm:$0xff]
      %v1030 = vld [vmem:[#allocation2 + $0x78] sm:$0xff]
      %v1031 = vld [vmem:[#allocation2 + $0x80] sm:$0xff]
      %v1032 = vld [vmem:[#allocation2 + $0x88] sm:$0xff]
      %v1033 = vld [vmem:[#allocation2 + $0x90] sm:$0xff]
      %v1034 = vld [vmem:[#allocation2 + $0x98] sm:$0xff]
      %v1035 = vld [vmem:[#allocation2 + $0xa0] sm:$0xff]
      %v1036 = vld [vmem:[#allocation2 + $0xa8] sm:$0xff]
      %v1037 = vld [vmem:[#allocation2 + $0xb0] sm:$0xff]
      %v1038 = vld [vmem:[#allocation2 + $0xb8] sm:$0xff]
      %v1039 = vld [vmem:[#allocation2 + $0xc0] sm:$0xff]
      %v1040 = vld [vmem:[#allocation2 + $0xc8] sm:$0xff]
      %v1041 = vld [vmem:[#allocation2 + $0xd0] sm:$0xff]
      %v1042 = vld [vmem:[#allocation2 + $0xd8] sm:$0xff]
      %v1043 = vld [vmem:[#allocation2 + $0xe0] sm:$0xff]
      %v1044 = vld [vmem:[#allocation2 + $0xe8] sm:$0xff]
      %v1045 = vld [vmem:[#allocation2 + $0xf0] sm:$0xff]
      %v1046 = vld [vmem:[#allocation2 + $0xf8] sm:$0xff]
      %v1047 = vmax.f32 %v857, %v859
      %1048 = vmax.xlane.f32.xlu0 %v1047
      %v1049 = vpop.xlane.xlu0 %1048
      %v1050 = vmax.f32 %v861, %v863
      %1051 = vmax.xlane.f32.xlu0 %v1050
      %v1052 = vpop.xlane.xlu0 %1051
      %v1053 = vmax.f32 %v867, %v869
      %1054 = vmax.xlane.f32.xlu0 %v1053
      %v1055 = vpop.xlane.xlu0 %1054
      %v1056 = vmax.f32 %v871, %v873
      %1057 = vmax.xlane.f32.xlu0 %v1056
      %v1058 = vpop.xlane.xlu0 %1057
      %v1059 = vmax.f32 %v877, %v879
      %1060 = vmax.xlane.f32.xlu0 %v1059
      %v1061 = vpop.xlane.xlu0 %1060
      %v1062 = vmax.f32 %v881, %v883
      %1063 = vmax.xlane.f32.xlu0 %v1062
      %v1064 = vpop.xlane.xlu0 %1063
      %v1065 = vmax.f32 %v887, %v889
      %1066 = vmax.xlane.f32.xlu0 %v1065
      %v1067 = vpop.xlane.xlu0 %1066
      %v1068 = vmax.f32 %v891, %v893
      %1069 = vmax.xlane.f32.xlu0 %v1068
      %v1070 = vpop.xlane.xlu0 %1069
      %v1071 = vmax.f32 %v897, %v899
      %1072 = vmax.xlane.f32.xlu0 %v1071
      %v1073 = vpop.xlane.xlu0 %1072
      %v1074 = vmax.f32 %v901, %v903
      %1075 = vmax.xlane.f32.xlu0 %v1074
      %v1076 = vpop.xlane.xlu0 %1075
      %v1077 = vmax.f32 %v907, %v909
      %1078 = vmax.xlane.f32.xlu0 %v1077
      %v1079 = vpop.xlane.xlu0 %1078
      %v1080 = vmax.f32 %v911, %v913
      %1081 = vmax.xlane.f32.xlu0 %v1080
      %v1082 = vpop.xlane.xlu0 %1081
      %v1083 = vmax.f32 %v917, %v919
      %1084 = vmax.xlane.f32.xlu0 %v1083
      %v1085 = vpop.xlane.xlu0 %1084
      %v1086 = vmax.f32 %v921, %v923
      %1087 = vmax.xlane.f32.xlu0 %v1086
      %v1088 = vpop.xlane.xlu0 %1087
      %v1089 = vmax.f32 %v927, %v929
      %1090 = vmax.xlane.f32.xlu0 %v1089
      %v1091 = vpop.xlane.xlu0 %1090
      %v1092 = vmax.f32 %v931, %v933
      %1093 = vmax.xlane.f32.xlu0 %v1092
      %v1094 = vpop.xlane.xlu0 %1093
      %v1095 = vmax.f32 %v937, %v939
      %1096 = vmax.xlane.f32.xlu0 %v1095
      %v1097 = vpop.xlane.xlu0 %1096
      %v1098 = vmax.f32 %v941, %v943
      %1099 = vmax.xlane.f32.xlu0 %v1098
      %v1100 = vpop.xlane.xlu0 %1099
      %v1101 = vmax.f32 %v947, %v949
      %1102 = vmax.xlane.f32.xlu0 %v1101
      %v1103 = vpop.xlane.xlu0 %1102
      %v1104 = vmax.f32 %v951, %v953
      %1105 = vmax.xlane.f32.xlu0 %v1104
      %v1106 = vpop.xlane.xlu0 %1105
      %v1107 = vmax.f32 %v957, %v959
      %1108 = vmax.xlane.f32.xlu0 %v1107
      %v1109 = vpop.xlane.xlu0 %1108
      %v1110 = vmax.f32 %v961, %v963
      %1111 = vmax.xlane.f32.xlu0 %v1110
      %v1112 = vpop.xlane.xlu0 %1111
      %v1113 = vmax.f32 %v967, %v969
      %1114 = vmax.xlane.f32.xlu0 %v1113
      %v1115 = vpop.xlane.xlu0 %1114
      %v1116 = vmax.f32 %v971, %v973
      %1117 = vmax.xlane.f32.xlu0 %v1116
      %v1118 = vpop.xlane.xlu0 %1117
      %v1119 = vmax.f32 %v977, %v979
      %1120 = vmax.xlane.f32.xlu0 %v1119
      %v1121 = vpop.xlane.xlu0 %1120
      %v1122 = vmax.f32 %v981, %v983
      %1123 = vmax.xlane.f32.xlu0 %v1122
      %v1124 = vpop.xlane.xlu0 %1123
      %v1125 = vmax.f32 %v987, %v989
      %1126 = vmax.xlane.f32.xlu0 %v1125
      %v1127 = vpop.xlane.xlu0 %1126
      %v1128 = vmax.f32 %v991, %v993
      %1129 = vmax.xlane.f32.xlu0 %v1128
      %v1130 = vpop.xlane.xlu0 %1129
      %v1131 = vmax.f32 %v997, %v999
      %1132 = vmax.xlane.f32.xlu0 %v1131
      %v1133 = vpop.xlane.xlu0 %1132
      %v1134 = vmax.f32 %v1001, %v1003
      %1135 = vmax.xlane.f32.xlu0 %v1134
      %v1136 = vpop.xlane.xlu0 %1135
      %v1137 = vmax.f32 %v1007, %v1009
      %1138 = vmax.xlane.f32.xlu0 %v1137
      %v1139 = vpop.xlane.xlu0 %1138
      %v1140 = vmax.f32 %v1011, %v1013
      %1141 = vmax.xlane.f32.xlu0 %v1140
      %v1142 = vpop.xlane.xlu0 %1141
      %v1143 = vmax.f32 %v1015, %v1049
      %v1144 = vmax.f32 %v1016, %v1052
      %v1145 = vmax.f32 %v1017, %v1055
      %v1146 = vmax.f32 %v1018, %v1058
      %v1147 = vmax.f32 %v1019, %v1061
      %v1148 = vmax.f32 %v1020, %v1064
      %v1149 = vmax.f32 %v1021, %v1067
      %v1150 = vmax.f32 %v1022, %v1070
      %v1151 = vmax.f32 %v1023, %v1073
      %v1152 = vmax.f32 %v1024, %v1076
      %v1153 = vmax.f32 %v1025, %v1079
      %v1154 = vmax.f32 %v1026, %v1082
      %v1155 = vmax.f32 %v1027, %v1085
      %v1156 = vmax.f32 %v1028, %v1088
      %v1157 = vmax.f32 %v1029, %v1091
      %v1158 = vmax.f32 %v1030, %v1094
      %v1159 = vmax.f32 %v1031, %v1097
      %v1160 = vmax.f32 %v1032, %v1100
      %v1161 = vmax.f32 %v1033, %v1103
      %v1162 = vmax.f32 %v1034, %v1106
      %v1163 = vmax.f32 %v1035, %v1109
      %v1164 = vmax.f32 %v1036, %v1112
      %v1165 = vmax.f32 %v1037, %v1115
      %v1166 = vmax.f32 %v1038, %v1118
      %v1167 = vmax.f32 %v1039, %v1121
      %v1168 = vmax.f32 %v1040, %v1124
      %v1169 = vmax.f32 %v1041, %v1127
      %v1170 = vmax.f32 %v1042, %v1130
      %v1171 = vmax.f32 %v1043, %v1133
      %v1172 = vmax.f32 %v1044, %v1136
      %v1173 = vmax.f32 %v1045, %v1139
      %v1174 = vmax.f32 %v1046, %v1142
      %v1175 = vsub.f32 %v1015, %v1143
      %v1176 = vsub.f32 %v1016, %v1144
      %v1177 = vsub.f32 %v1017, %v1145
      %v1178 = vsub.f32 %v1018, %v1146
      %v1179 = vsub.f32 %v1019, %v1147
      %v1180 = vsub.f32 %v1020, %v1148
      %v1181 = vsub.f32 %v1021, %v1149
      %v1182 = vsub.f32 %v1022, %v1150
      %v1183 = vsub.f32 %v1023, %v1151
      %v1184 = vsub.f32 %v1024, %v1152
      %v1185 = vsub.f32 %v1025, %v1153
      %v1186 = vsub.f32 %v1026, %v1154
      %v1187 = vsub.f32 %v1027, %v1155
      %v1188 = vsub.f32 %v1028, %v1156
      %v1189 = vsub.f32 %v1029, %v1157
      %v1190 = vsub.f32 %v1030, %v1158
      %v1191 = vsub.f32 %v1031, %v1159
      %v1192 = vsub.f32 %v1032, %v1160
      %v1193 = vsub.f32 %v1033, %v1161
      %v1194 = vsub.f32 %v1034, %v1162
      %v1195 = vsub.f32 %v1035, %v1163
      %v1196 = vsub.f32 %v1036, %v1164
      %v1197 = vsub.f32 %v1037, %v1165
      %v1198 = vsub.f32 %v1038, %v1166
      %v1199 = vsub.f32 %v1039, %v1167
      %v1200 = vsub.f32 %v1040, %v1168
      %v1201 = vsub.f32 %v1041, %v1169
      %v1202 = vsub.f32 %v1042, %v1170
      %v1203 = vsub.f32 %v1043, %v1171
      %v1204 = vsub.f32 %v1044, %v1172
      %v1205 = vsub.f32 %v1045, %v1173
      %v1206 = vsub.f32 %v1046, %v1174
      %v1207 = vmul.f32 %v1175, 1.442695
      %v1208 = vpow.pop %v1207
      %v1209 = vmul.f32 %v1176, 1.442695
      %v1210 = vpow.pop %v1209
      %v1211 = vmul.f32 %v1177, 1.442695
      %v1212 = vpow.pop %v1211
      %v1213 = vmul.f32 %v1178, 1.442695
      %v1214 = vpow.pop %v1213
      %v1215 = vmul.f32 %v1179, 1.442695
      %v1216 = vpow.pop %v1215
      %v1217 = vmul.f32 %v1180, 1.442695
      %v1218 = vpow.pop %v1217
      %v1219 = vmul.f32 %v1181, 1.442695
      %v1220 = vpow.pop %v1219
      %v1221 = vmul.f32 %v1182, 1.442695
      %v1222 = vpow.pop %v1221
      %v1223 = vmul.f32 %v1183, 1.442695
      %v1224 = vpow.pop %v1223
      %v1225 = vmul.f32 %v1184, 1.442695
      %v1226 = vpow.pop %v1225
      %v1227 = vmul.f32 %v1185, 1.442695
      %v1228 = vpow.pop %v1227
      %v1229 = vmul.f32 %v1186, 1.442695
      %v1230 = vpow.pop %v1229
      %v1231 = vmul.f32 %v1187, 1.442695
      %v1232 = vpow.pop %v1231
      %v1233 = vmul.f32 %v1188, 1.442695
      %v1234 = vpow.pop %v1233
      %v1235 = vmul.f32 %v1189, 1.442695
      %v1236 = vpow.pop %v1235
      %v1237 = vmul.f32 %v1190, 1.442695
      %v1238 = vpow.pop %v1237
      %v1239 = vmul.f32 %v1191, 1.442695
      %v1240 = vpow.pop %v1239
      %v1241 = vmul.f32 %v1192, 1.442695
      %v1242 = vpow.pop %v1241
      %v1243 = vmul.f32 %v1193, 1.442695
      %v1244 = vpow.pop %v1243
      %v1245 = vmul.f32 %v1194, 1.442695
      %v1246 = vpow.pop %v1245
      %v1247 = vmul.f32 %v1195, 1.442695
      %v1248 = vpow.pop %v1247
      %v1249 = vmul.f32 %v1196, 1.442695
      %v1250 = vpow.pop %v1249
      %v1251 = vmul.f32 %v1197, 1.442695
      %v1252 = vpow.pop %v1251
      %v1253 = vmul.f32 %v1198, 1.442695
      %v1254 = vpow.pop %v1253
      %v1255 = vmul.f32 %v1199, 1.442695
      %v1256 = vpow.pop %v1255
      %v1257 = vmul.f32 %v1200, 1.442695
      %v1258 = vpow.pop %v1257
      %v1259 = vmul.f32 %v1201, 1.442695
      %v1260 = vpow.pop %v1259
      %v1261 = vmul.f32 %v1202, 1.442695
      %v1262 = vpow.pop %v1261
      %v1263 = vmul.f32 %v1203, 1.442695
      %v1264 = vpow.pop %v1263
      %v1265 = vmul.f32 %v1204, 1.442695
      %v1266 = vpow.pop %v1265
      %v1267 = vmul.f32 %v1205, 1.442695
      %v1268 = vpow.pop %v1267
      %v1269 = vmul.f32 %v1206, 1.442695
      %v1270 = vpow.pop %v1269
      %1272 = vset.pattern.permute.xlu0 0
      %1273 = vperm.xlu0 %1272, %v1143
      %v1274 = vpop.permute.xlu0 %1273
      %1277 = vset.pattern.permute.xlu0 0
      %1278 = vperm.xlu0 %1277, %v1144
      %v1279 = vpop.permute.xlu0 %1278
      %1282 = vset.pattern.permute.xlu0 0
      %1283 = vperm.xlu0 %1282, %v1145
      %v1284 = vpop.permute.xlu0 %1283
      %1287 = vset.pattern.permute.xlu0 0
      %1288 = vperm.xlu0 %1287, %v1146
      %v1289 = vpop.permute.xlu0 %1288
      %1292 = vset.pattern.permute.xlu0 0
      %1293 = vperm.xlu0 %1292, %v1147
      %v1294 = vpop.permute.xlu0 %1293
      %1297 = vset.pattern.permute.xlu0 0
      %1298 = vperm.xlu0 %1297, %v1148
      %v1299 = vpop.permute.xlu0 %1298
      %1302 = vset.pattern.permute.xlu0 0
      %1303 = vperm.xlu0 %1302, %v1149
      %v1304 = vpop.permute.xlu0 %1303
      %1307 = vset.pattern.permute.xlu0 0
      %1308 = vperm.xlu0 %1307, %v1150
      %v1309 = vpop.permute.xlu0 %1308
      %1312 = vset.pattern.permute.xlu0 0
      %1313 = vperm.xlu0 %1312, %v1151
      %v1314 = vpop.permute.xlu0 %1313
      %1317 = vset.pattern.permute.xlu0 0
      %1318 = vperm.xlu0 %1317, %v1152
      %v1319 = vpop.permute.xlu0 %1318
      %1322 = vset.pattern.permute.xlu0 0
      %1323 = vperm.xlu0 %1322, %v1153
      %v1324 = vpop.permute.xlu0 %1323
      %1327 = vset.pattern.permute.xlu0 0
      %1328 = vperm.xlu0 %1327, %v1154
      %v1329 = vpop.permute.xlu0 %1328
      %1332 = vset.pattern.permute.xlu0 0
      %1333 = vperm.xlu0 %1332, %v1155
      %v1334 = vpop.permute.xlu0 %1333
      %1337 = vset.pattern.permute.xlu0 0
      %1338 = vperm.xlu0 %1337, %v1156
      %v1339 = vpop.permute.xlu0 %1338
      %1342 = vset.pattern.permute.xlu0 0
      %1343 = vperm.xlu0 %1342, %v1157
      %v1344 = vpop.permute.xlu0 %1343
      %1347 = vset.pattern.permute.xlu0 0
      %1348 = vperm.xlu0 %1347, %v1158
      %v1349 = vpop.permute.xlu0 %1348
      %1352 = vset.pattern.permute.xlu0 0
      %1353 = vperm.xlu0 %1352, %v1159
      %v1354 = vpop.permute.xlu0 %1353
      %1357 = vset.pattern.permute.xlu0 0
      %1358 = vperm.xlu0 %1357, %v1160
      %v1359 = vpop.permute.xlu0 %1358
      %1362 = vset.pattern.permute.xlu0 0
      %1363 = vperm.xlu0 %1362, %v1161
      %v1364 = vpop.permute.xlu0 %1363
      %1367 = vset.pattern.permute.xlu0 0
      %1368 = vperm.xlu0 %1367, %v1162
      %v1369 = vpop.permute.xlu0 %1368
      %1372 = vset.pattern.permute.xlu0 0
      %1373 = vperm.xlu0 %1372, %v1163
      %v1374 = vpop.permute.xlu0 %1373
      %1377 = vset.pattern.permute.xlu0 0
      %1378 = vperm.xlu0 %1377, %v1164
      %v1379 = vpop.permute.xlu0 %1378
      %1382 = vset.pattern.permute.xlu0 0
      %1383 = vperm.xlu0 %1382, %v1165
      %v1384 = vpop.permute.xlu0 %1383
      %1387 = vset.pattern.permute.xlu0 0
      %1388 = vperm.xlu0 %1387, %v1166
      %v1389 = vpop.permute.xlu0 %1388
      %1392 = vset.pattern.permute.xlu0 0
      %1393 = vperm.xlu0 %1392, %v1167
      %v1394 = vpop.permute.xlu0 %1393
      %1397 = vset.pattern.permute.xlu0 0
      %1398 = vperm.xlu0 %1397, %v1168
      %v1399 = vpop.permute.xlu0 %1398
      %1402 = vset.pattern.permute.xlu0 0
      %1403 = vperm.xlu0 %1402, %v1169
      %v1404 = vpop.permute.xlu0 %1403
      %1407 = vset.pattern.permute.xlu0 0
      %1408 = vperm.xlu0 %1407, %v1170
      %v1409 = vpop.permute.xlu0 %1408
      %1412 = vset.pattern.permute.xlu0 0
      %1413 = vperm.xlu0 %1412, %v1171
      %v1414 = vpop.permute.xlu0 %1413
      %1417 = vset.pattern.permute.xlu0 0
      %1418 = vperm.xlu0 %1417, %v1172
      %v1419 = vpop.permute.xlu0 %1418
      %1422 = vset.pattern.permute.xlu0 0
      %1423 = vperm.xlu0 %1422, %v1173
      %v1424 = vpop.permute.xlu0 %1423
      %1427 = vset.pattern.permute.xlu0 0
      %1428 = vperm.xlu0 %1427, %v1174
      %v1429 = vpop.permute.xlu0 %1428
      %v1431 = vsub.f32 %v857, %v1274
      %v1432 = vsub.f32 %v859, %v1274
      %v1433 = vsub.f32 %v861, %v1279
      %v1434 = vsub.f32 %v863, %v1279
      %v1435 = vsub.f32 %v867, %v1284
      %v1436 = vsub.f32 %v869, %v1284
      %v1437 = vsub.f32 %v871, %v1289
      %v1438 = vsub.f32 %v873, %v1289
      %v1439 = vsub.f32 %v877, %v1294
      %v1440 = vsub.f32 %v879, %v1294
      %v1441 = vsub.f32 %v881, %v1299
      %v1442 = vsub.f32 %v883, %v1299
      %v1443 = vsub.f32 %v887, %v1304
      %v1444 = vsub.f32 %v889, %v1304
      %v1445 = vsub.f32 %v891, %v1309
      %v1446 = vsub.f32 %v893, %v1309
      %v1447 = vsub.f32 %v897, %v1314
      %v1448 = vsub.f32 %v899, %v1314
      %v1449 = vsub.f32 %v901, %v1319
      %v1450 = vsub.f32 %v903, %v1319
      %v1451 = vsub.f32 %v907, %v1324
      %v1452 = vsub.f32 %v909, %v1324
      %v1453 = vsub.f32 %v911, %v1329
      %v1454 = vsub.f32 %v913, %v1329
      %v1455 = vsub.f32 %v917, %v1334
      %v1456 = vsub.f32 %v919, %v1334
      %v1457 = vsub.f32 %v921, %v1339
      %v1458 = vsub.f32 %v923, %v1339
      %v1459 = vsub.f32 %v927, %v1344
      %v1460 = vsub.f32 %v929, %v1344
      %v1461 = vsub.f32 %v931, %v1349
      %v1462 = vsub.f32 %v933, %v1349
      %v1463 = vsub.f32 %v937, %v1354
      %v1464 = vsub.f32 %v939, %v1354
      %v1465 = vsub.f32 %v941, %v1359
      %v1466 = vsub.f32 %v943, %v1359
      %v1467 = vsub.f32 %v947, %v1364
      %v1468 = vsub.f32 %v949, %v1364
      %v1469 = vsub.f32 %v951, %v1369
      %v1470 = vsub.f32 %v953, %v1369
      %v1471 = vsub.f32 %v957, %v1374
      %v1472 = vsub.f32 %v959, %v1374
      %v1473 = vsub.f32 %v961, %v1379
      %v1474 = vsub.f32 %v963, %v1379
      %v1475 = vsub.f32 %v967, %v1384
      %v1476 = vsub.f32 %v969, %v1384
      %v1477 = vsub.f32 %v971, %v1389
      %v1478 = vsub.f32 %v973, %v1389
      %v1479 = vsub.f32 %v977, %v1394
      %v1480 = vsub.f32 %v979, %v1394
      %v1481 = vsub.f32 %v981, %v1399
      %v1482 = vsub.f32 %v983, %v1399
      %v1483 = vsub.f32 %v987, %v1404
      %v1484 = vsub.f32 %v989, %v1404
      %v1485 = vsub.f32 %v991, %v1409
      %v1486 = vsub.f32 %v993, %v1409
      %v1487 = vsub.f32 %v997, %v1414
      %v1488 = vsub.f32 %v999, %v1414
      %v1489 = vsub.f32 %v1001, %v1419
      %v1490 = vsub.f32 %v1003, %v1419
      %v1491 = vsub.f32 %v1007, %v1424
      %v1492 = vsub.f32 %v1009, %v1424
      %v1493 = vsub.f32 %v1011, %v1429
      %v1494 = vsub.f32 %v1013, %v1429
      %v1495 = vmul.f32 %v1431, 1.442695
      %v1496 = vpow.pop %v1495
      %v1497 = vmul.f32 %v1432, 1.442695
      %v1498 = vpow.pop %v1497
      %v1499 = vmul.f32 %v1433, 1.442695
      %v1500 = vpow.pop %v1499
      %v1501 = vmul.f32 %v1434, 1.442695
      %v1502 = vpow.pop %v1501
      %v1503 = vmul.f32 %v1435, 1.442695
      %v1504 = vpow.pop %v1503
      %v1505 = vmul.f32 %v1436, 1.442695
      %v1506 = vpow.pop %v1505
      %v1507 = vmul.f32 %v1437, 1.442695
      %v1508 = vpow.pop %v1507
      %v1509 = vmul.f32 %v1438, 1.442695
      %v1510 = vpow.pop %v1509
      %v1511 = vmul.f32 %v1439, 1.442695
      %v1512 = vpow.pop %v1511
      %v1513 = vmul.f32 %v1440, 1.442695
      %v1514 = vpow.pop %v1513
      %v1515 = vmul.f32 %v1441, 1.442695
      %v1516 = vpow.pop %v1515
      %v1517 = vmul.f32 %v1442, 1.442695
      %v1518 = vpow.pop %v1517
      %v1519 = vmul.f32 %v1443, 1.442695
      %v1520 = vpow.pop %v1519
      %v1521 = vmul.f32 %v1444, 1.442695
      %v1522 = vpow.pop %v1521
      %v1523 = vmul.f32 %v1445, 1.442695
      %v1524 = vpow.pop %v1523
      %v1525 = vmul.f32 %v1446, 1.442695
      %v1526 = vpow.pop %v1525
      %v1527 = vmul.f32 %v1447, 1.442695
      %v1528 = vpow.pop %v1527
      %v1529 = vmul.f32 %v1448, 1.442695
      %v1530 = vpow.pop %v1529
      %v1531 = vmul.f32 %v1449, 1.442695
      %v1532 = vpow.pop %v1531
      %v1533 = vmul.f32 %v1450, 1.442695
      %v1534 = vpow.pop %v1533
      %v1535 = vmul.f32 %v1451, 1.442695
      %v1536 = vpow.pop %v1535
      %v1537 = vmul.f32 %v1452, 1.442695
      %v1538 = vpow.pop %v1537
      %v1539 = vmul.f32 %v1453, 1.442695
      %v1540 = vpow.pop %v1539
      %v1541 = vmul.f32 %v1454, 1.442695
      %v1542 = vpow.pop %v1541
      %v1543 = vmul.f32 %v1455, 1.442695
      %v1544 = vpow.pop %v1543
      %v1545 = vmul.f32 %v1456, 1.442695
      %v1546 = vpow.pop %v1545
      %v1547 = vmul.f32 %v1457, 1.442695
      %v1548 = vpow.pop %v1547
      %v1549 = vmul.f32 %v1458, 1.442695
      %v1550 = vpow.pop %v1549
      %v1551 = vmul.f32 %v1459, 1.442695
      %v1552 = vpow.pop %v1551
      %v1553 = vmul.f32 %v1460, 1.442695
      %v1554 = vpow.pop %v1553
      %v1555 = vmul.f32 %v1461, 1.442695
      %v1556 = vpow.pop %v1555
      %v1557 = vmul.f32 %v1462, 1.442695
      %v1558 = vpow.pop %v1557
      %v1559 = vmul.f32 %v1463, 1.442695
      %v1560 = vpow.pop %v1559
      %v1561 = vmul.f32 %v1464, 1.442695
      %v1562 = vpow.pop %v1561
      %v1563 = vmul.f32 %v1465, 1.442695
      %v1564 = vpow.pop %v1563
      %v1565 = vmul.f32 %v1466, 1.442695
      %v1566 = vpow.pop %v1565
      %v1567 = vmul.f32 %v1467, 1.442695
      %v1568 = vpow.pop %v1567
      %v1569 = vmul.f32 %v1468, 1.442695
      %v1570 = vpow.pop %v1569
      %v1571 = vmul.f32 %v1469, 1.442695
      %v1572 = vpow.pop %v1571
      %v1573 = vmul.f32 %v1470, 1.442695
      %v1574 = vpow.pop %v1573
      %v1575 = vmul.f32 %v1471, 1.442695
      %v1576 = vpow.pop %v1575
      %v1577 = vmul.f32 %v1472, 1.442695
      %v1578 = vpow.pop %v1577
      %v1579 = vmul.f32 %v1473, 1.442695
      %v1580 = vpow.pop %v1579
      %v1581 = vmul.f32 %v1474, 1.442695
      %v1582 = vpow.pop %v1581
      %v1583 = vmul.f32 %v1475, 1.442695
      %v1584 = vpow.pop %v1583
      %v1585 = vmul.f32 %v1476, 1.442695
      %v1586 = vpow.pop %v1585
      %v1587 = vmul.f32 %v1477, 1.442695
      %v1588 = vpow.pop %v1587
      %v1589 = vmul.f32 %v1478, 1.442695
      %v1590 = vpow.pop %v1589
      %v1591 = vmul.f32 %v1479, 1.442695
      %v1592 = vpow.pop %v1591
      %v1593 = vmul.f32 %v1480, 1.442695
      %v1594 = vpow.pop %v1593
      %v1595 = vmul.f32 %v1481, 1.442695
      %v1596 = vpow.pop %v1595
      %v1597 = vmul.f32 %v1482, 1.442695
      %v1598 = vpow.pop %v1597
      %v1599 = vmul.f32 %v1483, 1.442695
      %v1600 = vpow.pop %v1599
      %v1601 = vmul.f32 %v1484, 1.442695
      %v1602 = vpow.pop %v1601
      %v1603 = vmul.f32 %v1485, 1.442695
      %v1604 = vpow.pop %v1603
      %v1605 = vmul.f32 %v1486, 1.442695
      %v1606 = vpow.pop %v1605
      %v1607 = vmul.f32 %v1487, 1.442695
      %v1608 = vpow.pop %v1607
      %v1609 = vmul.f32 %v1488, 1.442695
      %v1610 = vpow.pop %v1609
      %v1611 = vmul.f32 %v1489, 1.442695
      %v1612 = vpow.pop %v1611
      %v1613 = vmul.f32 %v1490, 1.442695
      %v1614 = vpow.pop %v1613
      %v1615 = vmul.f32 %v1491, 1.442695
      %v1616 = vpow.pop %v1615
      %v1617 = vmul.f32 %v1492, 1.442695
      %v1618 = vpow.pop %v1617
      %v1619 = vmul.f32 %v1493, 1.442695
      %v1620 = vpow.pop %v1619
      %v1621 = vmul.f32 %v1494, 1.442695
      %v1622 = vpow.pop %v1621
      %v1623 = vadd.f32 %v1496, %v1498
      %1624 = vadd.xlane.f32.xlu0 %v1623
      %v1625 = vpop.xlane.xlu0 %1624
      %v1626 = vadd.f32 %v1500, %v1502
      %1627 = vadd.xlane.f32.xlu0 %v1626
      %v1628 = vpop.xlane.xlu0 %1627
      %v1629 = vadd.f32 %v1504, %v1506
      %1630 = vadd.xlane.f32.xlu0 %v1629
      %v1631 = vpop.xlane.xlu0 %1630
      %v1632 = vadd.f32 %v1508, %v1510
      %1633 = vadd.xlane.f32.xlu0 %v1632
      %v1634 = vpop.xlane.xlu0 %1633
      %v1635 = vadd.f32 %v1512, %v1514
      %1636 = vadd.xlane.f32.xlu0 %v1635
      %v1637 = vpop.xlane.xlu0 %1636
      %v1638 = vadd.f32 %v1516, %v1518
      %1639 = vadd.xlane.f32.xlu0 %v1638
      %v1640 = vpop.xlane.xlu0 %1639
      %v1641 = vadd.f32 %v1520, %v1522
      %1642 = vadd.xlane.f32.xlu0 %v1641
      %v1643 = vpop.xlane.xlu0 %1642
      %v1644 = vadd.f32 %v1524, %v1526
      %1645 = vadd.xlane.f32.xlu0 %v1644
      %v1646 = vpop.xlane.xlu0 %1645
      %v1647 = vadd.f32 %v1528, %v1530
      %1648 = vadd.xlane.f32.xlu0 %v1647
      %v1649 = vpop.xlane.xlu0 %1648
      %v1650 = vadd.f32 %v1532, %v1534
      %1651 = vadd.xlane.f32.xlu0 %v1650
      %v1652 = vpop.xlane.xlu0 %1651
      %v1653 = vadd.f32 %v1536, %v1538
      %1654 = vadd.xlane.f32.xlu0 %v1653
      %v1655 = vpop.xlane.xlu0 %1654
      %v1656 = vadd.f32 %v1540, %v1542
      %1657 = vadd.xlane.f32.xlu0 %v1656
      %v1658 = vpop.xlane.xlu0 %1657
      %v1659 = vadd.f32 %v1544, %v1546
      %1660 = vadd.xlane.f32.xlu0 %v1659
      %v1661 = vpop.xlane.xlu0 %1660
      %v1662 = vadd.f32 %v1548, %v1550
      %1663 = vadd.xlane.f32.xlu0 %v1662
      %v1664 = vpop.xlane.xlu0 %1663
      %v1665 = vadd.f32 %v1552, %v1554
      %1666 = vadd.xlane.f32.xlu0 %v1665
      %v1667 = vpop.xlane.xlu0 %1666
      %v1668 = vadd.f32 %v1556, %v1558
      %1669 = vadd.xlane.f32.xlu0 %v1668
      %v1670 = vpop.xlane.xlu0 %1669
      %v1671 = vadd.f32 %v1560, %v1562
      %1672 = vadd.xlane.f32.xlu0 %v1671
      %v1673 = vpop.xlane.xlu0 %1672
      %v1674 = vadd.f32 %v1564, %v1566
      %1675 = vadd.xlane.f32.xlu0 %v1674
      %v1676 = vpop.xlane.xlu0 %1675
      %v1677 = vadd.f32 %v1568, %v1570
      %1678 = vadd.xlane.f32.xlu0 %v1677
      %v1679 = vpop.xlane.xlu0 %1678
      %v1680 = vadd.f32 %v1572, %v1574
      %1681 = vadd.xlane.f32.xlu0 %v1680
      %v1682 = vpop.xlane.xlu0 %1681
      %v1683 = vadd.f32 %v1576, %v1578
      %1684 = vadd.xlane.f32.xlu0 %v1683
      %v1685 = vpop.xlane.xlu0 %1684
      %v1686 = vadd.f32 %v1580, %v1582
      %1687 = vadd.xlane.f32.xlu0 %v1686
      %v1688 = vpop.xlane.xlu0 %1687
      %v1689 = vadd.f32 %v1584, %v1586
      %1690 = vadd.xlane.f32.xlu0 %v1689
      %v1691 = vpop.xlane.xlu0 %1690
      %v1692 = vadd.f32 %v1588, %v1590
      %1693 = vadd.xlane.f32.xlu0 %v1692
      %v1694 = vpop.xlane.xlu0 %1693
      %v1695 = vadd.f32 %v1592, %v1594
      %1696 = vadd.xlane.f32.xlu0 %v1695
      %v1697 = vpop.xlane.xlu0 %1696
      %v1698 = vadd.f32 %v1596, %v1598
      %1699 = vadd.xlane.f32.xlu0 %v1698
      %v1700 = vpop.xlane.xlu0 %1699
      %v1701 = vadd.f32 %v1600, %v1602
      %1702 = vadd.xlane.f32.xlu0 %v1701
      %v1703 = vpop.xlane.xlu0 %1702
      %v1704 = vadd.f32 %v1604, %v1606
      %1705 = vadd.xlane.f32.xlu0 %v1704
      %v1706 = vpop.xlane.xlu0 %1705
      %v1707 = vadd.f32 %v1608, %v1610
      %1708 = vadd.xlane.f32.xlu0 %v1707
      %v1709 = vpop.xlane.xlu0 %1708
      %v1710 = vadd.f32 %v1612, %v1614
      %1711 = vadd.xlane.f32.xlu0 %v1710
      %v1712 = vpop.xlane.xlu0 %1711
      %v1713 = vadd.f32 %v1616, %v1618
      %1714 = vadd.xlane.f32.xlu0 %v1713
      %v1715 = vpop.xlane.xlu0 %1714
      %v1716 = vadd.f32 %v1620, %v1622
      %1717 = vadd.xlane.f32.xlu0 %v1716
      %v1718 = vpop.xlane.xlu0 %1717
      %v1719 = vpack.c.bf16 %v1500, %v1496
      %v1720 = vpack.c.bf16 %v1502, %v1498
      %v1721 = vpack.c.bf16 %v1508, %v1504
      %v1722 = vpack.c.bf16 %v1510, %v1506
      %v1723 = vpack.c.bf16 %v1516, %v1512
      %v1724 = vpack.c.bf16 %v1518, %v1514
      %v1725 = vpack.c.bf16 %v1524, %v1520
      %v1726 = vpack.c.bf16 %v1526, %v1522
      %v1727 = vpack.c.bf16 %v1532, %v1528
      %v1728 = vpack.c.bf16 %v1534, %v1530
      %v1729 = vpack.c.bf16 %v1540, %v1536
      %v1730 = vpack.c.bf16 %v1542, %v1538
      %v1731 = vpack.c.bf16 %v1548, %v1544
      %v1732 = vpack.c.bf16 %v1550, %v1546
      %v1733 = vpack.c.bf16 %v1556, %v1552
      %v1734 = vpack.c.bf16 %v1558, %v1554
      %v1735 = vpack.c.bf16 %v1564, %v1560
      %v1736 = vpack.c.bf16 %v1566, %v1562
      %v1737 = vpack.c.bf16 %v1572, %v1568
      %v1738 = vpack.c.bf16 %v1574, %v1570
      %v1739 = vpack.c.bf16 %v1580, %v1576
      %v1740 = vpack.c.bf16 %v1582, %v1578
      %v1741 = vpack.c.bf16 %v1588, %v1584
      %v1742 = vpack.c.bf16 %v1590, %v1586
      %v1743 = vpack.c.bf16 %v1596, %v1592
      %v1744 = vpack.c.bf16 %v1598, %v1594
      %v1745 = vpack.c.bf16 %v1604, %v1600
      %v1746 = vpack.c.bf16 %v1606, %v1602
      %v1747 = vpack.c.bf16 %v1612, %v1608
      %v1748 = vpack.c.bf16 %v1614, %v1610
      %v1749 = vpack.c.bf16 %v1620, %v1616
      %v1750 = vpack.c.bf16 %v1622, %v1618
      %v1751 = vld [vmem:[#allocation3] sm:$0xff]
      %v1752 = vld [vmem:[#allocation3 + $0x8] sm:$0xff]
      %v1753 = vld [vmem:[#allocation3 + $0x10] sm:$0xff]
      %v1754 = vld [vmem:[#allocation3 + $0x18] sm:$0xff]
      %v1755 = vld [vmem:[#allocation3 + $0x20] sm:$0xff]
      %v1756 = vld [vmem:[#allocation3 + $0x28] sm:$0xff]
      %v1757 = vld [vmem:[#allocation3 + $0x30] sm:$0xff]
      %v1758 = vld [vmem:[#allocation3 + $0x38] sm:$0xff]
      %v1759 = vld [vmem:[#allocation3 + $0x40] sm:$0xff]
      %v1760 = vld [vmem:[#allocation3 + $0x48] sm:$0xff]
      %v1761 = vld [vmem:[#allocation3 + $0x50] sm:$0xff]
      %v1762 = vld [vmem:[#allocation3 + $0x58] sm:$0xff]
      %v1763 = vld [vmem:[#allocation3 + $0x60] sm:$0xff]
      %v1764 = vld [vmem:[#allocation3 + $0x68] sm:$0xff]
      %v1765 = vld [vmem:[#allocation3 + $0x70] sm:$0xff]
      %v1766 = vld [vmem:[#allocation3 + $0x78] sm:$0xff]
      %v1767 = vld [vmem:[#allocation3 + $0x80] sm:$0xff]
      %v1768 = vld [vmem:[#allocation3 + $0x88] sm:$0xff]
      %v1769 = vld [vmem:[#allocation3 + $0x90] sm:$0xff]
      %v1770 = vld [vmem:[#allocation3 + $0x98] sm:$0xff]
      %v1771 = vld [vmem:[#allocation3 + $0xa0] sm:$0xff]
      %v1772 = vld [vmem:[#allocation3 + $0xa8] sm:$0xff]
      %v1773 = vld [vmem:[#allocation3 + $0xb0] sm:$0xff]
      %v1774 = vld [vmem:[#allocation3 + $0xb8] sm:$0xff]
      %v1775 = vld [vmem:[#allocation3 + $0xc0] sm:$0xff]
      %v1776 = vld [vmem:[#allocation3 + $0xc8] sm:$0xff]
      %v1777 = vld [vmem:[#allocation3 + $0xd0] sm:$0xff]
      %v1778 = vld [vmem:[#allocation3 + $0xd8] sm:$0xff]
      %v1779 = vld [vmem:[#allocation3 + $0xe0] sm:$0xff]
      %v1780 = vld [vmem:[#allocation3 + $0xe8] sm:$0xff]
      %v1781 = vld [vmem:[#allocation3 + $0xf0] sm:$0xff]
      %v1782 = vld [vmem:[#allocation3 + $0xf8] sm:$0xff]
      %v1783 = vmul.f32 %v1208, %v1751
      %v1784 = vmul.f32 %v1210, %v1752
      %v1785 = vmul.f32 %v1212, %v1753
      %v1786 = vmul.f32 %v1214, %v1754
      %v1787 = vmul.f32 %v1216, %v1755
      %v1788 = vmul.f32 %v1218, %v1756
      %v1789 = vmul.f32 %v1220, %v1757
      %v1790 = vmul.f32 %v1222, %v1758
      %v1791 = vmul.f32 %v1224, %v1759
      %v1792 = vmul.f32 %v1226, %v1760
      %v1793 = vmul.f32 %v1228, %v1761
      %v1794 = vmul.f32 %v1230, %v1762
      %v1795 = vmul.f32 %v1232, %v1763
      %v1796 = vmul.f32 %v1234, %v1764
      %v1797 = vmul.f32 %v1236, %v1765
      %v1798 = vmul.f32 %v1238, %v1766
      %v1799 = vmul.f32 %v1240, %v1767
      %v1800 = vmul.f32 %v1242, %v1768
      %v1801 = vmul.f32 %v1244, %v1769
      %v1802 = vmul.f32 %v1246, %v1770
      %v1803 = vmul.f32 %v1248, %v1771
      %v1804 = vmul.f32 %v1250, %v1772
      %v1805 = vmul.f32 %v1252, %v1773
      %v1806 = vmul.f32 %v1254, %v1774
      %v1807 = vmul.f32 %v1256, %v1775
      %v1808 = vmul.f32 %v1258, %v1776
      %v1809 = vmul.f32 %v1260, %v1777
      %v1810 = vmul.f32 %v1262, %v1778
      %v1811 = vmul.f32 %v1264, %v1779
      %v1812 = vmul.f32 %v1266, %v1780
      %v1813 = vmul.f32 %v1268, %v1781
      %v1814 = vmul.f32 %v1270, %v1782
      %v1815 = vadd.f32 %v1783, %v1625
      %v1816 = vadd.f32 %v1784, %v1628
      %v1817 = vadd.f32 %v1785, %v1631
      %v1818 = vadd.f32 %v1786, %v1634
      %v1819 = vadd.f32 %v1787, %v1637
      %v1820 = vadd.f32 %v1788, %v1640
      %v1821 = vadd.f32 %v1789, %v1643
      %v1822 = vadd.f32 %v1790, %v1646
      %v1823 = vadd.f32 %v1791, %v1649
      %v1824 = vadd.f32 %v1792, %v1652
      %v1825 = vadd.f32 %v1793, %v1655
      %v1826 = vadd.f32 %v1794, %v1658
      %v1827 = vadd.f32 %v1795, %v1661
      %v1828 = vadd.f32 %v1796, %v1664
      %v1829 = vadd.f32 %v1797, %v1667
      %v1830 = vadd.f32 %v1798, %v1670
      %v1831 = vadd.f32 %v1799, %v1673
      %v1832 = vadd.f32 %v1800, %v1676
      %v1833 = vadd.f32 %v1801, %v1679
      %v1834 = vadd.f32 %v1802, %v1682
      %v1835 = vadd.f32 %v1803, %v1685
      %v1836 = vadd.f32 %v1804, %v1688
      %v1837 = vadd.f32 %v1805, %v1691
      %v1838 = vadd.f32 %v1806, %v1694
      %v1839 = vadd.f32 %v1807, %v1697
      %v1840 = vadd.f32 %v1808, %v1700
      %v1841 = vadd.f32 %v1809, %v1703
      %v1842 = vadd.f32 %v1810, %v1706
      %v1843 = vadd.f32 %v1811, %v1709
      %v1844 = vadd.f32 %v1812, %v1712
      %v1845 = vadd.f32 %v1813, %v1715
      %v1846 = vadd.f32 %v1814, %v1718
      %vm1847 = vcmask 7168
      %1848 = vst.msk [vmem:[#allocation3] sm:$0xff] %vm1847, %v1815
      %1849 = vst.msk [vmem:[#allocation3 + $0x8] sm:$0xff] %vm1847, %v1816
      %1850 = vst.msk [vmem:[#allocation3 + $0x10] sm:$0xff] %vm1847, %v1817
      %1851 = vst.msk [vmem:[#allocation3 + $0x18] sm:$0xff] %vm1847, %v1818
      %1852 = vst.msk [vmem:[#allocation3 + $0x20] sm:$0xff] %vm1847, %v1819
      %1853 = vst.msk [vmem:[#allocation3 + $0x28] sm:$0xff] %vm1847, %v1820
      %1854 = vst.msk [vmem:[#allocation3 + $0x30] sm:$0xff] %vm1847, %v1821
      %1855 = vst.msk [vmem:[#allocation3 + $0x38] sm:$0xff] %vm1847, %v1822
      %1856 = vst.msk [vmem:[#allocation3 + $0x40] sm:$0xff] %vm1847, %v1823
      %1857 = vst.msk [vmem:[#allocation3 + $0x48] sm:$0xff] %vm1847, %v1824
      %1858 = vst.msk [vmem:[#allocation3 + $0x50] sm:$0xff] %vm1847, %v1825
      %1859 = vst.msk [vmem:[#allocation3 + $0x58] sm:$0xff] %vm1847, %v1826
      %1860 = vst.msk [vmem:[#allocation3 + $0x60] sm:$0xff] %vm1847, %v1827
      %1861 = vst.msk [vmem:[#allocation3 + $0x68] sm:$0xff] %vm1847, %v1828
      %1862 = vst.msk [vmem:[#allocation3 + $0x70] sm:$0xff] %vm1847, %v1829
      %1863 = vst.msk [vmem:[#allocation3 + $0x78] sm:$0xff] %vm1847, %v1830
      %1864 = vst.msk [vmem:[#allocation3 + $0x80] sm:$0xff] %vm1847, %v1831
      %1865 = vst.msk [vmem:[#allocation3 + $0x88] sm:$0xff] %vm1847, %v1832
      %1866 = vst.msk [vmem:[#allocation3 + $0x90] sm:$0xff] %vm1847, %v1833
      %1867 = vst.msk [vmem:[#allocation3 + $0x98] sm:$0xff] %vm1847, %v1834
      %1868 = vst.msk [vmem:[#allocation3 + $0xa0] sm:$0xff] %vm1847, %v1835
      %1869 = vst.msk [vmem:[#allocation3 + $0xa8] sm:$0xff] %vm1847, %v1836
      %1870 = vst.msk [vmem:[#allocation3 + $0xb0] sm:$0xff] %vm1847, %v1837
      %1871 = vst.msk [vmem:[#allocation3 + $0xb8] sm:$0xff] %vm1847, %v1838
      %1872 = vst.msk [vmem:[#allocation3 + $0xc0] sm:$0xff] %vm1847, %v1839
      %1873 = vst.msk [vmem:[#allocation3 + $0xc8] sm:$0xff] %vm1847, %v1840
      %1874 = vst.msk [vmem:[#allocation3 + $0xd0] sm:$0xff] %vm1847, %v1841
      %1875 = vst.msk [vmem:[#allocation3 + $0xd8] sm:$0xff] %vm1847, %v1842
      %1876 = vst.msk [vmem:[#allocation3 + $0xe0] sm:$0xff] %vm1847, %v1843
      %1877 = vst.msk [vmem:[#allocation3 + $0xe8] sm:$0xff] %vm1847, %v1844
      %1878 = vst.msk [vmem:[#allocation3 + $0xf0] sm:$0xff] %vm1847, %v1845
      %1879 = vst.msk [vmem:[#allocation3 + $0xf8] sm:$0xff] %vm1847, %v1846
      %v1880 = vld [vmem:[#allocation4] sm:$0xff]
      %v1881 = vld [vmem:[#allocation4 + $0x8] sm:$0xff]
      %v1882 = vld [vmem:[#allocation4 + $0x10] sm:$0xff]
      %v1883 = vld [vmem:[#allocation4 + $0x18] sm:$0xff]
      %v1884 = vld [vmem:[#allocation4 + $0x20] sm:$0xff]
      %v1885 = vld [vmem:[#allocation4 + $0x28] sm:$0xff]
      %v1886 = vld [vmem:[#allocation4 + $0x30] sm:$0xff]
      %v1887 = vld [vmem:[#allocation4 + $0x38] sm:$0xff]
      %v1888 = vld [vmem:[#allocation4 + $0x40] sm:$0xff]
      %v1889 = vld [vmem:[#allocation4 + $0x48] sm:$0xff]
      %v1890 = vld [vmem:[#allocation4 + $0x50] sm:$0xff]
      %v1891 = vld [vmem:[#allocation4 + $0x58] sm:$0xff]
      %v1892 = vld [vmem:[#allocation4 + $0x60] sm:$0xff]
      %v1893 = vld [vmem:[#allocation4 + $0x68] sm:$0xff]
      %v1894 = vld [vmem:[#allocation4 + $0x70] sm:$0xff]
      %v1895 = vld [vmem:[#allocation4 + $0x78] sm:$0xff]
      %v1896 = vld [vmem:[#allocation4 + $0x80] sm:$0xff]
      %v1897 = vld [vmem:[#allocation4 + $0x88] sm:$0xff]
      %v1898 = vld [vmem:[#allocation4 + $0x90] sm:$0xff]
      %v1899 = vld [vmem:[#allocation4 + $0x98] sm:$0xff]
      %v1900 = vld [vmem:[#allocation4 + $0xa0] sm:$0xff]
      %v1901 = vld [vmem:[#allocation4 + $0xa8] sm:$0xff]
      %v1902 = vld [vmem:[#allocation4 + $0xb0] sm:$0xff]
      %v1903 = vld [vmem:[#allocation4 + $0xb8] sm:$0xff]
      %v1904 = vld [vmem:[#allocation4 + $0xc0] sm:$0xff]
      %v1905 = vld [vmem:[#allocation4 + $0xc8] sm:$0xff]
      %v1906 = vld [vmem:[#allocation4 + $0xd0] sm:$0xff]
      %v1907 = vld [vmem:[#allocation4 + $0xd8] sm:$0xff]
      %v1908 = vld [vmem:[#allocation4 + $0xe0] sm:$0xff]
      %v1909 = vld [vmem:[#allocation4 + $0xe8] sm:$0xff]
      %v1910 = vld [vmem:[#allocation4 + $0xf0] sm:$0xff]
      %v1911 = vld [vmem:[#allocation4 + $0xf8] sm:$0xff]
      %1913 = vset.pattern.permute.xlu0 0
      %1914 = vperm.xlu0 %1913, %v1208
      %v1915 = vpop.permute.xlu0 %1914
      %1918 = vset.pattern.permute.xlu0 0
      %1919 = vperm.xlu0 %1918, %v1210
      %v1920 = vpop.permute.xlu0 %1919
      %1923 = vset.pattern.permute.xlu0 0
      %1924 = vperm.xlu0 %1923, %v1212
      %v1925 = vpop.permute.xlu0 %1924
      %1928 = vset.pattern.permute.xlu0 0
      %1929 = vperm.xlu0 %1928, %v1214
      %v1930 = vpop.permute.xlu0 %1929
      %1933 = vset.pattern.permute.xlu0 0
      %1934 = vperm.xlu0 %1933, %v1216
      %v1935 = vpop.permute.xlu0 %1934
      %1938 = vset.pattern.permute.xlu0 0
      %1939 = vperm.xlu0 %1938, %v1218
      %v1940 = vpop.permute.xlu0 %1939
      %1943 = vset.pattern.permute.xlu0 0
      %1944 = vperm.xlu0 %1943, %v1220
      %v1945 = vpop.permute.xlu0 %1944
      %1948 = vset.pattern.permute.xlu0 0
      %1949 = vperm.xlu0 %1948, %v1222
      %v1950 = vpop.permute.xlu0 %1949
      %1953 = vset.pattern.permute.xlu0 0
      %1954 = vperm.xlu0 %1953, %v1224
      %v1955 = vpop.permute.xlu0 %1954
      %1958 = vset.pattern.permute.xlu0 0
      %1959 = vperm.xlu0 %1958, %v1226
      %v1960 = vpop.permute.xlu0 %1959
      %1963 = vset.pattern.permute.xlu0 0
      %1964 = vperm.xlu0 %1963, %v1228
      %v1965 = vpop.permute.xlu0 %1964
      %1968 = vset.pattern.permute.xlu0 0
      %1969 = vperm.xlu0 %1968, %v1230
      %v1970 = vpop.permute.xlu0 %1969
      %1973 = vset.pattern.permute.xlu0 0
      %1974 = vperm.xlu0 %1973, %v1232
      %v1975 = vpop.permute.xlu0 %1974
      %1978 = vset.pattern.permute.xlu0 0
      %1979 = vperm.xlu0 %1978, %v1234
      %v1980 = vpop.permute.xlu0 %1979
      %1983 = vset.pattern.permute.xlu0 0
      %1984 = vperm.xlu0 %1983, %v1236
      %v1985 = vpop.permute.xlu0 %1984
      %1988 = vset.pattern.permute.xlu0 0
      %1989 = vperm.xlu0 %1988, %v1238
      %v1990 = vpop.permute.xlu0 %1989
      %1993 = vset.pattern.permute.xlu0 0
      %1994 = vperm.xlu0 %1993, %v1240
      %v1995 = vpop.permute.xlu0 %1994
      %1998 = vset.pattern.permute.xlu0 0
      %1999 = vperm.xlu0 %1998, %v1242
      %v2000 = vpop.permute.xlu0 %1999
      %2003 = vset.pattern.permute.xlu0 0
      %2004 = vperm.xlu0 %2003, %v1244
      %v2005 = vpop.permute.xlu0 %2004
      %2008 = vset.pattern.permute.xlu0 0
      %2009 = vperm.xlu0 %2008, %v1246
      %v2010 = vpop.permute.xlu0 %2009
      %2013 = vset.pattern.permute.xlu0 0
      %2014 = vperm.xlu0 %2013, %v1248
      %v2015 = vpop.permute.xlu0 %2014
      %2018 = vset.pattern.permute.xlu0 0
      %2019 = vperm.xlu0 %2018, %v1250
      %v2020 = vpop.permute.xlu0 %2019
      %2023 = vset.pattern.permute.xlu0 0
      %2024 = vperm.xlu0 %2023, %v1252
      %v2025 = vpop.permute.xlu0 %2024
      %2028 = vset.pattern.permute.xlu0 0
      %2029 = vperm.xlu0 %2028, %v1254
      %v2030 = vpop.permute.xlu0 %2029
      %2033 = vset.pattern.permute.xlu0 0
      %2034 = vperm.xlu0 %2033, %v1256
      %v2035 = vpop.permute.xlu0 %2034
      %2038 = vset.pattern.permute.xlu0 0
      %2039 = vperm.xlu0 %2038, %v1258
      %v2040 = vpop.permute.xlu0 %2039
      %2043 = vset.pattern.permute.xlu0 0
      %2044 = vperm.xlu0 %2043, %v1260
      %v2045 = vpop.permute.xlu0 %2044
      %2048 = vset.pattern.permute.xlu0 0
      %2049 = vperm.xlu0 %2048, %v1262
      %v2050 = vpop.permute.xlu0 %2049
      %2053 = vset.pattern.permute.xlu0 0
      %2054 = vperm.xlu0 %2053, %v1264
      %v2055 = vpop.permute.xlu0 %2054
      %2058 = vset.pattern.permute.xlu0 0
      %2059 = vperm.xlu0 %2058, %v1266
      %v2060 = vpop.permute.xlu0 %2059
      %2063 = vset.pattern.permute.xlu0 0
      %2064 = vperm.xlu0 %2063, %v1268
      %v2065 = vpop.permute.xlu0 %2064
      %2068 = vset.pattern.permute.xlu0 0
      %2069 = vperm.xlu0 %2068, %v1270
      %v2070 = vpop.permute.xlu0 %2069
      %v2072 = vmul.f32 %v1915, %v1880
      %v2073 = vmul.f32 %v1920, %v1881
      %v2074 = vmul.f32 %v1925, %v1882
      %v2075 = vmul.f32 %v1930, %v1883
      %v2076 = vmul.f32 %v1935, %v1884
      %v2077 = vmul.f32 %v1940, %v1885
      %v2078 = vmul.f32 %v1945, %v1886
      %v2079 = vmul.f32 %v1950, %v1887
      %v2080 = vmul.f32 %v1955, %v1888
      %v2081 = vmul.f32 %v1960, %v1889
      %v2082 = vmul.f32 %v1965, %v1890
      %v2083 = vmul.f32 %v1970, %v1891
      %v2084 = vmul.f32 %v1975, %v1892
      %v2085 = vmul.f32 %v1980, %v1893
      %v2086 = vmul.f32 %v1985, %v1894
      %v2087 = vmul.f32 %v1990, %v1895
      %v2088 = vmul.f32 %v1995, %v1896
      %v2089 = vmul.f32 %v2000, %v1897
      %v2090 = vmul.f32 %v2005, %v1898
      %v2091 = vmul.f32 %v2010, %v1899
      %v2092 = vmul.f32 %v2015, %v1900
      %v2093 = vmul.f32 %v2020, %v1901
      %v2094 = vmul.f32 %v2025, %v1902
      %v2095 = vmul.f32 %v2030, %v1903
      %v2096 = vmul.f32 %v2035, %v1904
      %v2097 = vmul.f32 %v2040, %v1905
      %v2098 = vmul.f32 %v2045, %v1906
      %v2099 = vmul.f32 %v2050, %v1907
      %v2100 = vmul.f32 %v2055, %v1908
      %v2101 = vmul.f32 %v2060, %v1909
      %v2102 = vmul.f32 %v2065, %v1910
      %v2103 = vmul.f32 %v2070, %v1911
      %v2104 = vld [vmem:[%s425] sm:$0xf]
      %v2105 = vld [vmem:[%s425 + $0x4] sm:$0xf]
      %v2106 = vld [vmem:[%s425 + $0x8] sm:$0xf]
      %v2107 = vld [vmem:[%s425 + $0xc] sm:$0xf]
      %v2108 = vld [vmem:[%s425 + $0x10] sm:$0xf]
      %v2109 = vld [vmem:[%s425 + $0x14] sm:$0xf]
      %v2110 = vld [vmem:[%s425 + $0x18] sm:$0xf]
      %v2111 = vld [vmem:[%s425 + $0x1c] sm:$0xf]
      %v2112 = vld [vmem:[%s425 + $0x20] sm:$0xf]
      %v2113 = vld [vmem:[%s425 + $0x24] sm:$0xf]
      %v2114 = vld [vmem:[%s425 + $0x28] sm:$0xf]
      %v2115 = vld [vmem:[%s425 + $0x2c] sm:$0xf]
      %v2116 = vld [vmem:[%s425 + $0x30] sm:$0xf]
      %v2117 = vld [vmem:[%s425 + $0x34] sm:$0xf]
      %v2118 = vld [vmem:[%s425 + $0x38] sm:$0xf]
      %v2119 = vld [vmem:[%s425 + $0x3c] sm:$0xf]
      %v2120 = vld [vmem:[%s425 + $0x40] sm:$0xf]
      %v2121 = vld [vmem:[%s425 + $0x44] sm:$0xf]
      %v2122 = vld [vmem:[%s425 + $0x48] sm:$0xf]
      %v2123 = vld [vmem:[%s425 + $0x4c] sm:$0xf]
      %v2124 = vld [vmem:[%s425 + $0x50] sm:$0xf]
      %v2125 = vld [vmem:[%s425 + $0x54] sm:$0xf]
      %v2126 = vld [vmem:[%s425 + $0x58] sm:$0xf]
      %v2127 = vld [vmem:[%s425 + $0x5c] sm:$0xf]
      %v2128 = vld [vmem:[%s425 + $0x60] sm:$0xf]
      %v2129 = vld [vmem:[%s425 + $0x64] sm:$0xf]
      %v2130 = vld [vmem:[%s425 + $0x68] sm:$0xf]
      %v2131 = vld [vmem:[%s425 + $0x6c] sm:$0xf]
      %v2132 = vld [vmem:[%s425 + $0x70] sm:$0xf]
      %v2133 = vld [vmem:[%s425 + $0x74] sm:$0xf]
      %v2134 = vld [vmem:[%s425 + $0x78] sm:$0xf]
      %v2135 = vld [vmem:[%s425 + $0x7c] sm:$0xf]
      %v2168 = vunpack.c.l.b16 %v2104
      %v2169 = vunpack.c.l.b16 %v2105
      %v2170 = vunpack.c.l.b16 %v2106
      %v2171 = vunpack.c.l.b16 %v2107
      %v2172 = vunpack.c.l.b16 %v2108
      %v2173 = vunpack.c.l.b16 %v2109
      %v2174 = vunpack.c.l.b16 %v2110
      %v2175 = vunpack.c.l.b16 %v2111
      %v2176 = vunpack.c.l.b16 %v2112
      %v2177 = vunpack.c.l.b16 %v2113
      %v2178 = vunpack.c.l.b16 %v2114
      %v2179 = vunpack.c.l.b16 %v2115
      %v2180 = vunpack.c.l.b16 %v2116
      %v2181 = vunpack.c.l.b16 %v2117
      %v2182 = vunpack.c.l.b16 %v2118
      %v2183 = vunpack.c.l.b16 %v2119
      %v2184 = vunpack.c.l.b16 %v2120
      %v2185 = vunpack.c.l.b16 %v2121
      %v2186 = vunpack.c.l.b16 %v2122
      %v2187 = vunpack.c.l.b16 %v2123
      %v2188 = vunpack.c.l.b16 %v2124
      %v2189 = vunpack.c.l.b16 %v2125
      %v2190 = vunpack.c.l.b16 %v2126
      %v2191 = vunpack.c.l.b16 %v2127
      %v2192 = vunpack.c.l.b16 %v2128
      %v2193 = vunpack.c.l.b16 %v2129
      %v2194 = vunpack.c.l.b16 %v2130
      %v2195 = vunpack.c.l.b16 %v2131
      %v2196 = vunpack.c.l.b16 %v2132
      %v2197 = vunpack.c.l.b16 %v2133
      %v2198 = vunpack.c.l.b16 %v2134
      %v2199 = vunpack.c.l.b16 %v2135
      %v2200 = vpack.c.b16 %v2169, %v2168
      %v2201 = vpack.c.b16 %v2171, %v2170
      %v2202 = vpack.c.b16 %v2173, %v2172
      %v2203 = vpack.c.b16 %v2175, %v2174
      %v2204 = vpack.c.b16 %v2177, %v2176
      %v2205 = vpack.c.b16 %v2179, %v2178
      %v2206 = vpack.c.b16 %v2181, %v2180
      %v2207 = vpack.c.b16 %v2183, %v2182
      %v2208 = vpack.c.b16 %v2185, %v2184
      %v2209 = vpack.c.b16 %v2187, %v2186
      %v2210 = vpack.c.b16 %v2189, %v2188
      %v2211 = vpack.c.b16 %v2191, %v2190
      %v2212 = vpack.c.b16 %v2193, %v2192
      %v2213 = vpack.c.b16 %v2195, %v2194
      %v2214 = vpack.c.b16 %v2197, %v2196
      %v2215 = vpack.c.b16 %v2199, %v2198
      %2232 = vmatprep.subr.bf16.mxu0 0
      %2233 = vmatpush1.bf16.msra.mxu0 %v2200
      %2234 = vmatprep.subr.bf16.mxu0 0
      %2235 = vmatpush1.bf16.msra.mxu0 %v2201
      %2236 = vmatprep.subr.bf16.mxu0 0
      %2237 = vmatpush1.bf16.msra.mxu0 %v2202
      %2238 = vmatprep.subr.bf16.mxu0 0
      %2239 = vmatpush1.bf16.msra.mxu0 %v2203
      %2240 = vmatprep.subr.bf16.mxu0 0
      %2241 = vmatpush1.bf16.msra.mxu0 %v2204
      %2242 = vmatprep.subr.bf16.mxu0 0
      %2243 = vmatpush1.bf16.msra.mxu0 %v2205
      %2244 = vmatprep.subr.bf16.mxu0 0
      %2245 = vmatpush1.bf16.msra.mxu0 %v2206
      %2246 = vmatprep.subr.bf16.mxu0 0
      %2247 = vmatpush1.bf16.msra.mxu0 %v2207
      %2248 = vmatprep.subr.bf16.mxu0 0
      %2249 = vmatpush1.bf16.msra.mxu0 %v2208
      %2250 = vmatprep.subr.bf16.mxu0 0
      %2251 = vmatpush1.bf16.msra.mxu0 %v2209
      %2252 = vmatprep.subr.bf16.mxu0 0
      %2253 = vmatpush1.bf16.msra.mxu0 %v2210
      %2254 = vmatprep.subr.bf16.mxu0 0
      %2255 = vmatpush1.bf16.msra.mxu0 %v2211
      %2256 = vmatprep.subr.bf16.mxu0 0
      %2257 = vmatpush1.bf16.msra.mxu0 %v2212
      %2258 = vmatprep.subr.bf16.mxu0 0
      %2259 = vmatpush1.bf16.msra.mxu0 %v2213
      %2260 = vmatprep.subr.bf16.mxu0 0
      %2261 = vmatpush1.bf16.msra.mxu0 %v2214
      %2262 = vmatprep.subr.bf16.mxu0 0
      %2263 = vmatpush1.bf16.msra.mxu0 %v2215
      %2264 = vmatprep.mubr.bf16.mxu0 %v1720
      %2265 = vmatmul.mubr.bf16.gmra.mrb[0].mxu0 %v1719
      %v2266 = vpop.f32.mrb[0].mxu0
      %v2267 = vadd.f32 0.0, %v2266
      %v2268 = vpop.f32.mrb[0].mxu0
      %v2269 = vpop.f32.mrb[0].mxu0
      %v2270 = vadd.f32 0.0, %v2269
      %v2271 = vpop.f32.mrb[0].mxu0
      %2272 = vmatprep.mubr.bf16.mxu0 %v1722
      %2273 = vmatmul.mubr.bf16.gmra.mrb[0].mxu0 %v1721
      %v2274 = vpop.f32.mrb[0].mxu0
      %v2275 = vadd.f32 0.0, %v2274
      %v2276 = vpop.f32.mrb[0].mxu0
      %v2277 = vpop.f32.mrb[0].mxu0
      %v2278 = vadd.f32 0.0, %v2277
      %v2279 = vpop.f32.mrb[0].mxu0
      %2280 = vmatprep.mubr.bf16.mxu0 %v1724
      %2281 = vmatmul.mubr.bf16.gmra.mrb[0].mxu0 %v1723
      %v2282 = vpop.f32.mrb[0].mxu0
      %v2283 = vadd.f32 0.0, %v2282
      %v2284 = vpop.f32.mrb[0].mxu0
      %v2285 = vpop.f32.mrb[0].mxu0
      %v2286 = vadd.f32 0.0, %v2285
      %v2287 = vpop.f32.mrb[0].mxu0
      %2288 = vmatprep.mubr.bf16.mxu0 %v1726
      %2289 = vmatmul.mubr.bf16.gmra.mrb[0].mxu0 %v1725
      %v2290 = vpop.f32.mrb[0].mxu0
      %v2291 = vadd.f32 0.0, %v2290
      %v2292 = vpop.f32.mrb[0].mxu0
      %v2293 = vpop.f32.mrb[0].mxu0
      %v2294 = vadd.f32 0.0, %v2293
      %v2295 = vpop.f32.mrb[0].mxu0
      %2296 = vmatprep.mubr.bf16.mxu0 %v1728
      %2297 = vmatmul.mubr.bf16.gmra.mrb[0].mxu0 %v1727
      %v2298 = vpop.f32.mrb[0].mxu0
      %v2299 = vadd.f32 0.0, %v2298
      %v2300 = vpop.f32.mrb[0].mxu0
      %v2301 = vpop.f32.mrb[0].mxu0
      %v2302 = vadd.f32 0.0, %v2301
      %v2303 = vpop.f32.mrb[0].mxu0
      %2304 = vmatprep.mubr.bf16.mxu0 %v1730
      %2305 = vmatmul.mubr.bf16.gmra.mrb[0].mxu0 %v1729
      %v2306 = vpop.f32.mrb[0].mxu0
      %v2307 = vadd.f32 0.0, %v2306
      %v2308 = vpop.f32.mrb[0].mxu0
      %v2309 = vpop.f32.mrb[0].mxu0
      %v2310 = vadd.f32 0.0, %v2309
      %v2311 = vpop.f32.mrb[0].mxu0
      %2312 = vmatprep.mubr.bf16.mxu0 %v1732
      %2313 = vmatmul.mubr.bf16.gmra.mrb[0].mxu0 %v1731
      %v2314 = vpop.f32.mrb[0].mxu0
      %v2315 = vadd.f32 0.0, %v2314
      %v2316 = vpop.f32.mrb[0].mxu0
      %v2317 = vpop.f32.mrb[0].mxu0
      %v2318 = vadd.f32 0.0, %v2317
      %v2319 = vpop.f32.mrb[0].mxu0
      %2320 = vmatprep.mubr.bf16.mxu0 %v1734
      %2321 = vmatmul.mubr.bf16.gmra.mrb[0].mxu0 %v1733
      %v2322 = vpop.f32.mrb[0].mxu0
      %v2323 = vadd.f32 0.0, %v2322
      %v2324 = vpop.f32.mrb[0].mxu0
      %v2325 = vpop.f32.mrb[0].mxu0
      %v2326 = vadd.f32 0.0, %v2325
      %v2327 = vpop.f32.mrb[0].mxu0
      %2328 = vmatprep.mubr.bf16.mxu0 %v1736
      %2329 = vmatmul.mubr.bf16.gmra.mrb[0].mxu0 %v1735
      %v2330 = vpop.f32.mrb[0].mxu0
      %v2331 = vadd.f32 0.0, %v2330
      %v2332 = vpop.f32.mrb[0].mxu0
      %v2333 = vpop.f32.mrb[0].mxu0
      %v2334 = vadd.f32 0.0, %v2333
      %v2335 = vpop.f32.mrb[0].mxu0
      %2336 = vmatprep.mubr.bf16.mxu0 %v1738
      %2337 = vmatmul.mubr.bf16.gmra.mrb[0].mxu0 %v1737
      %v2338 = vpop.f32.mrb[0].mxu0
      %v2339 = vadd.f32 0.0, %v2338
      %v2340 = vpop.f32.mrb[0].mxu0
      %v2341 = vpop.f32.mrb[0].mxu0
      %v2342 = vadd.f32 0.0, %v2341
      %v2343 = vpop.f32.mrb[0].mxu0
      %2344 = vmatprep.mubr.bf16.mxu0 %v1740
      %2345 = vmatmul.mubr.bf16.gmra.mrb[0].mxu0 %v1739
      %v2346 = vpop.f32.mrb[0].mxu0
      %v2347 = vadd.f32 0.0, %v2346
      %v2348 = vpop.f32.mrb[0].mxu0
      %v2349 = vpop.f32.mrb[0].mxu0
      %v2350 = vadd.f32 0.0, %v2349
      %v2351 = vpop.f32.mrb[0].mxu0
      %2352 = vmatprep.mubr.bf16.mxu0 %v1742
      %2353 = vmatmul.mubr.bf16.gmra.mrb[0].mxu0 %v1741
      %v2354 = vpop.f32.mrb[0].mxu0
      %v2355 = vadd.f32 0.0, %v2354
      %v2356 = vpop.f32.mrb[0].mxu0
      %v2357 = vpop.f32.mrb[0].mxu0
      %v2358 = vadd.f32 0.0, %v2357
      %v2359 = vpop.f32.mrb[0].mxu0
      %2360 = vmatprep.mubr.bf16.mxu0 %v1744
      %2361 = vmatmul.mubr.bf16.gmra.mrb[0].mxu0 %v1743
      %v2362 = vpop.f32.mrb[0].mxu0
      %v2363 = vadd.f32 0.0, %v2362
      %v2364 = vpop.f32.mrb[0].mxu0
      %v2365 = vpop.f32.mrb[0].mxu0
      %v2366 = vadd.f32 0.0, %v2365
      %v2367 = vpop.f32.mrb[0].mxu0
      %2368 = vmatprep.mubr.bf16.mxu0 %v1746
      %2369 = vmatmul.mubr.bf16.gmra.mrb[0].mxu0 %v1745
      %v2370 = vpop.f32.mrb[0].mxu0
      %v2371 = vadd.f32 0.0, %v2370
      %v2372 = vpop.f32.mrb[0].mxu0
      %v2373 = vpop.f32.mrb[0].mxu0
      %v2374 = vadd.f32 0.0, %v2373
      %v2375 = vpop.f32.mrb[0].mxu0
      %2376 = vmatprep.mubr.bf16.mxu0 %v1748
      %2377 = vmatmul.mubr.bf16.gmra.mrb[0].mxu0 %v1747
      %v2378 = vpop.f32.mrb[0].mxu0
      %v2379 = vadd.f32 0.0, %v2378
      %v2380 = vpop.f32.mrb[0].mxu0
      %v2381 = vpop.f32.mrb[0].mxu0
      %v2382 = vadd.f32 0.0, %v2381
      %v2383 = vpop.f32.mrb[0].mxu0
      %2384 = vmatprep.mubr.bf16.mxu0 %v1750
      %2385 = vmatmul.mubr.bf16.gmra.mrb[0].mxu0 %v1749
      %v2386 = vpop.f32.mrb[0].mxu0
      %v2387 = vadd.f32 0.0, %v2386
      %v2388 = vpop.f32.mrb[0].mxu0
      %v2389 = vpop.f32.mrb[0].mxu0
      %v2390 = vadd.f32 0.0, %v2389
      %v2391 = vpop.f32.mrb[0].mxu0
      %2392 = vdwg.mxu0
      %v2393 = vadd.f32 %v2072, %v2267
      %v2394 = vadd.f32 %v2073, %v2270
      %v2395 = vadd.f32 %v2074, %v2275
      %v2396 = vadd.f32 %v2075, %v2278
      %v2397 = vadd.f32 %v2076, %v2283
      %v2398 = vadd.f32 %v2077, %v2286
      %v2399 = vadd.f32 %v2078, %v2291
      %v2400 = vadd.f32 %v2079, %v2294
      %v2401 = vadd.f32 %v2080, %v2299
      %v2402 = vadd.f32 %v2081, %v2302
      %v2403 = vadd.f32 %v2082, %v2307
      %v2404 = vadd.f32 %v2083, %v2310
      %v2405 = vadd.f32 %v2084, %v2315
      %v2406 = vadd.f32 %v2085, %v2318
      %v2407 = vadd.f32 %v2086, %v2323
      %v2408 = vadd.f32 %v2087, %v2326
      %v2409 = vadd.f32 %v2088, %v2331
      %v2410 = vadd.f32 %v2089, %v2334
      %v2411 = vadd.f32 %v2090, %v2339
      %v2412 = vadd.f32 %v2091, %v2342
      %v2413 = vadd.f32 %v2092, %v2347
      %v2414 = vadd.f32 %v2093, %v2350
      %v2415 = vadd.f32 %v2094, %v2355
      %v2416 = vadd.f32 %v2095, %v2358
      %v2417 = vadd.f32 %v2096, %v2363
      %v2418 = vadd.f32 %v2097, %v2366
      %v2419 = vadd.f32 %v2098, %v2371
      %v2420 = vadd.f32 %v2099, %v2374
      %v2421 = vadd.f32 %v2100, %v2379
      %v2422 = vadd.f32 %v2101, %v2382
      %v2423 = vadd.f32 %v2102, %v2387
      %v2424 = vadd.f32 %v2103, %v2390
      %2425 = vst [vmem:[#allocation4] sm:$0xff] %v2393
      %2426 = vst [vmem:[#allocation4 + $0x8] sm:$0xff] %v2394
      %2427 = vst [vmem:[#allocation4 + $0x10] sm:$0xff] %v2395
      %2428 = vst [vmem:[#allocation4 + $0x18] sm:$0xff] %v2396
      %2429 = vst [vmem:[#allocation4 + $0x20] sm:$0xff] %v2397
      %2430 = vst [vmem:[#allocation4 + $0x28] sm:$0xff] %v2398
      %2431 = vst [vmem:[#allocation4 + $0x30] sm:$0xff] %v2399
      %2432 = vst [vmem:[#allocation4 + $0x38] sm:$0xff] %v2400
      %2433 = vst [vmem:[#allocation4 + $0x40] sm:$0xff] %v2401
      %2434 = vst [vmem:[#allocation4 + $0x48] sm:$0xff] %v2402
      %2435 = vst [vmem:[#allocation4 + $0x50] sm:$0xff] %v2403
      %2436 = vst [vmem:[#allocation4 + $0x58] sm:$0xff] %v2404
      %2437 = vst [vmem:[#allocation4 + $0x60] sm:$0xff] %v2405
      %2438 = vst [vmem:[#allocation4 + $0x68] sm:$0xff] %v2406
      %2439 = vst [vmem:[#allocation4 + $0x70] sm:$0xff] %v2407
      %2440 = vst [vmem:[#allocation4 + $0x78] sm:$0xff] %v2408
      %2441 = vst [vmem:[#allocation4 + $0x80] sm:$0xff] %v2409
      %2442 = vst [vmem:[#allocation4 + $0x88] sm:$0xff] %v2410
      %2443 = vst [vmem:[#allocation4 + $0x90] sm:$0xff] %v2411
      %2444 = vst [vmem:[#allocation4 + $0x98] sm:$0xff] %v2412
      %2445 = vst [vmem:[#allocation4 + $0xa0] sm:$0xff] %v2413
      %2446 = vst [vmem:[#allocation4 + $0xa8] sm:$0xff] %v2414
      %2447 = vst [vmem:[#allocation4 + $0xb0] sm:$0xff] %v2415
      %2448 = vst [vmem:[#allocation4 + $0xb8] sm:$0xff] %v2416
      %2449 = vst [vmem:[#allocation4 + $0xc0] sm:$0xff] %v2417
      %2450 = vst [vmem:[#allocation4 + $0xc8] sm:$0xff] %v2418
      %2451 = vst [vmem:[#allocation4 + $0xd0] sm:$0xff] %v2419
      %2452 = vst [vmem:[#allocation4 + $0xd8] sm:$0xff] %v2420
      %2453 = vst [vmem:[#allocation4 + $0xe0] sm:$0xff] %v2421
      %2454 = vst [vmem:[#allocation4 + $0xe8] sm:$0xff] %v2422
      %2455 = vst [vmem:[#allocation4 + $0xf0] sm:$0xff] %v2423
      %2456 = vst [vmem:[#allocation4 + $0xf8] sm:$0xff] %v2424
      %2457 = vst.msk [vmem:[#allocation2] sm:$0xff] %vm1847, %v1143
      %2458 = vst.msk [vmem:[#allocation2 + $0x8] sm:$0xff] %vm1847, %v1144
      %2459 = vst.msk [vmem:[#allocation2 + $0x10] sm:$0xff] %vm1847, %v1145
      %2460 = vst.msk [vmem:[#allocation2 + $0x18] sm:$0xff] %vm1847, %v1146
      %2461 = vst.msk [vmem:[#allocation2 + $0x20] sm:$0xff] %vm1847, %v1147
      %2462 = vst.msk [vmem:[#allocation2 + $0x28] sm:$0xff] %vm1847, %v1148
      %2463 = vst.msk [vmem:[#allocation2 + $0x30] sm:$0xff] %vm1847, %v1149
      %2464 = vst.msk [vmem:[#allocation2 + $0x38] sm:$0xff] %vm1847, %v1150
      %2465 = vst.msk [vmem:[#allocation2 + $0x40] sm:$0xff] %vm1847, %v1151
      %2466 = vst.msk [vmem:[#allocation2 + $0x48] sm:$0xff] %vm1847, %v1152
      %2467 = vst.msk [vmem:[#allocation2 + $0x50] sm:$0xff] %vm1847, %v1153
      %2468 = vst.msk [vmem:[#allocation2 + $0x58] sm:$0xff] %vm1847, %v1154
      %2469 = vst.msk [vmem:[#allocation2 + $0x60] sm:$0xff] %vm1847, %v1155
      %2470 = vst.msk [vmem:[#allocation2 + $0x68] sm:$0xff] %vm1847, %v1156
      %2471 = vst.msk [vmem:[#allocation2 + $0x70] sm:$0xff] %vm1847, %v1157
      %2472 = vst.msk [vmem:[#allocation2 + $0x78] sm:$0xff] %vm1847, %v1158
      %2473 = vst.msk [vmem:[#allocation2 + $0x80] sm:$0xff] %vm1847, %v1159
      %2474 = vst.msk [vmem:[#allocation2 + $0x88] sm:$0xff] %vm1847, %v1160
      %2475 = vst.msk [vmem:[#allocation2 + $0x90] sm:$0xff] %vm1847, %v1161
      %2476 = vst.msk [vmem:[#allocation2 + $0x98] sm:$0xff] %vm1847, %v1162
      %2477 = vst.msk [vmem:[#allocation2 + $0xa0] sm:$0xff] %vm1847, %v1163
      %2478 = vst.msk [vmem:[#allocation2 + $0xa8] sm:$0xff] %vm1847, %v1164
      %2479 = vst.msk [vmem:[#allocation2 + $0xb0] sm:$0xff] %vm1847, %v1165
      %2480 = vst.msk [vmem:[#allocation2 + $0xb8] sm:$0xff] %vm1847, %v1166
      %2481 = vst.msk [vmem:[#allocation2 + $0xc0] sm:$0xff] %vm1847, %v1167
      %2482 = vst.msk [vmem:[#allocation2 + $0xc8] sm:$0xff] %vm1847, %v1168
      %2483 = vst.msk [vmem:[#allocation2 + $0xd0] sm:$0xff] %vm1847, %v1169
      %2484 = vst.msk [vmem:[#allocation2 + $0xd8] sm:$0xff] %vm1847, %v1170
      %2485 = vst.msk [vmem:[#allocation2 + $0xe0] sm:$0xff] %vm1847, %v1171
      %2486 = vst.msk [vmem:[#allocation2 + $0xe8] sm:$0xff] %vm1847, %v1172
      %2487 = vst.msk [vmem:[#allocation2 + $0xf0] sm:$0xff] %vm1847, %v1173
      %2488 = vst.msk [vmem:[#allocation2 + $0xf8] sm:$0xff] %vm1847, %v1174
      %p2489 = scmp.eq.s32.totalorder %s25, 1
      // Predicated region
      $region53: #{attention_forward.3} parent=47 // pred_check
        %p2490 = pneg %p2489
      $region54: #{attention_forward.3} parent=47 // pred_check_branch
        %2492 = sbr.rel (%p2490) target = $region56
      $region55: #{attention_forward.3} parent=47 // pred_region
        %v2493 = vld [vmem:[#allocation4] sm:$0xff]
        %v2494 = vld [vmem:[#allocation4 + $0x8] sm:$0xff]
        %v2495 = vld [vmem:[#allocation4 + $0x10] sm:$0xff]
        %v2496 = vld [vmem:[#allocation4 + $0x18] sm:$0xff]
        %v2497 = vld [vmem:[#allocation4 + $0x20] sm:$0xff]
        %v2498 = vld [vmem:[#allocation4 + $0x28] sm:$0xff]
        %v2499 = vld [vmem:[#allocation4 + $0x30] sm:$0xff]
        %v2500 = vld [vmem:[#allocation4 + $0x38] sm:$0xff]
        %v2501 = vld [vmem:[#allocation4 + $0x40] sm:$0xff]
        %v2502 = vld [vmem:[#allocation4 + $0x48] sm:$0xff]
        %v2503 = vld [vmem:[#allocation4 + $0x50] sm:$0xff]
        %v2504 = vld [vmem:[#allocation4 + $0x58] sm:$0xff]
        %v2505 = vld [vmem:[#allocation4 + $0x60] sm:$0xff]
        %v2506 = vld [vmem:[#allocation4 + $0x68] sm:$0xff]
        %v2507 = vld [vmem:[#allocation4 + $0x70] sm:$0xff]
        %v2508 = vld [vmem:[#allocation4 + $0x78] sm:$0xff]
        %v2509 = vld [vmem:[#allocation4 + $0x80] sm:$0xff]
        %v2510 = vld [vmem:[#allocation4 + $0x88] sm:$0xff]
        %v2511 = vld [vmem:[#allocation4 + $0x90] sm:$0xff]
        %v2512 = vld [vmem:[#allocation4 + $0x98] sm:$0xff]
        %v2513 = vld [vmem:[#allocation4 + $0xa0] sm:$0xff]
        %v2514 = vld [vmem:[#allocation4 + $0xa8] sm:$0xff]
        %v2515 = vld [vmem:[#allocation4 + $0xb0] sm:$0xff]
        %v2516 = vld [vmem:[#allocation4 + $0xb8] sm:$0xff]
        %v2517 = vld [vmem:[#allocation4 + $0xc0] sm:$0xff]
        %v2518 = vld [vmem:[#allocation4 + $0xc8] sm:$0xff]
        %v2519 = vld [vmem:[#allocation4 + $0xd0] sm:$0xff]
        %v2520 = vld [vmem:[#allocation4 + $0xd8] sm:$0xff]
        %v2521 = vld [vmem:[#allocation4 + $0xe0] sm:$0xff]
        %v2522 = vld [vmem:[#allocation4 + $0xe8] sm:$0xff]
        %v2523 = vld [vmem:[#allocation4 + $0xf0] sm:$0xff]
        %v2524 = vld [vmem:[#allocation4 + $0xf8] sm:$0xff]
        %v2525 = vld [vmem:[#allocation3] sm:$0xff]
        %v2526 = vld [vmem:[#allocation3 + $0x8] sm:$0xff]
        %v2527 = vld [vmem:[#allocation3 + $0x10] sm:$0xff]
        %v2528 = vld [vmem:[#allocation3 + $0x18] sm:$0xff]
        %v2529 = vld [vmem:[#allocation3 + $0x20] sm:$0xff]
        %v2530 = vld [vmem:[#allocation3 + $0x28] sm:$0xff]
        %v2531 = vld [vmem:[#allocation3 + $0x30] sm:$0xff]
        %v2532 = vld [vmem:[#allocation3 + $0x38] sm:$0xff]
        %v2533 = vld [vmem:[#allocation3 + $0x40] sm:$0xff]
        %v2534 = vld [vmem:[#allocation3 + $0x48] sm:$0xff]
        %v2535 = vld [vmem:[#allocation3 + $0x50] sm:$0xff]
        %v2536 = vld [vmem:[#allocation3 + $0x58] sm:$0xff]
        %v2537 = vld [vmem:[#allocation3 + $0x60] sm:$0xff]
        %v2538 = vld [vmem:[#allocation3 + $0x68] sm:$0xff]
        %v2539 = vld [vmem:[#allocation3 + $0x70] sm:$0xff]
        %v2540 = vld [vmem:[#allocation3 + $0x78] sm:$0xff]
        %v2541 = vld [vmem:[#allocation3 + $0x80] sm:$0xff]
        %v2542 = vld [vmem:[#allocation3 + $0x88] sm:$0xff]
        %v2543 = vld [vmem:[#allocation3 + $0x90] sm:$0xff]
        %v2544 = vld [vmem:[#allocation3 + $0x98] sm:$0xff]
        %v2545 = vld [vmem:[#allocation3 + $0xa0] sm:$0xff]
        %v2546 = vld [vmem:[#allocation3 + $0xa8] sm:$0xff]
        %v2547 = vld [vmem:[#allocation3 + $0xb0] sm:$0xff]
        %v2548 = vld [vmem:[#allocation3 + $0xb8] sm:$0xff]
        %v2549 = vld [vmem:[#allocation3 + $0xc0] sm:$0xff]
        %v2550 = vld [vmem:[#allocation3 + $0xc8] sm:$0xff]
        %v2551 = vld [vmem:[#allocation3 + $0xd0] sm:$0xff]
        %v2552 = vld [vmem:[#allocation3 + $0xd8] sm:$0xff]
        %v2553 = vld [vmem:[#allocation3 + $0xe0] sm:$0xff]
        %v2554 = vld [vmem:[#allocation3 + $0xe8] sm:$0xff]
        %v2555 = vld [vmem:[#allocation3 + $0xf0] sm:$0xff]
        %v2556 = vld [vmem:[#allocation3 + $0xf8] sm:$0xff]
        %v2557 = vrcp.pop %v2525
        %v2558 = vrcp.pop %v2526
        %v2559 = vrcp.pop %v2527
        %v2560 = vrcp.pop %v2528
        %v2561 = vrcp.pop %v2529
        %v2562 = vrcp.pop %v2530
        %v2563 = vrcp.pop %v2531
        %v2564 = vrcp.pop %v2532
        %v2565 = vrcp.pop %v2533
        %v2566 = vrcp.pop %v2534
        %v2567 = vrcp.pop %v2535
        %v2568 = vrcp.pop %v2536
        %v2569 = vrcp.pop %v2537
        %v2570 = vrcp.pop %v2538
        %v2571 = vrcp.pop %v2539
        %v2572 = vrcp.pop %v2540
        %v2573 = vrcp.pop %v2541
        %v2574 = vrcp.pop %v2542
        %v2575 = vrcp.pop %v2543
        %v2576 = vrcp.pop %v2544
        %v2577 = vrcp.pop %v2545
        %v2578 = vrcp.pop %v2546
        %v2579 = vrcp.pop %v2547
        %v2580 = vrcp.pop %v2548
        %v2581 = vrcp.pop %v2549
        %v2582 = vrcp.pop %v2550
        %v2583 = vrcp.pop %v2551
        %v2584 = vrcp.pop %v2552
        %v2585 = vrcp.pop %v2553
        %v2586 = vrcp.pop %v2554
        %v2587 = vrcp.pop %v2555
        %v2588 = vrcp.pop %v2556
        %2590 = vset.pattern.permute.xlu0 0
        %2591 = vperm.xlu0 %2590, %v2557
        %v2592 = vpop.permute.xlu0 %2591
        %2595 = vset.pattern.permute.xlu0 0
        %2596 = vperm.xlu0 %2595, %v2558
        %v2597 = vpop.permute.xlu0 %2596
        %2600 = vset.pattern.permute.xlu0 0
        %2601 = vperm.xlu0 %2600, %v2559
        %v2602 = vpop.permute.xlu0 %2601
        %2605 = vset.pattern.permute.xlu0 0
        %2606 = vperm.xlu0 %2605, %v2560
        %v2607 = vpop.permute.xlu0 %2606
        %2610 = vset.pattern.permute.xlu0 0
        %2611 = vperm.xlu0 %2610, %v2561
        %v2612 = vpop.permute.xlu0 %2611
        %2615 = vset.pattern.permute.xlu0 0
        %2616 = vperm.xlu0 %2615, %v2562
        %v2617 = vpop.permute.xlu0 %2616
        %2620 = vset.pattern.permute.xlu0 0
        %2621 = vperm.xlu0 %2620, %v2563
        %v2622 = vpop.permute.xlu0 %2621
        %2625 = vset.pattern.permute.xlu0 0
        %2626 = vperm.xlu0 %2625, %v2564
        %v2627 = vpop.permute.xlu0 %2626
        %2630 = vset.pattern.permute.xlu0 0
        %2631 = vperm.xlu0 %2630, %v2565
        %v2632 = vpop.permute.xlu0 %2631
        %2635 = vset.pattern.permute.xlu0 0
        %2636 = vperm.xlu0 %2635, %v2566
        %v2637 = vpop.permute.xlu0 %2636
        %2640 = vset.pattern.permute.xlu0 0
        %2641 = vperm.xlu0 %2640, %v2567
        %v2642 = vpop.permute.xlu0 %2641
        %2645 = vset.pattern.permute.xlu0 0
        %2646 = vperm.xlu0 %2645, %v2568
        %v2647 = vpop.permute.xlu0 %2646
        %2650 = vset.pattern.permute.xlu0 0
        %2651 = vperm.xlu0 %2650, %v2569
        %v2652 = vpop.permute.xlu0 %2651
        %2655 = vset.pattern.permute.xlu0 0
        %2656 = vperm.xlu0 %2655, %v2570
        %v2657 = vpop.permute.xlu0 %2656
        %2660 = vset.pattern.permute.xlu0 0
        %2661 = vperm.xlu0 %2660, %v2571
        %v2662 = vpop.permute.xlu0 %2661
        %2665 = vset.pattern.permute.xlu0 0
        %2666 = vperm.xlu0 %2665, %v2572
        %v2667 = vpop.permute.xlu0 %2666
        %2670 = vset.pattern.permute.xlu0 0
        %2671 = vperm.xlu0 %2670, %v2573
        %v2672 = vpop.permute.xlu0 %2671
        %2675 = vset.pattern.permute.xlu0 0
        %2676 = vperm.xlu0 %2675, %v2574
        %v2677 = vpop.permute.xlu0 %2676
        %2680 = vset.pattern.permute.xlu0 0
        %2681 = vperm.xlu0 %2680, %v2575
        %v2682 = vpop.permute.xlu0 %2681
        %2685 = vset.pattern.permute.xlu0 0
        %2686 = vperm.xlu0 %2685, %v2576
        %v2687 = vpop.permute.xlu0 %2686
        %2690 = vset.pattern.permute.xlu0 0
        %2691 = vperm.xlu0 %2690, %v2577
        %v2692 = vpop.permute.xlu0 %2691
        %2695 = vset.pattern.permute.xlu0 0
        %2696 = vperm.xlu0 %2695, %v2578
        %v2697 = vpop.permute.xlu0 %2696
        %2700 = vset.pattern.permute.xlu0 0
        %2701 = vperm.xlu0 %2700, %v2579
        %v2702 = vpop.permute.xlu0 %2701
        %2705 = vset.pattern.permute.xlu0 0
        %2706 = vperm.xlu0 %2705, %v2580
        %v2707 = vpop.permute.xlu0 %2706
        %2710 = vset.pattern.permute.xlu0 0
        %2711 = vperm.xlu0 %2710, %v2581
        %v2712 = vpop.permute.xlu0 %2711
        %2715 = vset.pattern.permute.xlu0 0
        %2716 = vperm.xlu0 %2715, %v2582
        %v2717 = vpop.permute.xlu0 %2716
        %2720 = vset.pattern.permute.xlu0 0
        %2721 = vperm.xlu0 %2720, %v2583
        %v2722 = vpop.permute.xlu0 %2721
        %2725 = vset.pattern.permute.xlu0 0
        %2726 = vperm.xlu0 %2725, %v2584
        %v2727 = vpop.permute.xlu0 %2726
        %2730 = vset.pattern.permute.xlu0 0
        %2731 = vperm.xlu0 %2730, %v2585
        %v2732 = vpop.permute.xlu0 %2731
        %2735 = vset.pattern.permute.xlu0 0
        %2736 = vperm.xlu0 %2735, %v2586
        %v2737 = vpop.permute.xlu0 %2736
        %2740 = vset.pattern.permute.xlu0 0
        %2741 = vperm.xlu0 %2740, %v2587
        %v2742 = vpop.permute.xlu0 %2741
        %2745 = vset.pattern.permute.xlu0 0
        %2746 = vperm.xlu0 %2745, %v2588
        %v2747 = vpop.permute.xlu0 %2746
        %v2749 = vmul.f32 %v2493, %v2592
        %v2750 = vmul.f32 %v2494, %v2597
        %v2751 = vmul.f32 %v2495, %v2602
        %v2752 = vmul.f32 %v2496, %v2607
        %v2753 = vmul.f32 %v2497, %v2612
        %v2754 = vmul.f32 %v2498, %v2617
        %v2755 = vmul.f32 %v2499, %v2622
        %v2756 = vmul.f32 %v2500, %v2627
        %v2757 = vmul.f32 %v2501, %v2632
        %v2758 = vmul.f32 %v2502, %v2637
        %v2759 = vmul.f32 %v2503, %v2642
        %v2760 = vmul.f32 %v2504, %v2647
        %v2761 = vmul.f32 %v2505, %v2652
        %v2762 = vmul.f32 %v2506, %v2657
        %v2763 = vmul.f32 %v2507, %v2662
        %v2764 = vmul.f32 %v2508, %v2667
        %v2765 = vmul.f32 %v2509, %v2672
        %v2766 = vmul.f32 %v2510, %v2677
        %v2767 = vmul.f32 %v2511, %v2682
        %v2768 = vmul.f32 %v2512, %v2687
        %v2769 = vmul.f32 %v2513, %v2692
        %v2770 = vmul.f32 %v2514, %v2697
        %v2771 = vmul.f32 %v2515, %v2702
        %v2772 = vmul.f32 %v2516, %v2707
        %v2773 = vmul.f32 %v2517, %v2712
        %v2774 = vmul.f32 %v2518, %v2717
        %v2775 = vmul.f32 %v2519, %v2722
        %v2776 = vmul.f32 %v2520, %v2727
        %v2777 = vmul.f32 %v2521, %v2732
        %v2778 = vmul.f32 %v2522, %v2737
        %v2779 = vmul.f32 %v2523, %v2742
        %v2780 = vmul.f32 %v2524, %v2747
        %v2781 = vpack.c.bf16 %v2750, %v2749
        %v2782 = vpack.c.bf16 %v2752, %v2751
        %v2783 = vpack.c.bf16 %v2754, %v2753
        %v2784 = vpack.c.bf16 %v2756, %v2755
        %v2785 = vpack.c.bf16 %v2758, %v2757
        %v2786 = vpack.c.bf16 %v2760, %v2759
        %v2787 = vpack.c.bf16 %v2762, %v2761
        %v2788 = vpack.c.bf16 %v2764, %v2763
        %v2789 = vpack.c.bf16 %v2766, %v2765
        %v2790 = vpack.c.bf16 %v2768, %v2767
        %v2791 = vpack.c.bf16 %v2770, %v2769
        %v2792 = vpack.c.bf16 %v2772, %v2771
        %v2793 = vpack.c.bf16 %v2774, %v2773
        %v2794 = vpack.c.bf16 %v2776, %v2775
        %v2795 = vpack.c.bf16 %v2778, %v2777
        %v2796 = vpack.c.bf16 %v2780, %v2779
        %v2797 = vld [vmem:[%s5] sm:$0xf]
        %v2798 = vld [vmem:[%s5 + $0x4] sm:$0xf]
        %v2799 = vld [vmem:[%s5 + $0x8] sm:$0xf]
        %v2800 = vld [vmem:[%s5 + $0xc] sm:$0xf]
        %v2801 = vld [vmem:[%s5 + $0x10] sm:$0xf]
        %v2802 = vld [vmem:[%s5 + $0x14] sm:$0xf]
        %v2803 = vld [vmem:[%s5 + $0x18] sm:$0xf]
        %v2804 = vld [vmem:[%s5 + $0x1c] sm:$0xf]
        %v2805 = vld [vmem:[%s5 + $0x20] sm:$0xf]
        %v2806 = vld [vmem:[%s5 + $0x24] sm:$0xf]
        %v2807 = vld [vmem:[%s5 + $0x28] sm:$0xf]
        %v2808 = vld [vmem:[%s5 + $0x2c] sm:$0xf]
        %v2809 = vld [vmem:[%s5 + $0x30] sm:$0xf]
        %v2810 = vld [vmem:[%s5 + $0x34] sm:$0xf]
        %v2811 = vld [vmem:[%s5 + $0x38] sm:$0xf]
        %v2812 = vld [vmem:[%s5 + $0x3c] sm:$0xf]
        %v2813 = vld [vmem:[%s6] sm:$0x1]
        %v2815 = vlaneseq
        %v2816 = vshrl.u32 %v2815, 7
        %v2817 = vsub.s32 0, %v2816
        %v2818 = vrot.slane %v2813, %v2817
        %v2836 = vunpack.c.l.b16 %v2797
        %v2837 = vunpack.c.l.b16 %v2798
        %v2838 = vunpack.c.l.b16 %v2799
        %v2839 = vunpack.c.l.b16 %v2800
        %v2840 = vunpack.c.l.b16 %v2801
        %v2841 = vunpack.c.l.b16 %v2802
        %v2842 = vunpack.c.l.b16 %v2803
        %v2843 = vunpack.c.l.b16 %v2804
        %v2844 = vunpack.c.l.b16 %v2805
        %v2845 = vunpack.c.l.b16 %v2806
        %v2846 = vunpack.c.l.b16 %v2807
        %v2847 = vunpack.c.l.b16 %v2808
        %v2848 = vunpack.c.l.b16 %v2809
        %v2849 = vunpack.c.l.b16 %v2810
        %v2850 = vunpack.c.l.b16 %v2811
        %v2851 = vunpack.c.l.b16 %v2812
        %v2852 = vpack.c.b16 %v2837, %v2836
        %v2853 = vpack.c.b16 %v2839, %v2838
        %v2854 = vpack.c.b16 %v2841, %v2840
        %v2855 = vpack.c.b16 %v2843, %v2842
        %v2856 = vpack.c.b16 %v2845, %v2844
        %v2857 = vpack.c.b16 %v2847, %v2846
        %v2858 = vpack.c.b16 %v2849, %v2848
        %v2859 = vpack.c.b16 %v2851, %v2850
        %2868 = vmatprep.subr.bf16.mxu0 0
        %2869 = vmatpush1.bf16.msra.mxu0 %v2852
        %2870 = vmatprep.subr.bf16.mxu0 0
        %2871 = vmatpush1.bf16.msra.mxu0 %v2853
        %2872 = vmatprep.subr.bf16.mxu0 0
        %2873 = vmatpush1.bf16.msra.mxu0 %v2854
        %2874 = vmatprep.subr.bf16.mxu0 0
        %2875 = vmatpush1.bf16.msra.mxu0 %v2855
        %2876 = vmatprep.subr.bf16.mxu0 0
        %2877 = vmatpush1.bf16.msra.mxu0 %v2856
        %2878 = vmatprep.subr.bf16.mxu0 0
        %2879 = vmatpush1.bf16.msra.mxu0 %v2857
        %2880 = vmatprep.subr.bf16.mxu0 0
        %2881 = vmatpush1.bf16.msra.mxu0 %v2858
        %2882 = vmatprep.subr.bf16.mxu0 0
        %2883 = vmatpush1.bf16.msra.mxu0 %v2859
        %2884 = vmatprep.subr.bf16.mxu0 0
        %2885 = vmatpush1.bf16.msra.mxu0 0
        %2886 = vmatprep.subr.bf16.mxu0 0
        %2887 = vmatpush1.bf16.msra.mxu0 0
        %2888 = vmatprep.subr.bf16.mxu0 0
        %2889 = vmatpush1.bf16.msra.mxu0 0
        %2890 = vmatprep.subr.bf16.mxu0 0
        %2891 = vmatpush1.bf16.msra.mxu0 0
        %2892 = vmatprep.subr.bf16.mxu0 0
        %2893 = vmatpush1.bf16.msra.mxu0 0
        %2894 = vmatprep.subr.bf16.mxu0 0
        %2895 = vmatpush1.bf16.msra.mxu0 0
        %2896 = vmatprep.subr.bf16.mxu0 0
        %2897 = vmatpush1.bf16.msra.mxu0 0
        %2898 = vmatprep.subr.bf16.mxu0 0
        %2899 = vmatpush1.bf16.msra.mxu0 0
        %2900 = vmatprep.mubr.bf16.mxu0 0
        %2901 = vmatmul.mubr.bf16.gmra.mrb[0].mxu0 %v2781
        %v2902 = vpop.f32.mrb[0].mxu0
        %v2903 = vadd.f32 %v2818, %v2902
        %v2904 = vpop.f32.mrb[0].mxu0
        %v2905 = vpop.f32.mrb[0].mxu0
        %v2906 = vadd.f32 %v2818, %v2905
        %v2907 = vpop.f32.mrb[0].mxu0
        %2908 = vmatprep.mubr.bf16.mxu0 0
        %2909 = vmatmul.mubr.bf16.gmra.mrb[0].mxu0 %v2782
        %v2910 = vpop.f32.mrb[0].mxu0
        %v2911 = vadd.f32 %v2818, %v2910
        %v2912 = vpop.f32.mrb[0].mxu0
        %v2913 = vpop.f32.mrb[0].mxu0
        %v2914 = vadd.f32 %v2818, %v2913
        %v2915 = vpop.f32.mrb[0].mxu0
        %2916 = vmatprep.mubr.bf16.mxu0 0
        %2917 = vmatmul.mubr.bf16.gmra.mrb[0].mxu0 %v2783
        %v2918 = vpop.f32.mrb[0].mxu0
        %v2919 = vadd.f32 %v2818, %v2918
        %v2920 = vpop.f32.mrb[0].mxu0
        %v2921 = vpop.f32.mrb[0].mxu0
        %v2922 = vadd.f32 %v2818, %v2921
        %v2923 = vpop.f32.mrb[0].mxu0
        %2924 = vmatprep.mubr.bf16.mxu0 0
        %2925 = vmatmul.mubr.bf16.gmra.mrb[0].mxu0 %v2784
        %v2926 = vpop.f32.mrb[0].mxu0
        %v2927 = vadd.f32 %v2818, %v2926
        %v2928 = vpop.f32.mrb[0].mxu0
        %v2929 = vpop.f32.mrb[0].mxu0
        %v2930 = vadd.f32 %v2818, %v2929
        %v2931 = vpop.f32.mrb[0].mxu0
        %2932 = vmatprep.mubr.bf16.mxu0 0
        %2933 = vmatmul.mubr.bf16.gmra.mrb[0].mxu0 %v2785
        %v2934 = vpop.f32.mrb[0].mxu0
        %v2935 = vadd.f32 %v2818, %v2934
        %v2936 = vpop.f32.mrb[0].mxu0
        %v2937 = vpop.f32.mrb[0].mxu0
        %v2938 = vadd.f32 %v2818, %v2937
        %v2939 = vpop.f32.mrb[0].mxu0
        %2940 = vmatprep.mubr.bf16.mxu0 0
        %2941 = vmatmul.mubr.bf16.gmra.mrb[0].mxu0 %v2786
        %v2942 = vpop.f32.mrb[0].mxu0
        %v2943 = vadd.f32 %v2818, %v2942
        %v2944 = vpop.f32.mrb[0].mxu0
        %v2945 = vpop.f32.mrb[0].mxu0
        %v2946 = vadd.f32 %v2818, %v2945
        %v2947 = vpop.f32.mrb[0].mxu0
        %2948 = vmatprep.mubr.bf16.mxu0 0
        %2949 = vmatmul.mubr.bf16.gmra.mrb[0].mxu0 %v2787
        %v2950 = vpop.f32.mrb[0].mxu0
        %v2951 = vadd.f32 %v2818, %v2950
        %v2952 = vpop.f32.mrb[0].mxu0
        %v2953 = vpop.f32.mrb[0].mxu0
        %v2954 = vadd.f32 %v2818, %v2953
        %v2955 = vpop.f32.mrb[0].mxu0
        %2956 = vmatprep.mubr.bf16.mxu0 0
        %2957 = vmatmul.mubr.bf16.gmra.mrb[0].mxu0 %v2788
        %v2958 = vpop.f32.mrb[0].mxu0
        %v2959 = vadd.f32 %v2818, %v2958
        %v2960 = vpop.f32.mrb[0].mxu0
        %v2961 = vpop.f32.mrb[0].mxu0
        %v2962 = vadd.f32 %v2818, %v2961
        %v2963 = vpop.f32.mrb[0].mxu0
        %2964 = vmatprep.mubr.bf16.mxu0 0
        %2965 = vmatmul.mubr.bf16.gmra.mrb[0].mxu0 %v2789
        %v2966 = vpop.f32.mrb[0].mxu0
        %v2967 = vadd.f32 %v2818, %v2966
        %v2968 = vpop.f32.mrb[0].mxu0
        %v2969 = vpop.f32.mrb[0].mxu0
        %v2970 = vadd.f32 %v2818, %v2969
        %v2971 = vpop.f32.mrb[0].mxu0
        %2972 = vmatprep.mubr.bf16.mxu0 0
        %2973 = vmatmul.mubr.bf16.gmra.mrb[0].mxu0 %v2790
        %v2974 = vpop.f32.mrb[0].mxu0
        %v2975 = vadd.f32 %v2818, %v2974
        %v2976 = vpop.f32.mrb[0].mxu0
        %v2977 = vpop.f32.mrb[0].mxu0
        %v2978 = vadd.f32 %v2818, %v2977
        %v2979 = vpop.f32.mrb[0].mxu0
        %2980 = vmatprep.mubr.bf16.mxu0 0
        %2981 = vmatmul.mubr.bf16.gmra.mrb[0].mxu0 %v2791
        %v2982 = vpop.f32.mrb[0].mxu0
        %v2983 = vadd.f32 %v2818, %v2982
        %v2984 = vpop.f32.mrb[0].mxu0
        %v2985 = vpop.f32.mrb[0].mxu0
        %v2986 = vadd.f32 %v2818, %v2985
        %v2987 = vpop.f32.mrb[0].mxu0
        %2988 = vmatprep.mubr.bf16.mxu0 0
        %2989 = vmatmul.mubr.bf16.gmra.mrb[0].mxu0 %v2792
        %v2990 = vpop.f32.mrb[0].mxu0
        %v2991 = vadd.f32 %v2818, %v2990
        %v2992 = vpop.f32.mrb[0].mxu0
        %v2993 = vpop.f32.mrb[0].mxu0
        %v2994 = vadd.f32 %v2818, %v2993
        %v2995 = vpop.f32.mrb[0].mxu0
        %2996 = vmatprep.mubr.bf16.mxu0 0
        %2997 = vmatmul.mubr.bf16.gmra.mrb[0].mxu0 %v2793
        %v2998 = vpop.f32.mrb[0].mxu0
        %v2999 = vadd.f32 %v2818, %v2998
        %v3000 = vpop.f32.mrb[0].mxu0
        %v3001 = vpop.f32.mrb[0].mxu0
        %v3002 = vadd.f32 %v2818, %v3001
        %v3003 = vpop.f32.mrb[0].mxu0
        %3004 = vmatprep.mubr.bf16.mxu0 0
        %3005 = vmatmul.mubr.bf16.gmra.mrb[0].mxu0 %v2794
        %v3006 = vpop.f32.mrb[0].mxu0
        %v3007 = vadd.f32 %v2818, %v3006
        %v3008 = vpop.f32.mrb[0].mxu0
        %v3009 = vpop.f32.mrb[0].mxu0
        %v3010 = vadd.f32 %v2818, %v3009
        %v3011 = vpop.f32.mrb[0].mxu0
        %3012 = vmatprep.mubr.bf16.mxu0 0
        %3013 = vmatmul.mubr.bf16.gmra.mrb[0].mxu0 %v2795
        %v3014 = vpop.f32.mrb[0].mxu0
        %v3015 = vadd.f32 %v2818, %v3014
        %v3016 = vpop.f32.mrb[0].mxu0
        %v3017 = vpop.f32.mrb[0].mxu0
        %v3018 = vadd.f32 %v2818, %v3017
        %v3019 = vpop.f32.mrb[0].mxu0
        %3020 = vmatprep.mubr.bf16.mxu0 0
        %3021 = vmatmul.mubr.bf16.gmra.mrb[0].mxu0 %v2796
        %v3022 = vpop.f32.mrb[0].mxu0
        %v3023 = vadd.f32 %v2818, %v3022
        %v3024 = vpop.f32.mrb[0].mxu0
        %v3025 = vpop.f32.mrb[0].mxu0
        %v3026 = vadd.f32 %v2818, %v3025
        %v3027 = vpop.f32.mrb[0].mxu0
        %3028 = vdwg.mxu0
        %v3029 = vld [vmem:[%s440] sm:$0xff]
        %v3030 = vld [vmem:[%s440 + $0x8] sm:$0xff]
        %v3031 = vld [vmem:[%s440 + $0x10] sm:$0xff]
        %v3032 = vld [vmem:[%s440 + $0x18] sm:$0xff]
        %v3033 = vld [vmem:[%s440 + $0x20] sm:$0xff]
        %v3034 = vld [vmem:[%s440 + $0x28] sm:$0xff]
        %v3035 = vld [vmem:[%s440 + $0x30] sm:$0xff]
        %v3036 = vld [vmem:[%s440 + $0x38] sm:$0xff]
        %v3037 = vld [vmem:[%s440 + $0x40] sm:$0xff]
        %v3038 = vld [vmem:[%s440 + $0x48] sm:$0xff]
        %v3039 = vld [vmem:[%s440 + $0x50] sm:$0xff]
        %v3040 = vld [vmem:[%s440 + $0x58] sm:$0xff]
        %v3041 = vld [vmem:[%s440 + $0x60] sm:$0xff]
        %v3042 = vld [vmem:[%s440 + $0x68] sm:$0xff]
        %v3043 = vld [vmem:[%s440 + $0x70] sm:$0xff]
        %v3044 = vld [vmem:[%s440 + $0x78] sm:$0xff]
        %v3045 = vld [vmem:[%s440 + $0x80] sm:$0xff]
        %v3046 = vld [vmem:[%s440 + $0x88] sm:$0xff]
        %v3047 = vld [vmem:[%s440 + $0x90] sm:$0xff]
        %v3048 = vld [vmem:[%s440 + $0x98] sm:$0xff]
        %v3049 = vld [vmem:[%s440 + $0xa0] sm:$0xff]
        %v3050 = vld [vmem:[%s440 + $0xa8] sm:$0xff]
        %v3051 = vld [vmem:[%s440 + $0xb0] sm:$0xff]
        %v3052 = vld [vmem:[%s440 + $0xb8] sm:$0xff]
        %v3053 = vld [vmem:[%s440 + $0xc0] sm:$0xff]
        %v3054 = vld [vmem:[%s440 + $0xc8] sm:$0xff]
        %v3055 = vld [vmem:[%s440 + $0xd0] sm:$0xff]
        %v3056 = vld [vmem:[%s440 + $0xd8] sm:$0xff]
        %v3057 = vld [vmem:[%s440 + $0xe0] sm:$0xff]
        %v3058 = vld [vmem:[%s440 + $0xe8] sm:$0xff]
        %v3059 = vld [vmem:[%s440 + $0xf0] sm:$0xff]
        %v3060 = vld [vmem:[%s440 + $0xf8] sm:$0xff]
        %v3061 = vadd.f32 %v3029, %v2903
        %v3062 = vadd.f32 %v3030, %v2906
        %v3063 = vadd.f32 %v3031, %v2911
        %v3064 = vadd.f32 %v3032, %v2914
        %v3065 = vadd.f32 %v3033, %v2919
        %v3066 = vadd.f32 %v3034, %v2922
        %v3067 = vadd.f32 %v3035, %v2927
        %v3068 = vadd.f32 %v3036, %v2930
        %v3069 = vadd.f32 %v3037, %v2935
        %v3070 = vadd.f32 %v3038, %v2938
        %v3071 = vadd.f32 %v3039, %v2943
        %v3072 = vadd.f32 %v3040, %v2946
        %v3073 = vadd.f32 %v3041, %v2951
        %v3074 = vadd.f32 %v3042, %v2954
        %v3075 = vadd.f32 %v3043, %v2959
        %v3076 = vadd.f32 %v3044, %v2962
        %v3077 = vadd.f32 %v3045, %v2967
        %v3078 = vadd.f32 %v3046, %v2970
        %v3079 = vadd.f32 %v3047, %v2975
        %v3080 = vadd.f32 %v3048, %v2978
        %v3081 = vadd.f32 %v3049, %v2983
        %v3082 = vadd.f32 %v3050, %v2986
        %v3083 = vadd.f32 %v3051, %v2991
        %v3084 = vadd.f32 %v3052, %v2994
        %v3085 = vadd.f32 %v3053, %v2999
        %v3086 = vadd.f32 %v3054, %v3002
        %v3087 = vadd.f32 %v3055, %v3007
        %v3088 = vadd.f32 %v3056, %v3010
        %v3089 = vadd.f32 %v3057, %v3015
        %v3090 = vadd.f32 %v3058, %v3018
        %v3091 = vadd.f32 %v3059, %v3023
        %v3092 = vadd.f32 %v3060, %v3026
        %3093 = vst [vmem:[%s450] sm:$0xff] %v3061
        %3094 = vst [vmem:[%s450 + $0x8] sm:$0xff] %v3062
        %3095 = vst [vmem:[%s450 + $0x10] sm:$0xff] %v3063
        %3096 = vst [vmem:[%s450 + $0x18] sm:$0xff] %v3064
        %3097 = vst [vmem:[%s450 + $0x20] sm:$0xff] %v3065
        %3098 = vst [vmem:[%s450 + $0x28] sm:$0xff] %v3066
        %3099 = vst [vmem:[%s450 + $0x30] sm:$0xff] %v3067
        %3100 = vst [vmem:[%s450 + $0x38] sm:$0xff] %v3068
        %3101 = vst [vmem:[%s450 + $0x40] sm:$0xff] %v3069
        %3102 = vst [vmem:[%s450 + $0x48] sm:$0xff] %v3070
        %3103 = vst [vmem:[%s450 + $0x50] sm:$0xff] %v3071
        %3104 = vst [vmem:[%s450 + $0x58] sm:$0xff] %v3072
        %3105 = vst [vmem:[%s450 + $0x60] sm:$0xff] %v3073
        %3106 = vst [vmem:[%s450 + $0x68] sm:$0xff] %v3074
        %3107 = vst [vmem:[%s450 + $0x70] sm:$0xff] %v3075
        %3108 = vst [vmem:[%s450 + $0x78] sm:$0xff] %v3076
        %3109 = vst [vmem:[%s450 + $0x80] sm:$0xff] %v3077
        %3110 = vst [vmem:[%s450 + $0x88] sm:$0xff] %v3078
        %3111 = vst [vmem:[%s450 + $0x90] sm:$0xff] %v3079
        %3112 = vst [vmem:[%s450 + $0x98] sm:$0xff] %v3080
        %3113 = vst [vmem:[%s450 + $0xa0] sm:$0xff] %v3081
        %3114 = vst [vmem:[%s450 + $0xa8] sm:$0xff] %v3082
        %3115 = vst [vmem:[%s450 + $0xb0] sm:$0xff] %v3083
        %3116 = vst [vmem:[%s450 + $0xb8] sm:$0xff] %v3084
        %3117 = vst [vmem:[%s450 + $0xc0] sm:$0xff] %v3085
        %3118 = vst [vmem:[%s450 + $0xc8] sm:$0xff] %v3086
        %3119 = vst [vmem:[%s450 + $0xd0] sm:$0xff] %v3087
        %3120 = vst [vmem:[%s450 + $0xd8] sm:$0xff] %v3088
        %3121 = vst [vmem:[%s450 + $0xe0] sm:$0xff] %v3089
        %3122 = vst [vmem:[%s450 + $0xe8] sm:$0xff] %v3090
        %3123 = vst [vmem:[%s450 + $0xf0] sm:$0xff] %v3091
        %3124 = vst [vmem:[%s450 + $0xf8] sm:$0xff] %v3092
      $region56: #{attention_forward.3} parent=47 // pred_fallthru
        _
      %s3125 = smul.u32 32, %s24
      %p3126 = scmp.lt.s32.totalorder %s23, 1
      %s3127 = scalar_select %p3126, %s23, 1
      %p3128 = scmp.lt.s32.totalorder %s3125, 63
      %s3129 = scalar_select %p3128, %s3125, 63
      %s3130 = smul.addr %s3127, 64
      %s3131 = sadd.s32 %s3129, %s3130
      %s3132 = smul.addr %s3131, 8
      %s3133 = scalar_lea.vmem %s7, %s3132
      // Predicated region
      $region57: #{attention_forward.3} parent=47 // pred_check
        %p3134 = pneg %p237
      $region58: #{attention_forward.3} parent=47 // pred_check_branch
        %3136 = sbr.rel (%p3134) target = $region60
      $region59: #{attention_forward.3} parent=47 // pred_region
        %s3137 = smul.u32 32, %s24
      $region60: #{attention_forward.3} parent=47 // pred_fallthru
        _
    $region48: #{attention_forward.3} parent=5 // pred_fallthru
      _
    %p3138 = scmp.le.s32.totalorder 2, %s13
    // Predicated region
    $region61: #{attention_forward.3} parent=5 // pred_check
      %p3139 = pneg %p3138
    $region62: #{attention_forward.3} parent=5 // pred_check_branch
      %3141 = sbr.rel (%p3139) target = $region64
    $region63: #{attention_forward.3} parent=5 // pred_region
      %s3142 = ssub.s32 %s13, 2
      // Predicated region
      $region65: #{attention_forward.3} parent=63 // pred_check
        %p3143 = pneg %p243
      $region66: #{attention_forward.3} parent=63 // pred_check_branch
        %3145 = sbr.rel (%p3143) target = $region68
      $region67: #{attention_forward.3} parent=63 // pred_region
        %s3146 = smul.u32 32, %s27
        %p3147 = scmp.lt.s32.totalorder %s26, 1
        %s3148 = scalar_select %p3147, %s26, 1
        %p3149 = scmp.lt.s32.totalorder %s3146, 63
        %s3150 = scalar_select %p3149, %s3146, 63
        %s3151 = smul.addr %s3148, 64
        %s3152 = sadd.s32 %s3150, %s3151
        %s3153 = smul.addr %s3152, 8
        %s3154 = scalar_lea.vmem %s7, %s3153
      $region68: #{attention_forward.3} parent=63 // pred_fallthru
        _
    $region64: #{attention_forward.3} parent=5 // pred_fallthru
      _
  $region6: #{attention_forward.3} parent=0 // loop_footer
    %s17 = sadd.s32 1, %s13
  $region7: #{attention_forward.3} parent=0 // loop_footer_branch
    %12 = sbr.rel target = $region3
  $region8: #{attention_forward.3} parent=0 // loop_exit
    _

</llo_original>
